<compile_context>
chip_gen: v5e
topology: v5e:2x2
jax: 0.10.0
libtpu: 0.0.40
codegen_flags: <defaults>
</compile_context>

<pallas_src>
import jax
import jax.numpy as jnp
from jax.experimental import pallas as pl
from jax.experimental.pallas import tpu as pltpu


# ----------------------------- Kernel A ------------------------------------
# relu6 + Haar low/high split + global-average-pool, one batch per grid step.
#   xs  : (B, 4, Hh, Wh, C)        parity-split input (see glue)
#   x1s : (B, 4, Hh+1, Wh+1, C)    high-freq part, zero-padded stride-2 layout
#   x2s : (B, 4, Hh+1, Wh+1, C)    low-freq  part, zero-padded stride-2 layout
#   g   : (B, 1, C)                per-channel mean of relu6(x)  (== GAP(x2))
def _haar_split_kernel(x_ref, x1_ref, x2_ref, g_ref):
    Hh, Wh = x_ref.shape[2], x_ref.shape[3]
    # Four parity planes y[2p+q][i, j, c] = relu6(x[2i+p, 2j+q, c]).
    y = [jnp.clip(x_ref[0, m], 0.0, 6.0) for m in range(4)]
    s = (y[0] + y[1]) + (y[2] + y[3])
    x2b = 0.25 * s                                     # 2x2 block average
    # Haar identities: mean(x1) == 0, mean(x2) == mean(relu6(x)) -> 1 reduction,
    # written lane-dense along C.
    t = jnp.sum(s, axis=0, keepdims=True)
    t = jnp.sum(t, axis=1, keepdims=True)              # (1, 1, C)
    g_ref[...] = (t * (1.0 / float(4 * Hh * Wh))).astype(g_ref.dtype)
    # Write into the zero-padded stride-2-decomposed layout:
    #   out[m, h2, w2, c] = padded(z)[2*h2 + m//2, 2*w2 + m%2, c]
    # so that every conv tap in kernel B is a contiguous static slice.
    x1_ref[...] = jnp.zeros_like(x1_ref)
    x2_ref[...] = jnp.zeros_like(x2_ref)
    for p in range(2):
        for q in range(2):
            m_in = 2 * p + q
            m_out = 2 * (1 - p) + (1 - q)              # parity after the pad-by-1 shift
            x1_ref[0, m_out, p:p + Hh, q:q + Wh, :] = (y[m_in] - x2b).astype(x1_ref.dtype)
            x2_ref[0, m_out, p:p + Hh, q:q + Wh, :] = x2b.astype(x2_ref.dtype)


def haar_split(xs, storage_dtype=jnp.float32):
    B, _, Hh, Wh, C = xs.shape
    Hp2, Wp2 = Hh + 1, Wh + 1
    out_shape = (
        jax.ShapeDtypeStruct((B, 4, Hp2, Wp2, C), storage_dtype),
        jax.ShapeDtypeStruct((B, 4, Hp2, Wp2, C), storage_dtype),
        jax.ShapeDtypeStruct((B, 1, C), jnp.float32),
    )
    return pl.pallas_call(
        _haar_split_kernel,
        out_shape=out_shape,
        grid_spec=pltpu.PrefetchScalarGridSpec(
            num_scalar_prefetch=0,
            grid=(B,),
            in_specs=[pl.BlockSpec((1, 4, Hh, Wh, C), lambda b: (b, 0, 0, 0, 0))],
            out_specs=[
                pl.BlockSpec((1, 4, Hp2, Wp2, C), lambda b: (b, 0, 0, 0, 0)),
                pl.BlockSpec((1, 4, Hp2, Wp2, C), lambda b: (b, 0, 0, 0, 0)),
                pl.BlockSpec((1, 1, C), lambda b: (b, 0, 0)),
            ],
        ),
        compiler_params=pltpu.CompilerParams(dimension_semantics=("parallel",)),
    )(xs)


# ----------------------------- Kernel B ------------------------------------
# SE channel scale (folded into the weights) + 3x3/stride-2 conv with im2col
# fused as 9 shifted matmuls + bias + ReLU.  One batch per grid step.
def _se_conv_kernel(x1_ref, x2_ref, s1_ref, s2_ref, w1_ref, w2_ref, b_ref, o_ref):
    Hp2, Wp2, C = x1_ref.shape[2], x1_ref.shape[3], x1_ref.shape[4]
    Ho, Wo = Hp2 - 1, Wp2 - 1
    L, Cout = o_ref.shape[1], o_ref.shape[2]
    # Fold the per-batch SE scale into the weights: K*Cout VPU ops, not L*K.
    ws1 = w1_ref[...] * s1_ref[0].reshape(1, 1, C, 1)  # (3, 3, C, Cout)
    ws2 = w2_ref[...] * s2_ref[0].reshape(1, 1, C, 1)
    acc = jnp.zeros((L, Cout), jnp.float32)
    for kh in range(3):
        for kw in range(3):
            m = 2 * (kh % 2) + (kw % 2)
            dh, dw = kh // 2, kw // 2
            p1 = x1_ref[0, m, dh:dh + Ho, dw:dw + Wo, :].astype(jnp.float32).reshape(L, C)
            p2 = x2_ref[0, m, dh:dh + Ho, dw:dw + Wo, :].astype(jnp.float32).reshape(L, C)
            acc = acc + jnp.dot(p1, ws1[kh, kw], preferred_element_type=jnp.float32)
            acc = acc + jnp.dot(p2, ws2[kh, kw], preferred_element_type=jnp.float32)
    o_ref[0] = jnp.maximum(acc + b_ref[...], 0.0).astype(o_ref.dtype)


def se_conv(x1s, x2s, s1, s2, w1, w2, bias):
    B, _, Hp2, Wp2, C = x1s.shape
    Ho, Wo = Hp2 - 1, Wp2 - 1
    L = Ho * Wo
    Cout = w1.shape[-1]
    return pl.pallas_call(
        _se_conv_kernel,
        out_shape=jax.ShapeDtypeStruct((B, L, Cout), jnp.float32),
        grid_spec=pltpu.PrefetchScalarGridSpec(
            num_scalar_prefetch=0,
            grid=(B,),
            in_specs=[
                pl.BlockSpec((1, 4, Hp2, Wp2, C), lambda b: (b, 0, 0, 0, 0)),
                pl.BlockSpec((1, 4, Hp2, Wp2, C), lambda b: (b, 0, 0, 0, 0)),
                pl.BlockSpec((1, C, 1), lambda b: (b, 0, 0)),
                pl.BlockSpec((1, C, 1), lambda b: (b, 0, 0)),
                pl.BlockSpec((3, 3, C, Cout), lambda b: (0, 0, 0, 0)),
                pl.BlockSpec((3, 3, C, Cout), lambda b: (0, 0, 0, 0)),
                pl.BlockSpec((1, Cout), lambda b: (0, 0)),
            ],
            out_specs=pl.BlockSpec((1, L, Cout), lambda b: (b, 0, 0)),
        ),
        compiler_params=pltpu.CompilerParams(dimension_semantics=("parallel",)),
    )(x1s, x2s, s1, s2, w1, w2, bias)


# ----------------------------- Forward glue ---------------------------------
def haar_conv_forward(x, params, storage_dtype=jnp.float32):
    """x: (B, C, H, W) float32 NCHW, H and W even. Returns (B, C, H//2, W//2)."""
    B, C, H, W = x.shape
    assert H % 2 == 0 and W % 2 == 0, "Haar J=1 identity needs even H, W"
    Hh, Wh = H // 2, W // 2
    Cout = params["conv_w"].shape[0]

    # Layout plumbing (one pass over x): NCHW -> parity-split, channels-last:
    #   xs[b, 2p+q, i, j, c] = x[b, c, 2i+p, 2j+q]
    xs = jnp.transpose(
        x.astype(jnp.float32).reshape(B, C, Hh, 2, Wh, 2),
        (0, 3, 5, 2, 4, 1)).reshape(B, 4, Hh, Wh, C)

    # Kernel A: relu6 + Haar split (padded stride-2 layout) + per-channel GAP.
    x1s, x2s, g2 = haar_split(xs, storage_dtype)

    # SE squeeze-excite MLP (tiny: (B,2C)@(2C,hid)@(hid,2C)) in plain JAX glue.
    # GAP of the high-frequency half is identically zero for Haar J=1.
    gap = jnp.concatenate([jnp.zeros((B, C), jnp.float32), g2.reshape(B, C)], axis=1)
    h = jnp.maximum(gap @ params["se_w1"].T, 0.0)
    scale = jax.nn.sigmoid(h @ params["se_w2"].T)                   # (B, 2C)
    s1 = scale[:, :C].reshape(B, C, 1)                              # x1 channel scales
    s2 = scale[:, C:].reshape(B, C, 1)                              # x2 channel scales

    # Conv weights -> (kh, kw, cin, cout), split into x1 / x2 input halves.
    wt = jnp.transpose(params["conv_w"].astype(jnp.float32), (2, 3, 1, 0))
    w1, w2 = wt[:, :, :C, :], wt[:, :, C:, :]
    bias = params["conv_b"].astype(jnp.float32).reshape(1, Cout)

    # Kernel B: fused (SE scale) * (3x3 stride-2 conv, im2col fused) + bias + ReLU.
    out = se_conv(x1s, x2s, s1, s2, w1, w2, bias)                   # (B, Ho*Wo, Cout)
    return jnp.transpose(out.reshape(B, Hh, Wh, Cout), (0, 3, 1, 2))  # NCHW


# ----------------------------- Pure-JAX reference ---------------------------
def haar_conv_reference(x, params):
    B, C, H, W = x.shape
    y = jnp.clip(x, 0.0, 6.0)
    avg = y.reshape(B, C, H // 2, 2, W // 2, 2).mean(axis=(3, 5))
    x2 = jnp.repeat(jnp.repeat(avg, 2, axis=2), 2, axis=3)
    x1 = y - x2
    z = jnp.concatenate([x1, x2], axis=1)
    gap = z.mean(axis=(2, 3))
    h = jnp.maximum(gap @ params["se_w1"].T, 0.0)
    scale = jax.nn.sigmoid(h @ params["se_w2"].T)
    z = z * scale[:, :, None, None]
    out = jax.lax.conv_general_dilated(
        z, params["conv_w"], window_strides=(2, 2), padding=((1, 1), (1, 1)),
        dimension_numbers=("NCHW", "OIHW", "NCHW"),
        precision=jax.lax.Precision.HIGHEST)
    return jnp.maximum(out + params["conv_b"][None, :, None, None], 0.0)


if __name__ == "__main__":
    key = jax.random.PRNGKey(0)
    k_x, k_w1, k_w2, k_cw, k_cb = jax.random.split(key, 5)

    # inc=8 so 2*inc=16 and the SE hidden dim (2*inc // 16) is 1 (non-degenerate).
    B, inc, H, W = 2, 8, 16, 16
    C2 = 2 * inc
    hidden = C2 // 16            # reduction_ratio = 16

    params = {
        "se_w1": 0.3 * jax.random.normal(k_w1, (hidden, C2), jnp.float32),
        "se_w2": 0.3 * jax.random.normal(k_w2, (C2, hidden), jnp.float32),
        "conv_w": 0.1 * jax.random.normal(k_cw, (inc, C2, 3, 3), jnp.float32),
        "conv_b": 0.1 * jax.random.normal(k_cb, (inc,), jnp.float32),
    }
    x = 3.0 * jax.random.normal(k_x, (B, inc, H, W), jnp.float32)

    out = jax.jit(haar_conv_forward)(x, params)
    jax.block_until_ready(out)
    assert out.shape == (B, inc, H // 2, W // 2), out.shape

    ref = haar_conv_reference(x, params)
    err = float(jnp.max(jnp.abs(out - ref)))
    assert err < 5e-2, f"kernel/reference mismatch: max abs err = {err}"
    print("KERNEL_OK")
</pallas_src>

<mosaic_0001>
module attributes {stable_mosaic.version = 11 : i64} {
  func.func @_haar_split_kernel(%arg0: i32, %arg1: memref<1x4x8x8x8xf32, #tpu.memory_space<vmem>>, %arg2: memref<1x4x9x9x8xf32, #tpu.memory_space<vmem>>, %arg3: memref<1x4x9x9x8xf32, #tpu.memory_space<vmem>>, %arg4: memref<1x1x8xf32, #tpu.memory_space<vmem>>) attributes {dimension_semantics = [#tpu.dimension_semantics<parallel>], iteration_bounds = array<i64: 2>, scalar_prefetch = 0 : i64, scratch_operands = 0 : i64, tpu.core_type = #tpu.core_type<tc>, window_params = [{transform_indices = @transform_0, window_bounds = array<i64: 1, 4, 8, 8, 8>}, {transform_indices = @transform_1, window_bounds = array<i64: 1, 4, 9, 9, 8>}, {transform_indices = @transform_2, window_bounds = array<i64: 1, 4, 9, 9, 8>}, {transform_indices = @transform_3, window_bounds = array<i64: 1, 1, 8>}]} {
    %c0 = arith.constant 0 : index
    %c0_0 = arith.constant 0 : index
    %c0_1 = arith.constant 0 : index
    %c0_2 = arith.constant 0 : index
    %c0_3 = arith.constant 0 : index
    %0 = vector.load %arg1[%c0, %c0_0, %c0_1, %c0_2, %c0_3] : memref<1x4x8x8x8xf32, #tpu.memory_space<vmem>>, vector<1x1x8x8x8xf32>
    %1 = vector.shape_cast %0 : vector<1x1x8x8x8xf32> to vector<8x8x8xf32>
    %cst = arith.constant 0.000000e+00 : f32
    %cst_4 = arith.constant 6.000000e+00 : f32
    %2 = vector.broadcast %cst : f32 to vector<8x8x8xf32>
    %3 = arith.maximumf %2, %1 : vector<8x8x8xf32>
    %4 = vector.broadcast %cst_4 : f32 to vector<8x8x8xf32>
    %5 = arith.minimumf %4, %3 : vector<8x8x8xf32>
    %c0_5 = arith.constant 0 : index
    %c1 = arith.constant 1 : index
    %c0_6 = arith.constant 0 : index
    %c0_7 = arith.constant 0 : index
    %c0_8 = arith.constant 0 : index
    %6 = vector.load %arg1[%c0_5, %c1, %c0_6, %c0_7, %c0_8] : memref<1x4x8x8x8xf32, #tpu.memory_space<vmem>>, vector<1x1x8x8x8xf32>
    %7 = vector.shape_cast %6 : vector<1x1x8x8x8xf32> to vector<8x8x8xf32>
    %cst_9 = arith.constant 0.000000e+00 : f32
    %cst_10 = arith.constant 6.000000e+00 : f32
    %8 = vector.broadcast %cst_9 : f32 to vector<8x8x8xf32>
    %9 = arith.maximumf %8, %7 : vector<8x8x8xf32>
    %10 = vector.broadcast %cst_10 : f32 to vector<8x8x8xf32>
    %11 = arith.minimumf %10, %9 : vector<8x8x8xf32>
    %c0_11 = arith.constant 0 : index
    %c2 = arith.constant 2 : index
    %c0_12 = arith.constant 0 : index
    %c0_13 = arith.constant 0 : index
    %c0_14 = arith.constant 0 : index
    %12 = vector.load %arg1[%c0_11, %c2, %c0_12, %c0_13, %c0_14] : memref<1x4x8x8x8xf32, #tpu.memory_space<vmem>>, vector<1x1x8x8x8xf32>
    %13 = vector.shape_cast %12 : vector<1x1x8x8x8xf32> to vector<8x8x8xf32>
    %cst_15 = arith.constant 0.000000e+00 : f32
    %cst_16 = arith.constant 6.000000e+00 : f32
    %14 = vector.broadcast %cst_15 : f32 to vector<8x8x8xf32>
    %15 = arith.maximumf %14, %13 : vector<8x8x8xf32>
    %16 = vector.broadcast %cst_16 : f32 to vector<8x8x8xf32>
    %17 = arith.minimumf %16, %15 : vector<8x8x8xf32>
    %c0_17 = arith.constant 0 : index
    %c3 = arith.constant 3 : index
    %c0_18 = arith.constant 0 : index
    %c0_19 = arith.constant 0 : index
    %c0_20 = arith.constant 0 : index
    %18 = vector.load %arg1[%c0_17, %c3, %c0_18, %c0_19, %c0_20] : memref<1x4x8x8x8xf32, #tpu.memory_space<vmem>>, vector<1x1x8x8x8xf32>
    %19 = vector.shape_cast %18 : vector<1x1x8x8x8xf32> to vector<8x8x8xf32>
    %cst_21 = arith.constant 0.000000e+00 : f32
    %cst_22 = arith.constant 6.000000e+00 : f32
    %20 = vector.broadcast %cst_21 : f32 to vector<8x8x8xf32>
    %21 = arith.maximumf %20, %19 : vector<8x8x8xf32>
    %22 = vector.broadcast %cst_22 : f32 to vector<8x8x8xf32>
    %23 = arith.minimumf %22, %21 : vector<8x8x8xf32>
    %24 = arith.addf %5, %11 : vector<8x8x8xf32>
    %25 = arith.addf %17, %23 : vector<8x8x8xf32>
    %26 = arith.addf %24, %25 : vector<8x8x8xf32>
    %cst_23 = arith.constant 2.500000e-01 : f32
    %27 = vector.broadcast %cst_23 : f32 to vector<8x8x8xf32>
    %28 = arith.mulf %27, %26 : vector<8x8x8xf32>
    %cst_24 = arith.constant dense<0.000000e+00> : vector<8x8xf32>
    %29 = vector.multi_reduction <add>, %26, %cst_24 [0] : vector<8x8x8xf32> to vector<8x8xf32>
    %30 = vector.shape_cast %29 : vector<8x8xf32> to vector<1x8x8xf32>
    %cst_25 = arith.constant dense<0.000000e+00> : vector<1x8xf32>
    %31 = vector.multi_reduction <add>, %30, %cst_25 [1] : vector<1x8x8xf32> to vector<1x8xf32>
    %32 = vector.shape_cast %31 : vector<1x8xf32> to vector<1x1x8xf32>
    %cst_26 = arith.constant 3.906250e-03 : f32
    %33 = vector.broadcast %cst_26 : f32 to vector<1x1x8xf32>
    %34 = arith.mulf %32, %33 : vector<1x1x8xf32>
    %c0_27 = arith.constant 0 : index
    %c0_28 = arith.constant 0 : index
    %c0_29 = arith.constant 0 : index
    %35 = vector.load %arg4[%c0_27, %c0_28, %c0_29] : memref<1x1x8xf32, #tpu.memory_space<vmem>>, vector<1x1x8xf32>
    tpu.vector_store %arg4[%c0_27, %c0_28, %c0_29], %34 {strides = array<i32>} : memref<1x1x8xf32, #tpu.memory_space<vmem>>, vector<1x1x8xf32>,
    %cst_30 = arith.constant 0.000000e+00 : f32
    %36 = vector.broadcast %cst_30 : f32 to vector<1x4x9x9x8xf32>
    %c0_31 = arith.constant 0 : index
    %c0_32 = arith.constant 0 : index
    %c0_33 = arith.constant 0 : index
    %c0_34 = arith.constant 0 : index
    %c0_35 = arith.constant 0 : index
    %37 = vector.load %arg2[%c0_31, %c0_32, %c0_33, %c0_34, %c0_35] : memref<1x4x9x9x8xf32, #tpu.memory_space<vmem>>, vector<1x4x9x9x8xf32>
    tpu.vector_store %arg2[%c0_31, %c0_32, %c0_33, %c0_34, %c0_35], %36 {strides = array<i32>} : memref<1x4x9x9x8xf32, #tpu.memory_space<vmem>>, vector<1x4x9x9x8xf32>,
    %cst_36 = arith.constant 0.000000e+00 : f32
    %38 = vector.broadcast %cst_36 : f32 to vector<1x4x9x9x8xf32>
    %c0_37 = arith.constant 0 : index
    %c0_38 = arith.constant 0 : index
    %c0_39 = arith.constant 0 : index
    %c0_40 = arith.constant 0 : index
    %c0_41 = arith.constant 0 : index
    %39 = vector.load %arg3[%c0_37, %c0_38, %c0_39, %c0_40, %c0_41] : memref<1x4x9x9x8xf32, #tpu.memory_space<vmem>>, vector<1x4x9x9x8xf32>
    tpu.vector_store %arg3[%c0_37, %c0_38, %c0_39, %c0_40, %c0_41], %38 {strides = array<i32>} : memref<1x4x9x9x8xf32, #tpu.memory_space<vmem>>, vector<1x4x9x9x8xf32>,
    %40 = arith.subf %5, %28 : vector<8x8x8xf32>
    %c0_42 = arith.constant 0 : index
    %c3_43 = arith.constant 3 : index
    %c0_44 = arith.constant 0 : index
    %c0_45 = arith.constant 0 : index
    %c0_46 = arith.constant 0 : index
    %41 = vector.load %arg2[%c0_42, %c3_43, %c0_44, %c0_45, %c0_46] : memref<1x4x9x9x8xf32, #tpu.memory_space<vmem>>, vector<1x1x8x8x8xf32>
    %42 = vector.shape_cast %41 : vector<1x1x8x8x8xf32> to vector<8x8x8xf32>
    %43 = vector.shape_cast %40 : vector<8x8x8xf32> to vector<1x1x8x8x8xf32>
    tpu.vector_store %arg2[%c0_42, %c3_43, %c0_44, %c0_45, %c0_46], %43 {strides = array<i32>} : memref<1x4x9x9x8xf32, #tpu.memory_space<vmem>>, vector<1x1x8x8x8xf32>,
    %c0_47 = arith.constant 0 : index
    %c3_48 = arith.constant 3 : index
    %c0_49 = arith.constant 0 : index
    %c0_50 = arith.constant 0 : index
    %c0_51 = arith.constant 0 : index
    %44 = vector.load %arg3[%c0_47, %c3_48, %c0_49, %c0_50, %c0_51] : memref<1x4x9x9x8xf32, #tpu.memory_space<vmem>>, vector<1x1x8x8x8xf32>
    %45 = vector.shape_cast %44 : vector<1x1x8x8x8xf32> to vector<8x8x8xf32>
    %46 = vector.shape_cast %28 : vector<8x8x8xf32> to vector<1x1x8x8x8xf32>
    tpu.vector_store %arg3[%c0_47, %c3_48, %c0_49, %c0_50, %c0_51], %46 {strides = array<i32>} : memref<1x4x9x9x8xf32, #tpu.memory_space<vmem>>, vector<1x1x8x8x8xf32>,
    %47 = arith.subf %11, %28 : vector<8x8x8xf32>
    %c0_52 = arith.constant 0 : index
    %c2_53 = arith.constant 2 : index
    %c0_54 = arith.constant 0 : index
    %c1_55 = arith.constant 1 : index
    %c0_56 = arith.constant 0 : index
    %48 = vector.load %arg2[%c0_52, %c2_53, %c0_54, %c1_55, %c0_56] : memref<1x4x9x9x8xf32, #tpu.memory_space<vmem>>, vector<1x1x8x8x8xf32>
    %49 = vector.shape_cast %48 : vector<1x1x8x8x8xf32> to vector<8x8x8xf32>
    %50 = vector.shape_cast %47 : vector<8x8x8xf32> to vector<1x1x8x8x8xf32>
    tpu.vector_store %arg2[%c0_52, %c2_53, %c0_54, %c1_55, %c0_56], %50 {strides = array<i32>} : memref<1x4x9x9x8xf32, #tpu.memory_space<vmem>>, vector<1x1x8x8x8xf32>,
    %c0_57 = arith.constant 0 : index
    %c2_58 = arith.constant 2 : index
    %c0_59 = arith.constant 0 : index
    %c1_60 = arith.constant 1 : index
    %c0_61 = arith.constant 0 : index
    %51 = vector.load %arg3[%c0_57, %c2_58, %c0_59, %c1_60, %c0_61] : memref<1x4x9x9x8xf32, #tpu.memory_space<vmem>>, vector<1x1x8x8x8xf32>
    %52 = vector.shape_cast %51 : vector<1x1x8x8x8xf32> to vector<8x8x8xf32>
    %53 = vector.shape_cast %28 : vector<8x8x8xf32> to vector<1x1x8x8x8xf32>
    tpu.vector_store %arg3[%c0_57, %c2_58, %c0_59, %c1_60, %c0_61], %53 {strides = array<i32>} : memref<1x4x9x9x8xf32, #tpu.memory_space<vmem>>, vector<1x1x8x8x8xf32>,
    %54 = arith.subf %17, %28 : vector<8x8x8xf32>
    %c0_62 = arith.constant 0 : index
    %c1_63 = arith.constant 1 : index
    %c1_64 = arith.constant 1 : index
    %c0_65 = arith.constant 0 : index
    %c0_66 = arith.constant 0 : index
    %55 = vector.load %arg2[%c0_62, %c1_63, %c1_64, %c0_65, %c0_66] : memref<1x4x9x9x8xf32, #tpu.memory_space<vmem>>, vector<1x1x8x8x8xf32>
    %56 = vector.shape_cast %55 : vector<1x1x8x8x8xf32> to vector<8x8x8xf32>
    %57 = vector.shape_cast %54 : vector<8x8x8xf32> to vector<1x1x8x8x8xf32>
    tpu.vector_store %arg2[%c0_62, %c1_63, %c1_64, %c0_65, %c0_66], %57 {strides = array<i32>} : memref<1x4x9x9x8xf32, #tpu.memory_space<vmem>>, vector<1x1x8x8x8xf32>,
    %c0_67 = arith.constant 0 : index
    %c1_68 = arith.constant 1 : index
    %c1_69 = arith.constant 1 : index
    %c0_70 = arith.constant 0 : index
    %c0_71 = arith.constant 0 : index
    %58 = vector.load %arg3[%c0_67, %c1_68, %c1_69, %c0_70, %c0_71] : memref<1x4x9x9x8xf32, #tpu.memory_space<vmem>>, vector<1x1x8x8x8xf32>
    %59 = vector.shape_cast %58 : vector<1x1x8x8x8xf32> to vector<8x8x8xf32>
    %60 = vector.shape_cast %28 : vector<8x8x8xf32> to vector<1x1x8x8x8xf32>
    tpu.vector_store %arg3[%c0_67, %c1_68, %c1_69, %c0_70, %c0_71], %60 {strides = array<i32>} : memref<1x4x9x9x8xf32, #tpu.memory_space<vmem>>, vector<1x1x8x8x8xf32>,
    %61 = arith.subf %23, %28 : vector<8x8x8xf32>
    %c0_72 = arith.constant 0 : index
    %c0_73 = arith.constant 0 : index
    %c1_74 = arith.constant 1 : index
    %c1_75 = arith.constant 1 : index
    %c0_76 = arith.constant 0 : index
    %62 = vector.load %arg2[%c0_72, %c0_73, %c1_74, %c1_75, %c0_76] : memref<1x4x9x9x8xf32, #tpu.memory_space<vmem>>, vector<1x1x8x8x8xf32>
    %63 = vector.shape_cast %62 : vector<1x1x8x8x8xf32> to vector<8x8x8xf32>
    %64 = vector.shape_cast %61 : vector<8x8x8xf32> to vector<1x1x8x8x8xf32>
    tpu.vector_store %arg2[%c0_72, %c0_73, %c1_74, %c1_75, %c0_76], %64 {strides = array<i32>} : memref<1x4x9x9x8xf32, #tpu.memory_space<vmem>>, vector<1x1x8x8x8xf32>,
    %c0_77 = arith.constant 0 : index
    %c0_78 = arith.constant 0 : index
    %c1_79 = arith.constant 1 : index
    %c1_80 = arith.constant 1 : index
    %c0_81 = arith.constant 0 : index
    %65 = vector.load %arg3[%c0_77, %c0_78, %c1_79, %c1_80, %c0_81] : memref<1x4x9x9x8xf32, #tpu.memory_space<vmem>>, vector<1x1x8x8x8xf32>
    %66 = vector.shape_cast %65 : vector<1x1x8x8x8xf32> to vector<8x8x8xf32>
    %67 = vector.shape_cast %28 : vector<8x8x8xf32> to vector<1x1x8x8x8xf32>
    tpu.vector_store %arg3[%c0_77, %c0_78, %c1_79, %c1_80, %c0_81], %67 {strides = array<i32>} : memref<1x4x9x9x8xf32, #tpu.memory_space<vmem>>, vector<1x1x8x8x8xf32>,
    return
  }
  func.func @transform_0(%arg0: i32) -> (i32, i32, i32, i32, i32) {
    %c0_i32 = arith.constant 0 : i32
    %c0_i32_0 = arith.constant 0 : i32
    %c0_i32_1 = arith.constant 0 : i32
    %c0_i32_2 = arith.constant 0 : i32
    %c0_i32_3 = arith.constant 0 : i32
    return %arg0, %c0_i32, %c0_i32_0, %c0_i32_1, %c0_i32_2 : i32, i32, i32, i32, i32
  }
  func.func @transform_1(%arg0: i32) -> (i32, i32, i32, i32, i32) {
    %c0_i32 = arith.constant 0 : i32
    %c0_i32_0 = arith.constant 0 : i32
    %c0_i32_1 = arith.constant 0 : i32
    %c0_i32_2 = arith.constant 0 : i32
    %c0_i32_3 = arith.constant 0 : i32
    return %arg0, %c0_i32, %c0_i32_0, %c0_i32_1, %c0_i32_2 : i32, i32, i32, i32, i32
  }
  func.func @transform_2(%arg0: i32) -> (i32, i32, i32, i32, i32) {
    %c0_i32 = arith.constant 0 : i32
    %c0_i32_0 = arith.constant 0 : i32
    %c0_i32_1 = arith.constant 0 : i32
    %c0_i32_2 = arith.constant 0 : i32
    %c0_i32_3 = arith.constant 0 : i32
    return %arg0, %c0_i32, %c0_i32_0, %c0_i32_1, %c0_i32_2 : i32, i32, i32, i32, i32
  }
  func.func @transform_3(%arg0: i32) -> (i32, i32, i32) {
    %c0_i32 = arith.constant 0 : i32
    %c0_i32_0 = arith.constant 0 : i32
    %c0_i32_1 = arith.constant 0 : i32
    return %arg0, %c0_i32, %c0_i32_0 : i32, i32, i32
  }
}

module attributes {stable_mosaic.version = 11 : i64} {
  func.func @_se_conv_kernel(%arg0: i32, %arg1: memref<1x4x9x9x8xf32, #tpu.memory_space<vmem>>, %arg2: memref<1x4x9x9x8xf32, #tpu.memory_space<vmem>>, %arg3: memref<1x8x1xf32, #tpu.memory_space<vmem>>, %arg4: memref<1x8x1xf32, #tpu.memory_space<vmem>>, %arg5: memref<3x3x8x8xf32, #tpu.memory_space<vmem>>, %arg6: memref<3x3x8x8xf32, #tpu.memory_space<vmem>>, %arg7: memref<1x8xf32, #tpu.memory_space<vmem>>, %arg8: memref<1x64x8xf32, #tpu.memory_space<vmem>>) attributes {dimension_semantics = [#tpu.dimension_semantics<parallel>], iteration_bounds = array<i64: 2>, scalar_prefetch = 0 : i64, scratch_operands = 0 : i64, tpu.core_type = #tpu.core_type<tc>, window_params = [{transform_indices = @transform_0, window_bounds = array<i64: 1, 4, 9, 9, 8>}, {transform_indices = @transform_1, window_bounds = array<i64: 1, 4, 9, 9, 8>}, {transform_indices = @transform_2, window_bounds = array<i64: 1, 8, 1>}, {transform_indices = @transform_3, window_bounds = array<i64: 1, 8, 1>}, {pipeline_mode = #tpu.pipeline_mode<synchronous>, transform_indices = @transform_4, window_bounds = array<i64: 3, 3, 8, 8>}, {pipeline_mode = #tpu.pipeline_mode<synchronous>, transform_indices = @transform_5, window_bounds = array<i64: 3, 3, 8, 8>}, {pipeline_mode = #tpu.pipeline_mode<synchronous>, transform_indices = @transform_6, window_bounds = array<i64: 1, 8>}, {transform_indices = @transform_7, window_bounds = array<i64: 1, 64, 8>}]} {
    %c0 = arith.constant 0 : index
    %c0_0 = arith.constant 0 : index
    %c0_1 = arith.constant 0 : index
    %c0_2 = arith.constant 0 : index
    %0 = vector.load %arg5[%c0, %c0_0, %c0_1, %c0_2] : memref<3x3x8x8xf32, #tpu.memory_space<vmem>>, vector<3x3x8x8xf32>
    %c0_3 = arith.constant 0 : index
    %c0_4 = arith.constant 0 : index
    %c0_5 = arith.constant 0 : index
    %1 = vector.load %arg3[%c0_3, %c0_4, %c0_5] : memref<1x8x1xf32, #tpu.memory_space<vmem>>, vector<1x8x1xf32>
    %2 = vector.shape_cast %1 : vector<1x8x1xf32> to vector<8x1xf32>
    %3 = vector.shape_cast %2 : vector<8x1xf32> to vector<1x1x8x1xf32>
    %4 = vector.broadcast %3 : vector<1x1x8x1xf32> to vector<3x3x8x8xf32>
    %5 = arith.mulf %0, %4 : vector<3x3x8x8xf32>
    %c0_6 = arith.constant 0 : index
    %c0_7 = arith.constant 0 : index
    %c0_8 = arith.constant 0 : index
    %c0_9 = arith.constant 0 : index
    %6 = vector.load %arg6[%c0_6, %c0_7, %c0_8, %c0_9] : memref<3x3x8x8xf32, #tpu.memory_space<vmem>>, vector<3x3x8x8xf32>
    %c0_10 = arith.constant 0 : index
    %c0_11 = arith.constant 0 : index
    %c0_12 = arith.constant 0 : index
    %7 = vector.load %arg4[%c0_10, %c0_11, %c0_12] : memref<1x8x1xf32, #tpu.memory_space<vmem>>, vector<1x8x1xf32>
    %8 = vector.shape_cast %7 : vector<1x8x1xf32> to vector<8x1xf32>
    %9 = vector.shape_cast %8 : vector<8x1xf32> to vector<1x1x8x1xf32>
    %10 = vector.broadcast %9 : vector<1x1x8x1xf32> to vector<3x3x8x8xf32>
    %11 = arith.mulf %6, %10 : vector<3x3x8x8xf32>
    %cst = arith.constant 0.000000e+00 : f32
    %12 = vector.broadcast %cst : f32 to vector<64x8xf32>
    %c0_13 = arith.constant 0 : index
    %c0_14 = arith.constant 0 : index
    %c0_15 = arith.constant 0 : index
    %c0_16 = arith.constant 0 : index
    %c0_17 = arith.constant 0 : index
    %13 = vector.load %arg1[%c0_13, %c0_14, %c0_15, %c0_16, %c0_17] : memref<1x4x9x9x8xf32, #tpu.memory_space<vmem>>, vector<1x1x8x8x8xf32>
    %14 = vector.shape_cast %13 : vector<1x1x8x8x8xf32> to vector<8x8x8xf32>
    %15 = vector.shape_cast %14 : vector<8x8x8xf32> to vector<64x8xf32>
    %c0_18 = arith.constant 0 : index
    %c0_19 = arith.constant 0 : index
    %c0_20 = arith.constant 0 : index
    %c0_21 = arith.constant 0 : index
    %c0_22 = arith.constant 0 : index
    %16 = vector.load %arg2[%c0_18, %c0_19, %c0_20, %c0_21, %c0_22] : memref<1x4x9x9x8xf32, #tpu.memory_space<vmem>>, vector<1x1x8x8x8xf32>
    %17 = vector.shape_cast %16 : vector<1x1x8x8x8xf32> to vector<8x8x8xf32>
    %18 = vector.shape_cast %17 : vector<8x8x8xf32> to vector<64x8xf32>
    %19 = vector.extract_strided_slice %5 {offsets = [0, 0, 0, 0], sizes = [1, 1, 8, 8], strides = [1, 1, 1, 1]} : vector<3x3x8x8xf32> to vector<1x1x8x8xf32>
    %20 = vector.shape_cast %19 : vector<1x1x8x8xf32> to vector<8x8xf32>
    %cst_23 = arith.constant dense<0.000000e+00> : vector<64x8xf32>
    %21 = tpu.matmul %15, %20, %cst_23 {dimension_numbers = #tpu.dot_dimension_numbers<[1], [0], [0], [1], [0, 0, 1, 1], [], []>} : vector<64x8xf32>, vector<8x8xf32>, vector<64x8xf32> -> vector<64x8xf32>
    %22 = arith.addf %12, %21 : vector<64x8xf32>
    %23 = vector.extract_strided_slice %11 {offsets = [0, 0, 0, 0], sizes = [1, 1, 8, 8], strides = [1, 1, 1, 1]} : vector<3x3x8x8xf32> to vector<1x1x8x8xf32>
    %24 = vector.shape_cast %23 : vector<1x1x8x8xf32> to vector<8x8xf32>
    %cst_24 = arith.constant dense<0.000000e+00> : vector<64x8xf32>
    %25 = tpu.matmul %18, %24, %cst_24 {dimension_numbers = #tpu.dot_dimension_numbers<[1], [0], [0], [1], [0, 0, 1, 1], [], []>} : vector<64x8xf32>, vector<8x8xf32>, vector<64x8xf32> -> vector<64x8xf32>
    %26 = arith.addf %22, %25 : vector<64x8xf32>
    %c0_25 = arith.constant 0 : index
    %c1 = arith.constant 1 : index
    %c0_26 = arith.constant 0 : index
    %c0_27 = arith.constant 0 : index
    %c0_28 = arith.constant 0 : index
    %27 = vector.load %arg1[%c0_25, %c1, %c0_26, %c0_27, %c0_28] : memref<1x4x9x9x8xf32, #tpu.memory_space<vmem>>, vector<1x1x8x8x8xf32>
    %28 = vector.shape_cast %27 : vector<1x1x8x8x8xf32> to vector<8x8x8xf32>
    %29 = vector.shape_cast %28 : vector<8x8x8xf32> to vector<64x8xf32>
    %c0_29 = arith.constant 0 : index
    %c1_30 = arith.constant 1 : index
    %c0_31 = arith.constant 0 : index
    %c0_32 = arith.constant 0 : index
    %c0_33 = arith.constant 0 : index
    %30 = vector.load %arg2[%c0_29, %c1_30, %c0_31, %c0_32, %c0_33] : memref<1x4x9x9x8xf32, #tpu.memory_space<vmem>>, vector<1x1x8x8x8xf32>
    %31 = vector.shape_cast %30 : vector<1x1x8x8x8xf32> to vector<8x8x8xf32>
    %32 = vector.shape_cast %31 : vector<8x8x8xf32> to vector<64x8xf32>
    %33 = vector.extract_strided_slice %5 {offsets = [0, 1, 0, 0], sizes = [1, 1, 8, 8], strides = [1, 1, 1, 1]} : vector<3x3x8x8xf32> to vector<1x1x8x8xf32>
    %34 = vector.shape_cast %33 : vector<1x1x8x8xf32> to vector<8x8xf32>
    %cst_34 = arith.constant dense<0.000000e+00> : vector<64x8xf32>
    %35 = tpu.matmul %29, %34, %cst_34 {dimension_numbers = #tpu.dot_dimension_numbers<[1], [0], [0], [1], [0, 0, 1, 1], [], []>} : vector<64x8xf32>, vector<8x8xf32>, vector<64x8xf32> -> vector<64x8xf32>
    %36 = arith.addf %26, %35 : vector<64x8xf32>
    %37 = vector.extract_strided_slice %11 {offsets = [0, 1, 0, 0], sizes = [1, 1, 8, 8], strides = [1, 1, 1, 1]} : vector<3x3x8x8xf32> to vector<1x1x8x8xf32>
    %38 = vector.shape_cast %37 : vector<1x1x8x8xf32> to vector<8x8xf32>
    %cst_35 = arith.constant dense<0.000000e+00> : vector<64x8xf32>
    %39 = tpu.matmul %32, %38, %cst_35 {dimension_numbers = #tpu.dot_dimension_numbers<[1], [0], [0], [1], [0, 0, 1, 1], [], []>} : vector<64x8xf32>, vector<8x8xf32>, vector<64x8xf32> -> vector<64x8xf32>
    %40 = arith.addf %36, %39 : vector<64x8xf32>
    %c0_36 = arith.constant 0 : index
    %c0_37 = arith.constant 0 : index
    %c0_38 = arith.constant 0 : index
    %c1_39 = arith.constant 1 : index
    %c0_40 = arith.constant 0 : index
    %41 = vector.load %arg1[%c0_36, %c0_37, %c0_38, %c1_39, %c0_40] : memref<1x4x9x9x8xf32, #tpu.memory_space<vmem>>, vector<1x1x8x8x8xf32>
    %42 = vector.shape_cast %41 : vector<1x1x8x8x8xf32> to vector<8x8x8xf32>
    %43 = vector.shape_cast %42 : vector<8x8x8xf32> to vector<64x8xf32>
    %c0_41 = arith.constant 0 : index
    %c0_42 = arith.constant 0 : index
    %c0_43 = arith.constant 0 : index
    %c1_44 = arith.constant 1 : index
    %c0_45 = arith.constant 0 : index
    %44 = vector.load %arg2[%c0_41, %c0_42, %c0_43, %c1_44, %c0_45] : memref<1x4x9x9x8xf32, #tpu.memory_space<vmem>>, vector<1x1x8x8x8xf32>
    %45 = vector.shape_cast %44 : vector<1x1x8x8x8xf32> to vector<8x8x8xf32>
    %46 = vector.shape_cast %45 : vector<8x8x8xf32> to vector<64x8xf32>
    %47 = vector.extract_strided_slice %5 {offsets = [0, 2, 0, 0], sizes = [1, 1, 8, 8], strides = [1, 1, 1, 1]} : vector<3x3x8x8xf32> to vector<1x1x8x8xf32>
    %48 = vector.shape_cast %47 : vector<1x1x8x8xf32> to vector<8x8xf32>
    %cst_46 = arith.constant dense<0.000000e+00> : vector<64x8xf32>
    %49 = tpu.matmul %43, %48, %cst_46 {dimension_numbers = #tpu.dot_dimension_numbers<[1], [0], [0], [1], [0, 0, 1, 1], [], []>} : vector<64x8xf32>, vector<8x8xf32>, vector<64x8xf32> -> vector<64x8xf32>
    %50 = arith.addf %40, %49 : vector<64x8xf32>
    %51 = vector.extract_strided_slice %11 {offsets = [0, 2, 0, 0], sizes = [1, 1, 8, 8], strides = [1, 1, 1, 1]} : vector<3x3x8x8xf32> to vector<1x1x8x8xf32>
    %52 = vector.shape_cast %51 : vector<1x1x8x8xf32> to vector<8x8xf32>
    %cst_47 = arith.constant dense<0.000000e+00> : vector<64x8xf32>
    %53 = tpu.matmul %46, %52, %cst_47 {dimension_numbers = #tpu.dot_dimension_numbers<[1], [0], [0], [1], [0, 0, 1, 1], [], []>} : vector<64x8xf32>, vector<8x8xf32>, vector<64x8xf32> -> vector<64x8xf32>
    %54 = arith.addf %50, %53 : vector<64x8xf32>
    %c0_48 = arith.constant 0 : index
    %c2 = arith.constant 2 : index
    %c0_49 = arith.constant 0 : index
    %c0_50 = arith.constant 0 : index
    %c0_51 = arith.constant 0 : index
    %55 = vector.load %arg1[%c0_48, %c2, %c0_49, %c0_50, %c0_51] : memref<1x4x9x9x8xf32, #tpu.memory_space<vmem>>, vector<1x1x8x8x8xf32>
    %56 = vector.shape_cast %55 : vector<1x1x8x8x8xf32> to vector<8x8x8xf32>
    %57 = vector.shape_cast %56 : vector<8x8x8xf32> to vector<64x8xf32>
    %c0_52 = arith.constant 0 : index
    %c2_53 = arith.constant 2 : index
    %c0_54 = arith.constant 0 : index
    %c0_55 = arith.constant 0 : index
    %c0_56 = arith.constant 0 : index
    %58 = vector.load %arg2[%c0_52, %c2_53, %c0_54, %c0_55, %c0_56] : memref<1x4x9x9x8xf32, #tpu.memory_space<vmem>>, vector<1x1x8x8x8xf32>
    %59 = vector.shape_cast %58 : vector<1x1x8x8x8xf32> to vector<8x8x8xf32>
    %60 = vector.shape_cast %59 : vector<8x8x8xf32> to vector<64x8xf32>
    %61 = vector.extract_strided_slice %5 {offsets = [1, 0, 0, 0], sizes = [1, 1, 8, 8], strides = [1, 1, 1, 1]} : vector<3x3x8x8xf32> to vector<1x1x8x8xf32>
    %62 = vector.shape_cast %61 : vector<1x1x8x8xf32> to vector<8x8xf32>
    %cst_57 = arith.constant dense<0.000000e+00> : vector<64x8xf32>
    %63 = tpu.matmul %57, %62, %cst_57 {dimension_numbers = #tpu.dot_dimension_numbers<[1], [0], [0], [1], [0, 0, 1, 1], [], []>} : vector<64x8xf32>, vector<8x8xf32>, vector<64x8xf32> -> vector<64x8xf32>
    %64 = arith.addf %54, %63 : vector<64x8xf32>
    %65 = vector.extract_strided_slice %11 {offsets = [1, 0, 0, 0], sizes = [1, 1, 8, 8], strides = [1, 1, 1, 1]} : vector<3x3x8x8xf32> to vector<1x1x8x8xf32>
    %66 = vector.shape_cast %65 : vector<1x1x8x8xf32> to vector<8x8xf32>
    %cst_58 = arith.constant dense<0.000000e+00> : vector<64x8xf32>
    %67 = tpu.matmul %60, %66, %cst_58 {dimension_numbers = #tpu.dot_dimension_numbers<[1], [0], [0], [1], [0, 0, 1, 1], [], []>} : vector<64x8xf32>, vector<8x8xf32>, vector<64x8xf32> -> vector<64x8xf32>
    %68 = arith.addf %64, %67 : vector<64x8xf32>
    %c0_59 = arith.constant 0 : index
    %c3 = arith.constant 3 : index
    %c0_60 = arith.constant 0 : index
    %c0_61 = arith.constant 0 : index
    %c0_62 = arith.constant 0 : index
    %69 = vector.load %arg1[%c0_59, %c3, %c0_60, %c0_61, %c0_62] : memref<1x4x9x9x8xf32, #tpu.memory_space<vmem>>, vector<1x1x8x8x8xf32>
    %70 = vector.shape_cast %69 : vector<1x1x8x8x8xf32> to vector<8x8x8xf32>
    %71 = vector.shape_cast %70 : vector<8x8x8xf32> to vector<64x8xf32>
    %c0_63 = arith.constant 0 : index
    %c3_64 = arith.constant 3 : index
    %c0_65 = arith.constant 0 : index
    %c0_66 = arith.constant 0 : index
    %c0_67 = arith.constant 0 : index
    %72 = vector.load %arg2[%c0_63, %c3_64, %c0_65, %c0_66, %c0_67] : memref<1x4x9x9x8xf32, #tpu.memory_space<vmem>>, vector<1x1x8x8x8xf32>
    %73 = vector.shape_cast %72 : vector<1x1x8x8x8xf32> to vector<8x8x8xf32>
    %74 = vector.shape_cast %73 : vector<8x8x8xf32> to vector<64x8xf32>
    %75 = vector.extract_strided_slice %5 {offsets = [1, 1, 0, 0], sizes = [1, 1, 8, 8], strides = [1, 1, 1, 1]} : vector<3x3x8x8xf32> to vector<1x1x8x8xf32>
    %76 = vector.shape_cast %75 : vector<1x1x8x8xf32> to vector<8x8xf32>
    %cst_68 = arith.constant dense<0.000000e+00> : vector<64x8xf32>
    %77 = tpu.matmul %71, %76, %cst_68 {dimension_numbers = #tpu.dot_dimension_numbers<[1], [0], [0], [1], [0, 0, 1, 1], [], []>} : vector<64x8xf32>, vector<8x8xf32>, vector<64x8xf32> -> vector<64x8xf32>
    %78 = arith.addf %68, %77 : vector<64x8xf32>
    %79 = vector.extract_strided_slice %11 {offsets = [1, 1, 0, 0], sizes = [1, 1, 8, 8], strides = [1, 1, 1, 1]} : vector<3x3x8x8xf32> to vector<1x1x8x8xf32>
    %80 = vector.shape_cast %79 : vector<1x1x8x8xf32> to vector<8x8xf32>
    %cst_69 = arith.constant dense<0.000000e+00> : vector<64x8xf32>
    %81 = tpu.matmul %74, %80, %cst_69 {dimension_numbers = #tpu.dot_dimension_numbers<[1], [0], [0], [1], [0, 0, 1, 1], [], []>} : vector<64x8xf32>, vector<8x8xf32>, vector<64x8xf32> -> vector<64x8xf32>
    %82 = arith.addf %78, %81 : vector<64x8xf32>
    %c0_70 = arith.constant 0 : index
    %c2_71 = arith.constant 2 : index
    %c0_72 = arith.constant 0 : index
    %c1_73 = arith.constant 1 : index
    %c0_74 = arith.constant 0 : index
    %83 = vector.load %arg1[%c0_70, %c2_71, %c0_72, %c1_73, %c0_74] : memref<1x4x9x9x8xf32, #tpu.memory_space<vmem>>, vector<1x1x8x8x8xf32>
    %84 = vector.shape_cast %83 : vector<1x1x8x8x8xf32> to vector<8x8x8xf32>
    %85 = vector.shape_cast %84 : vector<8x8x8xf32> to vector<64x8xf32>
    %c0_75 = arith.constant 0 : index
    %c2_76 = arith.constant 2 : index
    %c0_77 = arith.constant 0 : index
    %c1_78 = arith.constant 1 : index
    %c0_79 = arith.constant 0 : index
    %86 = vector.load %arg2[%c0_75, %c2_76, %c0_77, %c1_78, %c0_79] : memref<1x4x9x9x8xf32, #tpu.memory_space<vmem>>, vector<1x1x8x8x8xf32>
    %87 = vector.shape_cast %86 : vector<1x1x8x8x8xf32> to vector<8x8x8xf32>
    %88 = vector.shape_cast %87 : vector<8x8x8xf32> to vector<64x8xf32>
    %89 = vector.extract_strided_slice %5 {offsets = [1, 2, 0, 0], sizes = [1, 1, 8, 8], strides = [1, 1, 1, 1]} : vector<3x3x8x8xf32> to vector<1x1x8x8xf32>
    %90 = vector.shape_cast %89 : vector<1x1x8x8xf32> to vector<8x8xf32>
    %cst_80 = arith.constant dense<0.000000e+00> : vector<64x8xf32>
    %91 = tpu.matmul %85, %90, %cst_80 {dimension_numbers = #tpu.dot_dimension_numbers<[1], [0], [0], [1], [0, 0, 1, 1], [], []>} : vector<64x8xf32>, vector<8x8xf32>, vector<64x8xf32> -> vector<64x8xf32>
    %92 = arith.addf %82, %91 : vector<64x8xf32>
    %93 = vector.extract_strided_slice %11 {offsets = [1, 2, 0, 0], sizes = [1, 1, 8, 8], strides = [1, 1, 1, 1]} : vector<3x3x8x8xf32> to vector<1x1x8x8xf32>
    %94 = vector.shape_cast %93 : vector<1x1x8x8xf32> to vector<8x8xf32>
    %cst_81 = arith.constant dense<0.000000e+00> : vector<64x8xf32>
    %95 = tpu.matmul %88, %94, %cst_81 {dimension_numbers = #tpu.dot_dimension_numbers<[1], [0], [0], [1], [0, 0, 1, 1], [], []>} : vector<64x8xf32>, vector<8x8xf32>, vector<64x8xf32> -> vector<64x8xf32>
    %96 = arith.addf %92, %95 : vector<64x8xf32>
    %c0_82 = arith.constant 0 : index
    %c0_83 = arith.constant 0 : index
    %c1_84 = arith.constant 1 : index
    %c0_85 = arith.constant 0 : index
    %c0_86 = arith.constant 0 : index
    %97 = vector.load %arg1[%c0_82, %c0_83, %c1_84, %c0_85, %c0_86] : memref<1x4x9x9x8xf32, #tpu.memory_space<vmem>>, vector<1x1x8x8x8xf32>
    %98 = vector.shape_cast %97 : vector<1x1x8x8x8xf32> to vector<8x8x8xf32>
    %99 = vector.shape_cast %98 : vector<8x8x8xf32> to vector<64x8xf32>
    %c0_87 = arith.constant 0 : index
    %c0_88 = arith.constant 0 : index
    %c1_89 = arith.constant 1 : index
    %c0_90 = arith.constant 0 : index
    %c0_91 = arith.constant 0 : index
    %100 = vector.load %arg2[%c0_87, %c0_88, %c1_89, %c0_90, %c0_91] : memref<1x4x9x9x8xf32, #tpu.memory_space<vmem>>, vector<1x1x8x8x8xf32>
    %101 = vector.shape_cast %100 : vector<1x1x8x8x8xf32> to vector<8x8x8xf32>
    %102 = vector.shape_cast %101 : vector<8x8x8xf32> to vector<64x8xf32>
    %103 = vector.extract_strided_slice %5 {offsets = [2, 0, 0, 0], sizes = [1, 1, 8, 8], strides = [1, 1, 1, 1]} : vector<3x3x8x8xf32> to vector<1x1x8x8xf32>
    %104 = vector.shape_cast %103 : vector<1x1x8x8xf32> to vector<8x8xf32>
    %cst_92 = arith.constant dense<0.000000e+00> : vector<64x8xf32>
    %105 = tpu.matmul %99, %104, %cst_92 {dimension_numbers = #tpu.dot_dimension_numbers<[1], [0], [0], [1], [0, 0, 1, 1], [], []>} : vector<64x8xf32>, vector<8x8xf32>, vector<64x8xf32> -> vector<64x8xf32>
    %106 = arith.addf %96, %105 : vector<64x8xf32>
    %107 = vector.extract_strided_slice %11 {offsets = [2, 0, 0, 0], sizes = [1, 1, 8, 8], strides = [1, 1, 1, 1]} : vector<3x3x8x8xf32> to vector<1x1x8x8xf32>
    %108 = vector.shape_cast %107 : vector<1x1x8x8xf32> to vector<8x8xf32>
    %cst_93 = arith.constant dense<0.000000e+00> : vector<64x8xf32>
    %109 = tpu.matmul %102, %108, %cst_93 {dimension_numbers = #tpu.dot_dimension_numbers<[1], [0], [0], [1], [0, 0, 1, 1], [], []>} : vector<64x8xf32>, vector<8x8xf32>, vector<64x8xf32> -> vector<64x8xf32>
    %110 = arith.addf %106, %109 : vector<64x8xf32>
    %c0_94 = arith.constant 0 : index
    %c1_95 = arith.constant 1 : index
    %c1_96 = arith.constant 1 : index
    %c0_97 = arith.constant 0 : index
    %c0_98 = arith.constant 0 : index
    %111 = vector.load %arg1[%c0_94, %c1_95, %c1_96, %c0_97, %c0_98] : memref<1x4x9x9x8xf32, #tpu.memory_space<vmem>>, vector<1x1x8x8x8xf32>
    %112 = vector.shape_cast %111 : vector<1x1x8x8x8xf32> to vector<8x8x8xf32>
    %113 = vector.shape_cast %112 : vector<8x8x8xf32> to vector<64x8xf32>
    %c0_99 = arith.constant 0 : index
    %c1_100 = arith.constant 1 : index
    %c1_101 = arith.constant 1 : index
    %c0_102 = arith.constant 0 : index
    %c0_103 = arith.constant 0 : index
    %114 = vector.load %arg2[%c0_99, %c1_100, %c1_101, %c0_102, %c0_103] : memref<1x4x9x9x8xf32, #tpu.memory_space<vmem>>, vector<1x1x8x8x8xf32>
    %115 = vector.shape_cast %114 : vector<1x1x8x8x8xf32> to vector<8x8x8xf32>
    %116 = vector.shape_cast %115 : vector<8x8x8xf32> to vector<64x8xf32>
    %117 = vector.extract_strided_slice %5 {offsets = [2, 1, 0, 0], sizes = [1, 1, 8, 8], strides = [1, 1, 1, 1]} : vector<3x3x8x8xf32> to vector<1x1x8x8xf32>
    %118 = vector.shape_cast %117 : vector<1x1x8x8xf32> to vector<8x8xf32>
    %cst_104 = arith.constant dense<0.000000e+00> : vector<64x8xf32>
    %119 = tpu.matmul %113, %118, %cst_104 {dimension_numbers = #tpu.dot_dimension_numbers<[1], [0], [0], [1], [0, 0, 1, 1], [], []>} : vector<64x8xf32>, vector<8x8xf32>, vector<64x8xf32> -> vector<64x8xf32>
    %120 = arith.addf %110, %119 : vector<64x8xf32>
    %121 = vector.extract_strided_slice %11 {offsets = [2, 1, 0, 0], sizes = [1, 1, 8, 8], strides = [1, 1, 1, 1]} : vector<3x3x8x8xf32> to vector<1x1x8x8xf32>
    %122 = vector.shape_cast %121 : vector<1x1x8x8xf32> to vector<8x8xf32>
    %cst_105 = arith.constant dense<0.000000e+00> : vector<64x8xf32>
    %123 = tpu.matmul %116, %122, %cst_105 {dimension_numbers = #tpu.dot_dimension_numbers<[1], [0], [0], [1], [0, 0, 1, 1], [], []>} : vector<64x8xf32>, vector<8x8xf32>, vector<64x8xf32> -> vector<64x8xf32>
    %124 = arith.addf %120, %123 : vector<64x8xf32>
    %c0_106 = arith.constant 0 : index
    %c0_107 = arith.constant 0 : index
    %c1_108 = arith.constant 1 : index
    %c1_109 = arith.constant 1 : index
    %c0_110 = arith.constant 0 : index
    %125 = vector.load %arg1[%c0_106, %c0_107, %c1_108, %c1_109, %c0_110] : memref<1x4x9x9x8xf32, #tpu.memory_space<vmem>>, vector<1x1x8x8x8xf32>
    %126 = vector.shape_cast %125 : vector<1x1x8x8x8xf32> to vector<8x8x8xf32>
    %127 = vector.shape_cast %126 : vector<8x8x8xf32> to vector<64x8xf32>
    %c0_111 = arith.constant 0 : index
    %c0_112 = arith.constant 0 : index
    %c1_113 = arith.constant 1 : index
    %c1_114 = arith.constant 1 : index
    %c0_115 = arith.constant 0 : index
    %128 = vector.load %arg2[%c0_111, %c0_112, %c1_113, %c1_114, %c0_115] : memref<1x4x9x9x8xf32, #tpu.memory_space<vmem>>, vector<1x1x8x8x8xf32>
    %129 = vector.shape_cast %128 : vector<1x1x8x8x8xf32> to vector<8x8x8xf32>
    %130 = vector.shape_cast %129 : vector<8x8x8xf32> to vector<64x8xf32>
    %131 = vector.extract_strided_slice %5 {offsets = [2, 2, 0, 0], sizes = [1, 1, 8, 8], strides = [1, 1, 1, 1]} : vector<3x3x8x8xf32> to vector<1x1x8x8xf32>
    %132 = vector.shape_cast %131 : vector<1x1x8x8xf32> to vector<8x8xf32>
    %cst_116 = arith.constant dense<0.000000e+00> : vector<64x8xf32>
    %133 = tpu.matmul %127, %132, %cst_116 {dimension_numbers = #tpu.dot_dimension_numbers<[1], [0], [0], [1], [0, 0, 1, 1], [], []>} : vector<64x8xf32>, vector<8x8xf32>, vector<64x8xf32> -> vector<64x8xf32>
    %134 = arith.addf %124, %133 : vector<64x8xf32>
    %135 = vector.extract_strided_slice %11 {offsets = [2, 2, 0, 0], sizes = [1, 1, 8, 8], strides = [1, 1, 1, 1]} : vector<3x3x8x8xf32> to vector<1x1x8x8xf32>
    %136 = vector.shape_cast %135 : vector<1x1x8x8xf32> to vector<8x8xf32>
    %cst_117 = arith.constant dense<0.000000e+00> : vector<64x8xf32>
    %137 = tpu.matmul %130, %136, %cst_117 {dimension_numbers = #tpu.dot_dimension_numbers<[1], [0], [0], [1], [0, 0, 1, 1], [], []>} : vector<64x8xf32>, vector<8x8xf32>, vector<64x8xf32> -> vector<64x8xf32>
    %138 = arith.addf %134, %137 : vector<64x8xf32>
    %c0_118 = arith.constant 0 : index
    %c0_119 = arith.constant 0 : index
    %139 = vector.load %arg7[%c0_118, %c0_119] : memref<1x8xf32, #tpu.memory_space<vmem>>, vector<1x8xf32>
    %140 = vector.broadcast %139 : vector<1x8xf32> to vector<64x8xf32>
    %141 = arith.addf %138, %140 : vector<64x8xf32>
    %cst_120 = arith.constant 0.000000e+00 : f32
    %142 = vector.broadcast %cst_120 : f32 to vector<64x8xf32>
    %143 = arith.maximumf %141, %142 : vector<64x8xf32>
    %c0_121 = arith.constant 0 : index
    %c0_122 = arith.constant 0 : index
    %c0_123 = arith.constant 0 : index
    %144 = vector.load %arg8[%c0_121, %c0_122, %c0_123] : memref<1x64x8xf32, #tpu.memory_space<vmem>>, vector<1x64x8xf32>
    %145 = vector.shape_cast %144 : vector<1x64x8xf32> to vector<64x8xf32>
    %146 = vector.shape_cast %143 : vector<64x8xf32> to vector<1x64x8xf32>
    tpu.vector_store %arg8[%c0_121, %c0_122, %c0_123], %146 {strides = array<i32>} : memref<1x64x8xf32, #tpu.memory_space<vmem>>, vector<1x64x8xf32>,
    return
  }
  func.func @transform_0(%arg0: i32) -> (i32, i32, i32, i32, i32) {
    %c0_i32 = arith.constant 0 : i32
    %c0_i32_0 = arith.constant 0 : i32
    %c0_i32_1 = arith.constant 0 : i32
    %c0_i32_2 = arith.constant 0 : i32
    %c0_i32_3 = arith.constant 0 : i32
    return %arg0, %c0_i32, %c0_i32_0, %c0_i32_1, %c0_i32_2 : i32, i32, i32, i32, i32
  }
  func.func @transform_1(%arg0: i32) -> (i32, i32, i32, i32, i32) {
    %c0_i32 = arith.constant 0 : i32
    %c0_i32_0 = arith.constant 0 : i32
    %c0_i32_1 = arith.constant 0 : i32
    %c0_i32_2 = arith.constant 0 : i32
    %c0_i32_3 = arith.constant 0 : i32
    return %arg0, %c0_i32, %c0_i32_0, %c0_i32_1, %c0_i32_2 : i32, i32, i32, i32, i32
  }
  func.func @transform_2(%arg0: i32) -> (i32, i32, i32) {
    %c0_i32 = arith.constant 0 : i32
    %c0_i32_0 = arith.constant 0 : i32
    %c0_i32_1 = arith.constant 0 : i32
    return %arg0, %c0_i32, %c0_i32_0 : i32, i32, i32
  }
  func.func @transform_3(%arg0: i32) -> (i32, i32, i32) {
    %c0_i32 = arith.constant 0 : i32
    %c0_i32_0 = arith.constant 0 : i32
    %c0_i32_1 = arith.constant 0 : i32
    return %arg0, %c0_i32, %c0_i32_0 : i32, i32, i32
  }
  func.func @transform_4(%arg0: i32) -> (i32, i32, i32, i32) {
    %c0_i32 = arith.constant 0 : i32
    %c0_i32_0 = arith.constant 0 : i32
    %c0_i32_1 = arith.constant 0 : i32
    %c0_i32_2 = arith.constant 0 : i32
    %c0_i32_3 = arith.constant 0 : i32
    return %c0_i32, %c0_i32_0, %c0_i32_1, %c0_i32_2 : i32, i32, i32, i32
  }
  func.func @transform_5(%arg0: i32) -> (i32, i32, i32, i32) {
    %c0_i32 = arith.constant 0 : i32
    %c0_i32_0 = arith.constant 0 : i32
    %c0_i32_1 = arith.constant 0 : i32
    %c0_i32_2 = arith.constant 0 : i32
    %c0_i32_3 = arith.constant 0 : i32
    return %c0_i32, %c0_i32_0, %c0_i32_1, %c0_i32_2 : i32, i32, i32, i32
  }
  func.func @transform_6(%arg0: i32) -> (i32, i32) {
    %c0_i32 = arith.constant 0 : i32
    %c0_i32_0 = arith.constant 0 : i32
    %c0_i32_1 = arith.constant 0 : i32
    return %c0_i32, %c0_i32_0 : i32, i32
  }
  func.func @transform_7(%arg0: i32) -> (i32, i32, i32) {
    %c0_i32 = arith.constant 0 : i32
    %c0_i32_0 = arith.constant 0 : i32
    %c0_i32_1 = arith.constant 0 : i32
    return %arg0, %c0_i32, %c0_i32_0 : i32, i32, i32
  }
}

</mosaic_0001>

<llo_original>
// kernel: haar_conv_forward.2
$region0: #{haar_conv_forward.2}
  #allocation0 [shape = 'u32[]', space=smem, size = 0x4, offset = 0x4, fixed_abs, tag = 'smem constant byte address 0x4 - core index']
  #allocation1 [shape = 'u32[72,128]{1,0:T(1,128)}', space=vmem, size = 0x9000, scoped, tag = 'internal scratch']
  %s0 = inlined_call_operand.vmem [shape: f32[2,4,8,8,8], index: 0, kind: input, shape index: {}]
  %s1 = inlined_call_operand.vmem [shape: f32[2,4,9,9,8], index: 1, kind: output, shape index: {0}]
  %s2 = inlined_call_operand.vmem [shape: f32[2,4,9,9,8], index: 2, kind: output, shape index: {1}]
  %s3 = inlined_call_operand.vmem [shape: f32[2,1,8], index: 3, kind: output, shape index: {2}]
  %4 = xla_tuple %s1, %s2, %s3
  %s5 = sld [smem:[#allocation0]]
  $region53: #{haar_conv_forward.2} parent=0
    _
  %s7 = ssub.s32 1, %s5
  %s8 = scalar_select 0, %s7, %s5
  loop: start=0, step=1, limit=4
  $region2: #{haar_conv_forward.2} parent=0 // loop_pre_header
    _
  $region3: #{haar_conv_forward.2} parent=0 // loop_header
    %s10 = sphi 0, %s14
    %p11 = scmp.ge.s32.totalorder %s10, 4
    %s20 = sphi 0, %s22
    %s23 = sphi 0, %s20
    %s24 = sphi 0, %s23
    %s40 = sphi 0, %s24
    %s46 = sphi 0, %s48
    %s49 = sphi 0, %s46
    %s50 = sphi 0, %s49
    %s66 = sphi 0, %s50
    %s72 = sphi 0, %s74
    %s75 = sphi 0, %s72
    %s76 = sphi 0, %s75
    %s92 = sphi 0, %s76
    %s98 = sphi 0, %s100
    %s101 = sphi 0, %s98
    %s102 = sphi 0, %s101
    %s118 = sphi 0, %s102
  $region4: #{haar_conv_forward.2} parent=0 // loop_header_branch
    %13 = sbr.rel (%p11) target = $region8
  $region5: #{haar_conv_forward.2} parent=0 // loop_body
    %s15 = ssub.s32 %s10, 1
    %s16 = ssub.s32 %s10, 2
    %s17 = sadd.s32 %s10, 1
    %s18 = ssub.s32 %s10, %s17
    %p19 = scmp.eq.s32.totalorder %s18, 0
    %s21 = sadd.s32 %s20, 1
    %s22 = scalar_select %p19, %s20, %s21
    %p25 = pneg %p19
    %p26 = scmp.eq.s32.totalorder %s10, 1
    %p27 = por %p25, %p26
    %p28 = scmp.ne.s32.totalorder %s20, %s23
    %p29 = scmp.eq.s32.totalorder %s10, 0
    %p30 = por %p28, %p29
    %p31 = scmp.ne.s32.totalorder %s20, %s23
    %p32 = scmp.eq.s32.totalorder %s15, 1
    %p33 = por %p31, %p32
    %p34 = scmp.ne.s32.totalorder %s23, %s24
    %p35 = scmp.eq.s32.totalorder %s15, 0
    %p36 = por %p34, %p35
    %p37 = scmp.ne.s32.totalorder %s23, %s24
    %p38 = scmp.eq.s32.totalorder %s16, 1
    %p39 = por %p37, %p38
    %p41 = scmp.ne.s32.totalorder %s24, %s40
    %p42 = scmp.eq.s32.totalorder %s16, 0
    %p43 = por %p41, %p42
    %s44 = ssub.s32 %s10, %s17
    %p45 = scmp.eq.s32.totalorder %s44, 0
    %s47 = sadd.s32 %s46, 1
    %s48 = scalar_select %p45, %s46, %s47
    %p51 = pneg %p45
    %p52 = scmp.eq.s32.totalorder %s10, 1
    %p53 = por %p51, %p52
    %p54 = scmp.ne.s32.totalorder %s46, %s49
    %p55 = scmp.eq.s32.totalorder %s10, 0
    %p56 = por %p54, %p55
    %p57 = scmp.ne.s32.totalorder %s46, %s49
    %p58 = scmp.eq.s32.totalorder %s15, 1
    %p59 = por %p57, %p58
    %p60 = scmp.ne.s32.totalorder %s49, %s50
    %p61 = scmp.eq.s32.totalorder %s15, 0
    %p62 = por %p60, %p61
    %p63 = scmp.ne.s32.totalorder %s49, %s50
    %p64 = scmp.eq.s32.totalorder %s16, 1
    %p65 = por %p63, %p64
    %p67 = scmp.ne.s32.totalorder %s50, %s66
    %p68 = scmp.eq.s32.totalorder %s16, 0
    %p69 = por %p67, %p68
    %s70 = ssub.s32 %s10, %s17
    %p71 = scmp.eq.s32.totalorder %s70, 0
    %s73 = sadd.s32 %s72, 1
    %s74 = scalar_select %p71, %s72, %s73
    %p77 = pneg %p71
    %p78 = scmp.eq.s32.totalorder %s10, 1
    %p79 = por %p77, %p78
    %p80 = scmp.ne.s32.totalorder %s72, %s75
    %p81 = scmp.eq.s32.totalorder %s10, 0
    %p82 = por %p80, %p81
    %p83 = scmp.ne.s32.totalorder %s72, %s75
    %p84 = scmp.eq.s32.totalorder %s15, 1
    %p85 = por %p83, %p84
    %p86 = scmp.ne.s32.totalorder %s75, %s76
    %p87 = scmp.eq.s32.totalorder %s15, 0
    %p88 = por %p86, %p87
    %p89 = scmp.ne.s32.totalorder %s75, %s76
    %p90 = scmp.eq.s32.totalorder %s16, 1
    %p91 = por %p89, %p90
    %p93 = scmp.ne.s32.totalorder %s76, %s92
    %p94 = scmp.eq.s32.totalorder %s16, 0
    %p95 = por %p93, %p94
    %s96 = ssub.s32 %s10, %s17
    %p97 = scmp.eq.s32.totalorder %s96, 0
    %s99 = sadd.s32 %s98, 1
    %s100 = scalar_select %p97, %s98, %s99
    %p103 = pneg %p97
    %p104 = scmp.eq.s32.totalorder %s10, 1
    %p105 = por %p103, %p104
    %p106 = scmp.ne.s32.totalorder %s98, %s101
    %p107 = scmp.eq.s32.totalorder %s10, 0
    %p108 = por %p106, %p107
    %p109 = scmp.ne.s32.totalorder %s98, %s101
    %p110 = scmp.eq.s32.totalorder %s15, 1
    %p111 = por %p109, %p110
    %p112 = scmp.ne.s32.totalorder %s101, %s102
    %p113 = scmp.eq.s32.totalorder %s15, 0
    %p114 = por %p112, %p113
    %p115 = scmp.ne.s32.totalorder %s101, %s102
    %p116 = scmp.eq.s32.totalorder %s16, 1
    %p117 = por %p115, %p116
    %p119 = scmp.ne.s32.totalorder %s102, %s118
    %p120 = scmp.eq.s32.totalorder %s16, 0
    %p121 = por %p119, %p120
    %p122 = scmp.le.s32.totalorder 1, %s10
    %p123 = scmp.lt.s32.totalorder %s10, 3
    %p124 = pnand %p122, %p123
    %p125 = pneg %p124
    // Predicated region
    $region9: #{haar_conv_forward.2} parent=5 // pred_check
      _
    $region10: #{haar_conv_forward.2} parent=5 // pred_check_branch
      %127 = sbr.rel (%p124) target = $region12
    $region11: #{haar_conv_forward.2} parent=5 // pred_region
      %s128 = ssub.s32 %s10, 1
    $region12: #{haar_conv_forward.2} parent=5 // pred_fallthru
      _
    %p129 = scmp.lt.s32.totalorder %s10, 2
    // Predicated region
    $region13: #{haar_conv_forward.2} parent=5 // pred_check
      %p130 = pneg %p129
    $region14: #{haar_conv_forward.2} parent=5 // pred_check_branch
      %132 = sbr.rel (%p130) target = $region16
    $region15: #{haar_conv_forward.2} parent=5 // pred_region
      // Predicated region
      $region17: #{haar_conv_forward.2} parent=15 // pred_check
        %p133 = pneg %p30
      $region18: #{haar_conv_forward.2} parent=15 // pred_check_branch
        %135 = sbr.rel (%p133) target = $region20
      $region19: #{haar_conv_forward.2} parent=15 // pred_region
        %p136 = scmp.lt.s32.totalorder %s10, 1
        %s137 = scalar_select %p136, %s10, 1
        %s138 = smul.addr %s137, 32
        %s139 = smul.addr %s138, 8
        %s140 = scalar_lea.vmem %s0, %s139
      $region20: #{haar_conv_forward.2} parent=15 // pred_fallthru
        _
    $region16: #{haar_conv_forward.2} parent=5 // pred_fallthru
      _
    %p141 = scmp.le.s32.totalorder 1, %s10
    %p142 = scmp.lt.s32.totalorder %s10, 3
    %p143 = pnand %p141, %p142
    %p144 = pneg %p143
    // Predicated region
    $region21: #{haar_conv_forward.2} parent=5 // pred_check
      _
    $region22: #{haar_conv_forward.2} parent=5 // pred_check_branch
      %146 = sbr.rel (%p143) target = $region24
    $region23: #{haar_conv_forward.2} parent=5 // pred_region
      %s147 = ssub.s32 %s10, 1
      %p148 = scmp.lt.s32.totalorder %s15, 1
      %s149 = scalar_select %p148, %s15, 1
      %s150 = smul.addr %s149, 32
      %s151 = smul.addr %s150, 8
      %s152 = scalar_lea.vmem %s0, %s151
      %p153 = pneg %p36
      %p154 = pneg %p33
      %p155 = pneg %p62
      %p156 = pneg %p59
      %p157 = scmp.lt.s32.totalorder %s15, 1
      %s158 = scalar_select %p157, %s15, 1
      %s159 = smul.addr %s158, 72
      %s160 = smul.addr %s159, 8
      %s161 = scalar_lea.vmem %s1, %s160
      %p162 = pneg %p88
      %p163 = pneg %p85
      %p164 = scmp.lt.s32.totalorder %s15, 1
      %s165 = scalar_select %p164, %s15, 1
      %s166 = smul.addr %s165, 72
      %s167 = smul.addr %s166, 8
      %s168 = scalar_lea.vmem %s2, %s167
      %p169 = pneg %p114
      %p170 = pneg %p111
      %p171 = scmp.lt.s32.totalorder %s15, 1
      %s172 = scalar_select %p171, %s15, 1
      %s173 = scalar_lea.vmem %s3, %s172
      %p174 = scmp.lt.s32.totalorder %s15, 1
      %s175 = scalar_select %p174, %s15, 1
      %s176 = smul.addr %s175, 32
      %s177 = smul.addr %s176, 8
      %s178 = scalar_lea.vmem %s0, %s177
      %p179 = scmp.lt.s32.totalorder %s15, 1
      %s180 = scalar_select %p179, %s15, 1
      %s181 = smul.addr %s180, 72
      %s182 = smul.addr %s181, 8
      %s183 = scalar_lea.vmem %s1, %s182
      %p184 = scmp.lt.s32.totalorder %s15, 1
      %s185 = scalar_select %p184, %s15, 1
      %s186 = smul.addr %s185, 72
      %s187 = smul.addr %s186, 8
      %s188 = scalar_lea.vmem %s2, %s187
      %p189 = scmp.lt.s32.totalorder %s15, 1
      %s190 = scalar_select %p189, %s15, 1
      %s191 = scalar_lea.vmem %s3, %s190
      %v192 = vld [vmem:[%s178] sm:$0xff]
      %v193 = vld [vmem:[%s178 + $0x8] sm:$0xff]
      %v194 = vld [vmem:[%s178 + $0x10] sm:$0xff]
      %v195 = vld [vmem:[%s178 + $0x18] sm:$0xff]
      %v196 = vld [vmem:[%s178 + $0x20] sm:$0xff]
      %v197 = vld [vmem:[%s178 + $0x28] sm:$0xff]
      %v198 = vld [vmem:[%s178 + $0x30] sm:$0xff]
      %v199 = vld [vmem:[%s178 + $0x38] sm:$0xff]
      %v200 = vmax.f32 %v192, 0.0
      %v201 = vmax.f32 %v193, 0.0
      %v202 = vmax.f32 %v194, 0.0
      %v203 = vmax.f32 %v195, 0.0
      %v204 = vmax.f32 %v196, 0.0
      %v205 = vmax.f32 %v197, 0.0
      %v206 = vmax.f32 %v198, 0.0
      %v207 = vmax.f32 %v199, 0.0
      %v208 = vmin.f32 %v200, 6.0
      %v209 = vmin.f32 %v201, 6.0
      %v210 = vmin.f32 %v202, 6.0
      %v211 = vmin.f32 %v203, 6.0
      %v212 = vmin.f32 %v204, 6.0
      %v213 = vmin.f32 %v205, 6.0
      %v214 = vmin.f32 %v206, 6.0
      %v215 = vmin.f32 %v207, 6.0
      %s216 = scalar_lea.vmem %s178, 64
      %v217 = vld [vmem:[%s216] sm:$0xff]
      %v218 = vld [vmem:[%s216 + $0x8] sm:$0xff]
      %v219 = vld [vmem:[%s216 + $0x10] sm:$0xff]
      %v220 = vld [vmem:[%s216 + $0x18] sm:$0xff]
      %v221 = vld [vmem:[%s216 + $0x20] sm:$0xff]
      %v222 = vld [vmem:[%s216 + $0x28] sm:$0xff]
      %v223 = vld [vmem:[%s216 + $0x30] sm:$0xff]
      %v224 = vld [vmem:[%s216 + $0x38] sm:$0xff]
      %v225 = vmax.f32 %v217, 0.0
      %v226 = vmax.f32 %v218, 0.0
      %v227 = vmax.f32 %v219, 0.0
      %v228 = vmax.f32 %v220, 0.0
      %v229 = vmax.f32 %v221, 0.0
      %v230 = vmax.f32 %v222, 0.0
      %v231 = vmax.f32 %v223, 0.0
      %v232 = vmax.f32 %v224, 0.0
      %v233 = vmin.f32 %v225, 6.0
      %v234 = vmin.f32 %v226, 6.0
      %v235 = vmin.f32 %v227, 6.0
      %v236 = vmin.f32 %v228, 6.0
      %v237 = vmin.f32 %v229, 6.0
      %v238 = vmin.f32 %v230, 6.0
      %v239 = vmin.f32 %v231, 6.0
      %v240 = vmin.f32 %v232, 6.0
      %s241 = scalar_lea.vmem %s178, 128
      %v242 = vld [vmem:[%s241] sm:$0xff]
      %v243 = vld [vmem:[%s241 + $0x8] sm:$0xff]
      %v244 = vld [vmem:[%s241 + $0x10] sm:$0xff]
      %v245 = vld [vmem:[%s241 + $0x18] sm:$0xff]
      %v246 = vld [vmem:[%s241 + $0x20] sm:$0xff]
      %v247 = vld [vmem:[%s241 + $0x28] sm:$0xff]
      %v248 = vld [vmem:[%s241 + $0x30] sm:$0xff]
      %v249 = vld [vmem:[%s241 + $0x38] sm:$0xff]
      %v250 = vmax.f32 %v242, 0.0
      %v251 = vmax.f32 %v243, 0.0
      %v252 = vmax.f32 %v244, 0.0
      %v253 = vmax.f32 %v245, 0.0
      %v254 = vmax.f32 %v246, 0.0
      %v255 = vmax.f32 %v247, 0.0
      %v256 = vmax.f32 %v248, 0.0
      %v257 = vmax.f32 %v249, 0.0
      %v258 = vmin.f32 %v250, 6.0
      %v259 = vmin.f32 %v251, 6.0
      %v260 = vmin.f32 %v252, 6.0
      %v261 = vmin.f32 %v253, 6.0
      %v262 = vmin.f32 %v254, 6.0
      %v263 = vmin.f32 %v255, 6.0
      %v264 = vmin.f32 %v256, 6.0
      %v265 = vmin.f32 %v257, 6.0
      %s266 = scalar_lea.vmem %s178, 192
      %v267 = vld [vmem:[%s266] sm:$0xff]
      %v268 = vld [vmem:[%s266 + $0x8] sm:$0xff]
      %v269 = vld [vmem:[%s266 + $0x10] sm:$0xff]
      %v270 = vld [vmem:[%s266 + $0x18] sm:$0xff]
      %v271 = vld [vmem:[%s266 + $0x20] sm:$0xff]
      %v272 = vld [vmem:[%s266 + $0x28] sm:$0xff]
      %v273 = vld [vmem:[%s266 + $0x30] sm:$0xff]
      %v274 = vld [vmem:[%s266 + $0x38] sm:$0xff]
      %v275 = vmax.f32 %v267, 0.0
      %v276 = vmax.f32 %v268, 0.0
      %v277 = vmax.f32 %v269, 0.0
      %v278 = vmax.f32 %v270, 0.0
      %v279 = vmax.f32 %v271, 0.0
      %v280 = vmax.f32 %v272, 0.0
      %v281 = vmax.f32 %v273, 0.0
      %v282 = vmax.f32 %v274, 0.0
      %v283 = vmin.f32 %v275, 6.0
      %v284 = vmin.f32 %v276, 6.0
      %v285 = vmin.f32 %v277, 6.0
      %v286 = vmin.f32 %v278, 6.0
      %v287 = vmin.f32 %v279, 6.0
      %v288 = vmin.f32 %v280, 6.0
      %v289 = vmin.f32 %v281, 6.0
      %v290 = vmin.f32 %v282, 6.0
      %v291 = vadd.f32 %v208, %v233
      %v292 = vadd.f32 %v209, %v234
      %v293 = vadd.f32 %v210, %v235
      %v294 = vadd.f32 %v211, %v236
      %v295 = vadd.f32 %v212, %v237
      %v296 = vadd.f32 %v213, %v238
      %v297 = vadd.f32 %v214, %v239
      %v298 = vadd.f32 %v215, %v240
      %v299 = vadd.f32 %v258, %v283
      %v300 = vadd.f32 %v259, %v284
      %v301 = vadd.f32 %v260, %v285
      %v302 = vadd.f32 %v261, %v286
      %v303 = vadd.f32 %v262, %v287
      %v304 = vadd.f32 %v263, %v288
      %v305 = vadd.f32 %v264, %v289
      %v306 = vadd.f32 %v265, %v290
      %v307 = vadd.f32 %v291, %v299
      %v308 = vadd.f32 %v292, %v300
      %v309 = vadd.f32 %v293, %v301
      %v310 = vadd.f32 %v294, %v302
      %v311 = vadd.f32 %v295, %v303
      %v312 = vadd.f32 %v296, %v304
      %v313 = vadd.f32 %v297, %v305
      %v314 = vadd.f32 %v298, %v306
      %v315 = vmul.f32 %v307, 0.25
      %v316 = vmul.f32 %v308, 0.25
      %v317 = vmul.f32 %v309, 0.25
      %v318 = vmul.f32 %v310, 0.25
      %v319 = vmul.f32 %v311, 0.25
      %v320 = vmul.f32 %v312, 0.25
      %v321 = vmul.f32 %v313, 0.25
      %v322 = vmul.f32 %v314, 0.25
      %vm323 = vcmask 64512
      %v324 = vsel %vm323, %v307, 0.0
      %v325 = vsel %vm323, %v308, 0.0
      %v326 = vadd.f32 %v324, %v325
      %v327 = vsel %vm323, %v309, 0.0
      %v328 = vadd.f32 %v326, %v327
      %v329 = vsel %vm323, %v310, 0.0
      %v330 = vadd.f32 %v328, %v329
      %v331 = vsel %vm323, %v311, 0.0
      %v332 = vadd.f32 %v330, %v331
      %v333 = vsel %vm323, %v312, 0.0
      %v334 = vadd.f32 %v332, %v333
      %v335 = vsel %vm323, %v313, 0.0
      %v336 = vadd.f32 %v334, %v335
      %v337 = vsel %vm323, %v314, 0.0
      %v338 = vadd.f32 %v336, %v337
      %v339 = vsel %vm323, %v338, 0.0
      %v340 = vrot.slane %v339, 4
      %v341 = vadd.f32 %v339, %v340
      %v342 = vrot.slane %v341, 2
      %v343 = vadd.f32 %v341, %v342
      %v344 = vrot.slane %v343, 1
      %v345 = vadd.f32 %v343, %v344
      %v346 = vmul.f32 %v345, 0.00390625
      %vm347 = vcmask 57344
      %348 = vst.msk [vmem:[%s191] sm:$0x1] %vm347, %v346
      %349 = vst.msk [vmem:[%s183] sm:$0xff] %vm323, 0.0
      %350 = vst.msk [vmem:[%s183 + $0x8] sm:$0x1] %vm347, 0.0
      %351 = vst.msk [vmem:[%s183 + $0x10] sm:$0xff] %vm323, 0.0
      %352 = vst.msk [vmem:[%s183 + $0x18] sm:$0x1] %vm347, 0.0
      %353 = vst.msk [vmem:[%s183 + $0x20] sm:$0xff] %vm323, 0.0
      %354 = vst.msk [vmem:[%s183 + $0x28] sm:$0x1] %vm347, 0.0
      %355 = vst.msk [vmem:[%s183 + $0x30] sm:$0xff] %vm323, 0.0
      %356 = vst.msk [vmem:[%s183 + $0x38] sm:$0x1] %vm347, 0.0
      %357 = vst.msk [vmem:[%s183 + $0x40] sm:$0xff] %vm323, 0.0
      %358 = vst.msk [vmem:[%s183 + $0x48] sm:$0x1] %vm347, 0.0
      %359 = vst.msk [vmem:[%s183 + $0x50] sm:$0xff] %vm323, 0.0
      %360 = vst.msk [vmem:[%s183 + $0x58] sm:$0x1] %vm347, 0.0
      %361 = vst.msk [vmem:[%s183 + $0x60] sm:$0xff] %vm323, 0.0
      %362 = vst.msk [vmem:[%s183 + $0x68] sm:$0x1] %vm347, 0.0
      %363 = vst.msk [vmem:[%s183 + $0x70] sm:$0xff] %vm323, 0.0
      %364 = vst.msk [vmem:[%s183 + $0x78] sm:$0x1] %vm347, 0.0
      %365 = vst.msk [vmem:[%s183 + $0x80] sm:$0xff] %vm323, 0.0
      %366 = vst.msk [vmem:[%s183 + $0x88] sm:$0x1] %vm347, 0.0
      %367 = vst.msk [vmem:[%s183 + $0x90] sm:$0xff] %vm323, 0.0
      %368 = vst.msk [vmem:[%s183 + $0x98] sm:$0x1] %vm347, 0.0
      %369 = vst.msk [vmem:[%s183 + $0xa0] sm:$0xff] %vm323, 0.0
      %370 = vst.msk [vmem:[%s183 + $0xa8] sm:$0x1] %vm347, 0.0
      %371 = vst.msk [vmem:[%s183 + $0xb0] sm:$0xff] %vm323, 0.0
      %372 = vst.msk [vmem:[%s183 + $0xb8] sm:$0x1] %vm347, 0.0
      %373 = vst.msk [vmem:[%s183 + $0xc0] sm:$0xff] %vm323, 0.0
      %374 = vst.msk [vmem:[%s183 + $0xc8] sm:$0x1] %vm347, 0.0
      %375 = vst.msk [vmem:[%s183 + $0xd0] sm:$0xff] %vm323, 0.0
      %376 = vst.msk [vmem:[%s183 + $0xd8] sm:$0x1] %vm347, 0.0
      %377 = vst.msk [vmem:[%s183 + $0xe0] sm:$0xff] %vm323, 0.0
      %378 = vst.msk [vmem:[%s183 + $0xe8] sm:$0x1] %vm347, 0.0
      %379 = vst.msk [vmem:[%s183 + $0xf0] sm:$0xff] %vm323, 0.0
      %380 = vst.msk [vmem:[%s183 + $0xf8] sm:$0x1] %vm347, 0.0
      %381 = vst.msk [vmem:[%s183 + $0x100] sm:$0xff] %vm323, 0.0
      %382 = vst.msk [vmem:[%s183 + $0x108] sm:$0x1] %vm347, 0.0
      %383 = vst.msk [vmem:[%s183 + $0x110] sm:$0xff] %vm323, 0.0
      %384 = vst.msk [vmem:[%s183 + $0x118] sm:$0x1] %vm347, 0.0
      %385 = vst.msk [vmem:[%s183 + $0x120] sm:$0xff] %vm323, 0.0
      %386 = vst.msk [vmem:[%s183 + $0x128] sm:$0x1] %vm347, 0.0
      %387 = vst.msk [vmem:[%s183 + $0x130] sm:$0xff] %vm323, 0.0
      %388 = vst.msk [vmem:[%s183 + $0x138] sm:$0x1] %vm347, 0.0
      %389 = vst.msk [vmem:[%s183 + $0x140] sm:$0xff] %vm323, 0.0
      %390 = vst.msk [vmem:[%s183 + $0x148] sm:$0x1] %vm347, 0.0
      %391 = vst.msk [vmem:[%s183 + $0x150] sm:$0xff] %vm323, 0.0
      %392 = vst.msk [vmem:[%s183 + $0x158] sm:$0x1] %vm347, 0.0
      %393 = vst.msk [vmem:[%s183 + $0x160] sm:$0xff] %vm323, 0.0
      %394 = vst.msk [vmem:[%s183 + $0x168] sm:$0x1] %vm347, 0.0
      %395 = vst.msk [vmem:[%s183 + $0x170] sm:$0xff] %vm323, 0.0
      %396 = vst.msk [vmem:[%s183 + $0x178] sm:$0x1] %vm347, 0.0
      %397 = vst.msk [vmem:[%s183 + $0x180] sm:$0xff] %vm323, 0.0
      %398 = vst.msk [vmem:[%s183 + $0x188] sm:$0x1] %vm347, 0.0
      %399 = vst.msk [vmem:[%s183 + $0x190] sm:$0xff] %vm323, 0.0
      %400 = vst.msk [vmem:[%s183 + $0x198] sm:$0x1] %vm347, 0.0
      %401 = vst.msk [vmem:[%s183 + $0x1a0] sm:$0xff] %vm323, 0.0
      %402 = vst.msk [vmem:[%s183 + $0x1a8] sm:$0x1] %vm347, 0.0
      %403 = vst.msk [vmem:[%s183 + $0x1b0] sm:$0xff] %vm323, 0.0
      %404 = vst.msk [vmem:[%s183 + $0x1b8] sm:$0x1] %vm347, 0.0
      %405 = vst.msk [vmem:[%s183 + $0x1c0] sm:$0xff] %vm323, 0.0
      %406 = vst.msk [vmem:[%s183 + $0x1c8] sm:$0x1] %vm347, 0.0
      %407 = vst.msk [vmem:[%s183 + $0x1d0] sm:$0xff] %vm323, 0.0
      %408 = vst.msk [vmem:[%s183 + $0x1d8] sm:$0x1] %vm347, 0.0
      %409 = vst.msk [vmem:[%s183 + $0x1e0] sm:$0xff] %vm323, 0.0
      %410 = vst.msk [vmem:[%s183 + $0x1e8] sm:$0x1] %vm347, 0.0
      %411 = vst.msk [vmem:[%s183 + $0x1f0] sm:$0xff] %vm323, 0.0
      %412 = vst.msk [vmem:[%s183 + $0x1f8] sm:$0x1] %vm347, 0.0
      %413 = vst.msk [vmem:[%s183 + $0x200] sm:$0xff] %vm323, 0.0
      %414 = vst.msk [vmem:[%s183 + $0x208] sm:$0x1] %vm347, 0.0
      %415 = vst.msk [vmem:[%s183 + $0x210] sm:$0xff] %vm323, 0.0
      %416 = vst.msk [vmem:[%s183 + $0x218] sm:$0x1] %vm347, 0.0
      %417 = vst.msk [vmem:[%s183 + $0x220] sm:$0xff] %vm323, 0.0
      %418 = vst.msk [vmem:[%s183 + $0x228] sm:$0x1] %vm347, 0.0
      %419 = vst.msk [vmem:[%s183 + $0x230] sm:$0xff] %vm323, 0.0
      %420 = vst.msk [vmem:[%s183 + $0x238] sm:$0x1] %vm347, 0.0
      %421 = vst.msk [vmem:[%s188] sm:$0xff] %vm323, 0.0
      %422 = vst.msk [vmem:[%s188 + $0x8] sm:$0x1] %vm347, 0.0
      %423 = vst.msk [vmem:[%s188 + $0x10] sm:$0xff] %vm323, 0.0
      %424 = vst.msk [vmem:[%s188 + $0x18] sm:$0x1] %vm347, 0.0
      %425 = vst.msk [vmem:[%s188 + $0x20] sm:$0xff] %vm323, 0.0
      %426 = vst.msk [vmem:[%s188 + $0x28] sm:$0x1] %vm347, 0.0
      %427 = vst.msk [vmem:[%s188 + $0x30] sm:$0xff] %vm323, 0.0
      %428 = vst.msk [vmem:[%s188 + $0x38] sm:$0x1] %vm347, 0.0
      %429 = vst.msk [vmem:[%s188 + $0x40] sm:$0xff] %vm323, 0.0
      %430 = vst.msk [vmem:[%s188 + $0x48] sm:$0x1] %vm347, 0.0
      %431 = vst.msk [vmem:[%s188 + $0x50] sm:$0xff] %vm323, 0.0
      %432 = vst.msk [vmem:[%s188 + $0x58] sm:$0x1] %vm347, 0.0
      %433 = vst.msk [vmem:[%s188 + $0x60] sm:$0xff] %vm323, 0.0
      %434 = vst.msk [vmem:[%s188 + $0x68] sm:$0x1] %vm347, 0.0
      %435 = vst.msk [vmem:[%s188 + $0x70] sm:$0xff] %vm323, 0.0
      %436 = vst.msk [vmem:[%s188 + $0x78] sm:$0x1] %vm347, 0.0
      %437 = vst.msk [vmem:[%s188 + $0x80] sm:$0xff] %vm323, 0.0
      %438 = vst.msk [vmem:[%s188 + $0x88] sm:$0x1] %vm347, 0.0
      %439 = vst.msk [vmem:[%s188 + $0x90] sm:$0xff] %vm323, 0.0
      %440 = vst.msk [vmem:[%s188 + $0x98] sm:$0x1] %vm347, 0.0
      %441 = vst.msk [vmem:[%s188 + $0xa0] sm:$0xff] %vm323, 0.0
      %442 = vst.msk [vmem:[%s188 + $0xa8] sm:$0x1] %vm347, 0.0
      %443 = vst.msk [vmem:[%s188 + $0xb0] sm:$0xff] %vm323, 0.0
      %444 = vst.msk [vmem:[%s188 + $0xb8] sm:$0x1] %vm347, 0.0
      %445 = vst.msk [vmem:[%s188 + $0xc0] sm:$0xff] %vm323, 0.0
      %446 = vst.msk [vmem:[%s188 + $0xc8] sm:$0x1] %vm347, 0.0
      %447 = vst.msk [vmem:[%s188 + $0xd0] sm:$0xff] %vm323, 0.0
      %448 = vst.msk [vmem:[%s188 + $0xd8] sm:$0x1] %vm347, 0.0
      %449 = vst.msk [vmem:[%s188 + $0xe0] sm:$0xff] %vm323, 0.0
      %450 = vst.msk [vmem:[%s188 + $0xe8] sm:$0x1] %vm347, 0.0
      %451 = vst.msk [vmem:[%s188 + $0xf0] sm:$0xff] %vm323, 0.0
      %452 = vst.msk [vmem:[%s188 + $0xf8] sm:$0x1] %vm347, 0.0
      %453 = vst.msk [vmem:[%s188 + $0x100] sm:$0xff] %vm323, 0.0
      %454 = vst.msk [vmem:[%s188 + $0x108] sm:$0x1] %vm347, 0.0
      %455 = vst.msk [vmem:[%s188 + $0x110] sm:$0xff] %vm323, 0.0
      %456 = vst.msk [vmem:[%s188 + $0x118] sm:$0x1] %vm347, 0.0
      %457 = vst.msk [vmem:[%s188 + $0x120] sm:$0xff] %vm323, 0.0
      %458 = vst.msk [vmem:[%s188 + $0x128] sm:$0x1] %vm347, 0.0
      %459 = vst.msk [vmem:[%s188 + $0x130] sm:$0xff] %vm323, 0.0
      %460 = vst.msk [vmem:[%s188 + $0x138] sm:$0x1] %vm347, 0.0
      %461 = vst.msk [vmem:[%s188 + $0x140] sm:$0xff] %vm323, 0.0
      %462 = vst.msk [vmem:[%s188 + $0x148] sm:$0x1] %vm347, 0.0
      %463 = vst.msk [vmem:[%s188 + $0x150] sm:$0xff] %vm323, 0.0
      %464 = vst.msk [vmem:[%s188 + $0x158] sm:$0x1] %vm347, 0.0
      %465 = vst.msk [vmem:[%s188 + $0x160] sm:$0xff] %vm323, 0.0
      %466 = vst.msk [vmem:[%s188 + $0x168] sm:$0x1] %vm347, 0.0
      %467 = vst.msk [vmem:[%s188 + $0x170] sm:$0xff] %vm323, 0.0
      %468 = vst.msk [vmem:[%s188 + $0x178] sm:$0x1] %vm347, 0.0
      %469 = vst.msk [vmem:[%s188 + $0x180] sm:$0xff] %vm323, 0.0
      %470 = vst.msk [vmem:[%s188 + $0x188] sm:$0x1] %vm347, 0.0
      %471 = vst.msk [vmem:[%s188 + $0x190] sm:$0xff] %vm323, 0.0
      %472 = vst.msk [vmem:[%s188 + $0x198] sm:$0x1] %vm347, 0.0
      %473 = vst.msk [vmem:[%s188 + $0x1a0] sm:$0xff] %vm323, 0.0
      %474 = vst.msk [vmem:[%s188 + $0x1a8] sm:$0x1] %vm347, 0.0
      %475 = vst.msk [vmem:[%s188 + $0x1b0] sm:$0xff] %vm323, 0.0
      %476 = vst.msk [vmem:[%s188 + $0x1b8] sm:$0x1] %vm347, 0.0
      %477 = vst.msk [vmem:[%s188 + $0x1c0] sm:$0xff] %vm323, 0.0
      %478 = vst.msk [vmem:[%s188 + $0x1c8] sm:$0x1] %vm347, 0.0
      %479 = vst.msk [vmem:[%s188 + $0x1d0] sm:$0xff] %vm323, 0.0
      %480 = vst.msk [vmem:[%s188 + $0x1d8] sm:$0x1] %vm347, 0.0
      %481 = vst.msk [vmem:[%s188 + $0x1e0] sm:$0xff] %vm323, 0.0
      %482 = vst.msk [vmem:[%s188 + $0x1e8] sm:$0x1] %vm347, 0.0
      %483 = vst.msk [vmem:[%s188 + $0x1f0] sm:$0xff] %vm323, 0.0
      %484 = vst.msk [vmem:[%s188 + $0x1f8] sm:$0x1] %vm347, 0.0
      %485 = vst.msk [vmem:[%s188 + $0x200] sm:$0xff] %vm323, 0.0
      %486 = vst.msk [vmem:[%s188 + $0x208] sm:$0x1] %vm347, 0.0
      %487 = vst.msk [vmem:[%s188 + $0x210] sm:$0xff] %vm323, 0.0
      %488 = vst.msk [vmem:[%s188 + $0x218] sm:$0x1] %vm347, 0.0
      %489 = vst.msk [vmem:[%s188 + $0x220] sm:$0xff] %vm323, 0.0
      %490 = vst.msk [vmem:[%s188 + $0x228] sm:$0x1] %vm347, 0.0
      %491 = vst.msk [vmem:[%s188 + $0x230] sm:$0xff] %vm323, 0.0
      %492 = vst.msk [vmem:[%s188 + $0x238] sm:$0x1] %vm347, 0.0
      %v493 = vsub.f32 %v208, %v315
      %v494 = vsub.f32 %v209, %v316
      %v495 = vsub.f32 %v210, %v317
      %v496 = vsub.f32 %v211, %v318
      %v497 = vsub.f32 %v212, %v319
      %v498 = vsub.f32 %v213, %v320
      %v499 = vsub.f32 %v214, %v321
      %v500 = vsub.f32 %v215, %v322
      %s501 = scalar_lea.vmem %s183, 432
      %502 = vst.msk [vmem:[%s501] sm:$0xff] %vm323, %v493
      %503 = vst.msk [vmem:[%s501 + $0x10] sm:$0xff] %vm323, %v494
      %504 = vst.msk [vmem:[%s501 + $0x20] sm:$0xff] %vm323, %v495
      %505 = vst.msk [vmem:[%s501 + $0x30] sm:$0xff] %vm323, %v496
      %506 = vst.msk [vmem:[%s501 + $0x40] sm:$0xff] %vm323, %v497
      %507 = vst.msk [vmem:[%s501 + $0x50] sm:$0xff] %vm323, %v498
      %508 = vst.msk [vmem:[%s501 + $0x60] sm:$0xff] %vm323, %v499
      %509 = vst.msk [vmem:[%s501 + $0x70] sm:$0xff] %vm323, %v500
      %s510 = scalar_lea.vmem %s188, 432
      %511 = vst.msk [vmem:[%s510] sm:$0xff] %vm323, %v315
      %512 = vst.msk [vmem:[%s510 + $0x10] sm:$0xff] %vm323, %v316
      %513 = vst.msk [vmem:[%s510 + $0x20] sm:$0xff] %vm323, %v317
      %514 = vst.msk [vmem:[%s510 + $0x30] sm:$0xff] %vm323, %v318
      %515 = vst.msk [vmem:[%s510 + $0x40] sm:$0xff] %vm323, %v319
      %516 = vst.msk [vmem:[%s510 + $0x50] sm:$0xff] %vm323, %v320
      %517 = vst.msk [vmem:[%s510 + $0x60] sm:$0xff] %vm323, %v321
      %518 = vst.msk [vmem:[%s510 + $0x70] sm:$0xff] %vm323, %v322
      %v519 = vsub.f32 %v233, %v315
      %v520 = vsub.f32 %v234, %v316
      %v521 = vsub.f32 %v235, %v317
      %v522 = vsub.f32 %v236, %v318
      %v523 = vsub.f32 %v237, %v319
      %v524 = vsub.f32 %v238, %v320
      %v525 = vsub.f32 %v239, %v321
      %v526 = vsub.f32 %v240, %v322
      %s527 = scalar_lea.vmem %s183, 288
      %528 = vst.msk [vmem:[%s527 + $0x1] sm:$0xff] %vm323, %v519
      %529 = vst.msk [vmem:[%s527 + $0x11] sm:$0xff] %vm323, %v520
      %530 = vst.msk [vmem:[%s527 + $0x21] sm:$0xff] %vm323, %v521
      %531 = vst.msk [vmem:[%s527 + $0x31] sm:$0xff] %vm323, %v522
      %532 = vst.msk [vmem:[%s527 + $0x41] sm:$0xff] %vm323, %v523
      %533 = vst.msk [vmem:[%s527 + $0x51] sm:$0xff] %vm323, %v524
      %534 = vst.msk [vmem:[%s527 + $0x61] sm:$0xff] %vm323, %v525
      %535 = vst.msk [vmem:[%s527 + $0x71] sm:$0xff] %vm323, %v526
      %s536 = scalar_lea.vmem %s188, 288
      %537 = vst.msk [vmem:[%s536 + $0x1] sm:$0xff] %vm323, %v315
      %538 = vst.msk [vmem:[%s536 + $0x11] sm:$0xff] %vm323, %v316
      %539 = vst.msk [vmem:[%s536 + $0x21] sm:$0xff] %vm323, %v317
      %540 = vst.msk [vmem:[%s536 + $0x31] sm:$0xff] %vm323, %v318
      %541 = vst.msk [vmem:[%s536 + $0x41] sm:$0xff] %vm323, %v319
      %542 = vst.msk [vmem:[%s536 + $0x51] sm:$0xff] %vm323, %v320
      %543 = vst.msk [vmem:[%s536 + $0x61] sm:$0xff] %vm323, %v321
      %544 = vst.msk [vmem:[%s536 + $0x71] sm:$0xff] %vm323, %v322
      %v545 = vsub.f32 %v258, %v315
      %v546 = vsub.f32 %v259, %v316
      %v547 = vsub.f32 %v260, %v317
      %v548 = vsub.f32 %v261, %v318
      %v549 = vsub.f32 %v262, %v319
      %v550 = vsub.f32 %v263, %v320
      %v551 = vsub.f32 %v264, %v321
      %v552 = vsub.f32 %v265, %v322
      %s553 = scalar_lea.vmem %s183, 160
      %554 = vst.msk [vmem:[%s553] sm:$0xff] %vm323, %v545
      %555 = vst.msk [vmem:[%s553 + $0x10] sm:$0xff] %vm323, %v546
      %556 = vst.msk [vmem:[%s553 + $0x20] sm:$0xff] %vm323, %v547
      %557 = vst.msk [vmem:[%s553 + $0x30] sm:$0xff] %vm323, %v548
      %558 = vst.msk [vmem:[%s553 + $0x40] sm:$0xff] %vm323, %v549
      %559 = vst.msk [vmem:[%s553 + $0x50] sm:$0xff] %vm323, %v550
      %560 = vst.msk [vmem:[%s553 + $0x60] sm:$0xff] %vm323, %v551
      %561 = vst.msk [vmem:[%s553 + $0x70] sm:$0xff] %vm323, %v552
      %s562 = scalar_lea.vmem %s188, 160
      %563 = vst.msk [vmem:[%s562] sm:$0xff] %vm323, %v315
      %564 = vst.msk [vmem:[%s562 + $0x10] sm:$0xff] %vm323, %v316
      %565 = vst.msk [vmem:[%s562 + $0x20] sm:$0xff] %vm323, %v317
      %566 = vst.msk [vmem:[%s562 + $0x30] sm:$0xff] %vm323, %v318
      %567 = vst.msk [vmem:[%s562 + $0x40] sm:$0xff] %vm323, %v319
      %568 = vst.msk [vmem:[%s562 + $0x50] sm:$0xff] %vm323, %v320
      %569 = vst.msk [vmem:[%s562 + $0x60] sm:$0xff] %vm323, %v321
      %570 = vst.msk [vmem:[%s562 + $0x70] sm:$0xff] %vm323, %v322
      %v571 = vsub.f32 %v283, %v315
      %v572 = vsub.f32 %v284, %v316
      %v573 = vsub.f32 %v285, %v317
      %v574 = vsub.f32 %v286, %v318
      %v575 = vsub.f32 %v287, %v319
      %v576 = vsub.f32 %v288, %v320
      %v577 = vsub.f32 %v289, %v321
      %v578 = vsub.f32 %v290, %v322
      %s579 = scalar_lea.vmem %s183, 16
      %580 = vst.msk [vmem:[%s579 + $0x1] sm:$0xff] %vm323, %v571
      %581 = vst.msk [vmem:[%s579 + $0x11] sm:$0xff] %vm323, %v572
      %582 = vst.msk [vmem:[%s579 + $0x21] sm:$0xff] %vm323, %v573
      %583 = vst.msk [vmem:[%s579 + $0x31] sm:$0xff] %vm323, %v574
      %584 = vst.msk [vmem:[%s579 + $0x41] sm:$0xff] %vm323, %v575
      %585 = vst.msk [vmem:[%s579 + $0x51] sm:$0xff] %vm323, %v576
      %586 = vst.msk [vmem:[%s579 + $0x61] sm:$0xff] %vm323, %v577
      %587 = vst.msk [vmem:[%s579 + $0x71] sm:$0xff] %vm323, %v578
      %s588 = scalar_lea.vmem %s188, 16
      %589 = vst.msk [vmem:[%s588 + $0x1] sm:$0xff] %vm323, %v315
      %590 = vst.msk [vmem:[%s588 + $0x11] sm:$0xff] %vm323, %v316
      %591 = vst.msk [vmem:[%s588 + $0x21] sm:$0xff] %vm323, %v317
      %592 = vst.msk [vmem:[%s588 + $0x31] sm:$0xff] %vm323, %v318
      %593 = vst.msk [vmem:[%s588 + $0x41] sm:$0xff] %vm323, %v319
      %594 = vst.msk [vmem:[%s588 + $0x51] sm:$0xff] %vm323, %v320
      %595 = vst.msk [vmem:[%s588 + $0x61] sm:$0xff] %vm323, %v321
      %596 = vst.msk [vmem:[%s588 + $0x71] sm:$0xff] %vm323, %v322
      %p597 = scmp.lt.s32.totalorder %s15, 1
      %s598 = scalar_select %p597, %s15, 1
      %s599 = smul.addr %s598, 72
      %s600 = smul.addr %s599, 8
      %s601 = scalar_lea.vmem %s1, %s600
      %p602 = scmp.lt.s32.totalorder %s15, 1
      %s603 = scalar_select %p602, %s15, 1
      %s604 = smul.addr %s603, 72
      %s605 = smul.addr %s604, 8
      %s606 = scalar_lea.vmem %s2, %s605
      %p607 = scmp.lt.s32.totalorder %s15, 1
      %s608 = scalar_select %p607, %s15, 1
      %s609 = scalar_lea.vmem %s3, %s608
      // Predicated region
      $region25: #{haar_conv_forward.2} parent=23 // pred_check
        %p610 = pneg %p59
      $region26: #{haar_conv_forward.2} parent=23 // pred_check_branch
        %612 = sbr.rel (%p610) target = $region28
      $region27: #{haar_conv_forward.2} parent=23 // pred_region
        _
      $region28: #{haar_conv_forward.2} parent=23 // pred_fallthru
        _
      // Predicated region
      $region29: #{haar_conv_forward.2} parent=23 // pred_check
        %p613 = pneg %p85
      $region30: #{haar_conv_forward.2} parent=23 // pred_check_branch
        %615 = sbr.rel (%p613) target = $region32
      $region31: #{haar_conv_forward.2} parent=23 // pred_region
        _
      $region32: #{haar_conv_forward.2} parent=23 // pred_fallthru
        _
      // Predicated region
      $region33: #{haar_conv_forward.2} parent=23 // pred_check
        %p616 = pneg %p111
      $region34: #{haar_conv_forward.2} parent=23 // pred_check_branch
        %618 = sbr.rel (%p616) target = $region36
      $region35: #{haar_conv_forward.2} parent=23 // pred_region
        _
      $region36: #{haar_conv_forward.2} parent=23 // pred_fallthru
        _
    $region24: #{haar_conv_forward.2} parent=5 // pred_fallthru
      _
    %p619 = scmp.le.s32.totalorder 2, %s10
    // Predicated region
    $region37: #{haar_conv_forward.2} parent=5 // pred_check
      %p620 = pneg %p619
    $region38: #{haar_conv_forward.2} parent=5 // pred_check_branch
      %622 = sbr.rel (%p620) target = $region40
    $region39: #{haar_conv_forward.2} parent=5 // pred_region
      %s623 = ssub.s32 %s10, 2
      // Predicated region
      $region41: #{haar_conv_forward.2} parent=39 // pred_check
        %p624 = pneg %p65
      $region42: #{haar_conv_forward.2} parent=39 // pred_check_branch
        %626 = sbr.rel (%p624) target = $region44
      $region43: #{haar_conv_forward.2} parent=39 // pred_region
        %p627 = scmp.lt.s32.totalorder %s16, 1
        %s628 = scalar_select %p627, %s16, 1
        %s629 = smul.addr %s628, 72
        %s630 = smul.addr %s629, 8
        %s631 = scalar_lea.vmem %s1, %s630
      $region44: #{haar_conv_forward.2} parent=39 // pred_fallthru
        _
      // Predicated region
      $region45: #{haar_conv_forward.2} parent=39 // pred_check
        %p632 = pneg %p91
      $region46: #{haar_conv_forward.2} parent=39 // pred_check_branch
        %634 = sbr.rel (%p632) target = $region48
      $region47: #{haar_conv_forward.2} parent=39 // pred_region
        %p635 = scmp.lt.s32.totalorder %s16, 1
        %s636 = scalar_select %p635, %s16, 1
        %s637 = smul.addr %s636, 72
        %s638 = smul.addr %s637, 8
        %s639 = scalar_lea.vmem %s2, %s638
      $region48: #{haar_conv_forward.2} parent=39 // pred_fallthru
        _
      // Predicated region
      $region49: #{haar_conv_forward.2} parent=39 // pred_check
        %p640 = pneg %p117
      $region50: #{haar_conv_forward.2} parent=39 // pred_check_branch
        %642 = sbr.rel (%p640) target = $region52
      $region51: #{haar_conv_forward.2} parent=39 // pred_region
        %p643 = scmp.lt.s32.totalorder %s16, 1
        %s644 = scalar_select %p643, %s16, 1
        %s645 = scalar_lea.vmem %s3, %s644
      $region52: #{haar_conv_forward.2} parent=39 // pred_fallthru
        _
    $region40: #{haar_conv_forward.2} parent=5 // pred_fallthru
      _
  $region6: #{haar_conv_forward.2} parent=0 // loop_footer
    %s14 = sadd.s32 1, %s10
  $region7: #{haar_conv_forward.2} parent=0 // loop_footer_branch
    %9 = sbr.rel target = $region3
  $region8: #{haar_conv_forward.2} parent=0 // loop_exit
    _

// kernel: haar_conv_forward.3
$region0: #{haar_conv_forward.3}
  #allocation0 [shape = 'u32[]', space=smem, size = 0x4, offset = 0x4, fixed_abs, tag = 'smem constant byte address 0x4 - core index']
  #allocation1 [shape = 'u32[72,128]{1,0:T(1,128)}', space=vmem, size = 0x9000, scoped, tag = 'internal scratch']
  %s0 = inlined_call_operand.vmem [shape: f32[2,4,9,9,8], index: 0, kind: input, shape index: {}]
  %s1 = inlined_call_operand.vmem [shape: f32[2,4,9,9,8], index: 1, kind: input, shape index: {}]
  %s2 = inlined_call_operand.vmem [shape: f32[2,8,1], index: 2, kind: input, shape index: {}]
  %s3 = inlined_call_operand.vmem [shape: f32[2,8,1], index: 3, kind: input, shape index: {}]
  %s4 = inlined_call_operand.vmem [shape: f32[3,3,8,8], index: 4, kind: input, shape index: {}]
  %s5 = inlined_call_operand.vmem [shape: f32[3,3,8,8], index: 5, kind: input, shape index: {}]
  %s6 = inlined_call_operand.vmem [shape: f32[1,8], index: 6, kind: input, shape index: {}]
  %s7 = inlined_call_operand.vmem [shape: f32[2,64,8], index: 7, kind: output, shape index: {}]
  %s8 = sld [smem:[#allocation0]]
  $region61: #{haar_conv_forward.3} parent=0
    _
  %s10 = ssub.s32 1, %s8
  %s11 = scalar_select 0, %s10, %s8
  loop: start=0, step=1, limit=4
  $region2: #{haar_conv_forward.3} parent=0 // loop_pre_header
    _
  $region3: #{haar_conv_forward.3} parent=0 // loop_header
    %s13 = sphi 0, %s17
    %p14 = scmp.ge.s32.totalorder %s13, 4
    %s23 = sphi 0, %s25
    %s26 = sphi 0, %s23
    %s27 = sphi 0, %s26
    %s43 = sphi 0, %s27
    %s49 = sphi 0, %s51
    %s52 = sphi 0, %s49
    %s53 = sphi 0, %s52
    %s69 = sphi 0, %s53
    %s75 = sphi 0, %s77
    %s78 = sphi 0, %s75
    %s79 = sphi 0, %s78
    %s95 = sphi 0, %s79
    %s101 = sphi 0, %s103
    %s104 = sphi 0, %s101
    %s105 = sphi 0, %s104
    %s121 = sphi 0, %s105
    %s125 = sphi 0, %s125
    %s127 = sphi 0, %s125
    %s128 = sphi 0, %s127
    %s142 = sphi 0, %s128
    %s146 = sphi 0, %s146
    %s148 = sphi 0, %s146
    %s149 = sphi 0, %s148
    %s163 = sphi 0, %s149
    %s167 = sphi 0, %s167
    %s169 = sphi 0, %s167
    %s170 = sphi 0, %s169
    %s184 = sphi 0, %s170
    %s190 = sphi 0, %s192
    %s193 = sphi 0, %s190
    %s194 = sphi 0, %s193
    %s210 = sphi 0, %s194
  $region4: #{haar_conv_forward.3} parent=0 // loop_header_branch
    %16 = sbr.rel (%p14) target = $region8
  $region5: #{haar_conv_forward.3} parent=0 // loop_body
    %s18 = ssub.s32 %s13, 1
    %s19 = ssub.s32 %s13, 2
    %s20 = sadd.s32 %s13, 1
    %s21 = ssub.s32 %s13, %s20
    %p22 = scmp.eq.s32.totalorder %s21, 0
    %s24 = sadd.s32 %s23, 1
    %s25 = scalar_select %p22, %s23, %s24
    %p28 = pneg %p22
    %p29 = scmp.eq.s32.totalorder %s13, 1
    %p30 = por %p28, %p29
    %p31 = scmp.ne.s32.totalorder %s23, %s26
    %p32 = scmp.eq.s32.totalorder %s13, 0
    %p33 = por %p31, %p32
    %p34 = scmp.ne.s32.totalorder %s23, %s26
    %p35 = scmp.eq.s32.totalorder %s18, 1
    %p36 = por %p34, %p35
    %p37 = scmp.ne.s32.totalorder %s26, %s27
    %p38 = scmp.eq.s32.totalorder %s18, 0
    %p39 = por %p37, %p38
    %p40 = scmp.ne.s32.totalorder %s26, %s27
    %p41 = scmp.eq.s32.totalorder %s19, 1
    %p42 = por %p40, %p41
    %p44 = scmp.ne.s32.totalorder %s27, %s43
    %p45 = scmp.eq.s32.totalorder %s19, 0
    %p46 = por %p44, %p45
    %s47 = ssub.s32 %s13, %s20
    %p48 = scmp.eq.s32.totalorder %s47, 0
    %s50 = sadd.s32 %s49, 1
    %s51 = scalar_select %p48, %s49, %s50
    %p54 = pneg %p48
    %p55 = scmp.eq.s32.totalorder %s13, 1
    %p56 = por %p54, %p55
    %p57 = scmp.ne.s32.totalorder %s49, %s52
    %p58 = scmp.eq.s32.totalorder %s13, 0
    %p59 = por %p57, %p58
    %p60 = scmp.ne.s32.totalorder %s49, %s52
    %p61 = scmp.eq.s32.totalorder %s18, 1
    %p62 = por %p60, %p61
    %p63 = scmp.ne.s32.totalorder %s52, %s53
    %p64 = scmp.eq.s32.totalorder %s18, 0
    %p65 = por %p63, %p64
    %p66 = scmp.ne.s32.totalorder %s52, %s53
    %p67 = scmp.eq.s32.totalorder %s19, 1
    %p68 = por %p66, %p67
    %p70 = scmp.ne.s32.totalorder %s53, %s69
    %p71 = scmp.eq.s32.totalorder %s19, 0
    %p72 = por %p70, %p71
    %s73 = ssub.s32 %s13, %s20
    %p74 = scmp.eq.s32.totalorder %s73, 0
    %s76 = sadd.s32 %s75, 1
    %s77 = scalar_select %p74, %s75, %s76
    %p80 = pneg %p74
    %p81 = scmp.eq.s32.totalorder %s13, 1
    %p82 = por %p80, %p81
    %p83 = scmp.ne.s32.totalorder %s75, %s78
    %p84 = scmp.eq.s32.totalorder %s13, 0
    %p85 = por %p83, %p84
    %p86 = scmp.ne.s32.totalorder %s75, %s78
    %p87 = scmp.eq.s32.totalorder %s18, 1
    %p88 = por %p86, %p87
    %p89 = scmp.ne.s32.totalorder %s78, %s79
    %p90 = scmp.eq.s32.totalorder %s18, 0
    %p91 = por %p89, %p90
    %p92 = scmp.ne.s32.totalorder %s78, %s79
    %p93 = scmp.eq.s32.totalorder %s19, 1
    %p94 = por %p92, %p93
    %p96 = scmp.ne.s32.totalorder %s79, %s95
    %p97 = scmp.eq.s32.totalorder %s19, 0
    %p98 = por %p96, %p97
    %s99 = ssub.s32 %s13, %s20
    %p100 = scmp.eq.s32.totalorder %s99, 0
    %s102 = sadd.s32 %s101, 1
    %s103 = scalar_select %p100, %s101, %s102
    %p106 = pneg %p100
    %p107 = scmp.eq.s32.totalorder %s13, 1
    %p108 = por %p106, %p107
    %p109 = scmp.ne.s32.totalorder %s101, %s104
    %p110 = scmp.eq.s32.totalorder %s13, 0
    %p111 = por %p109, %p110
    %p112 = scmp.ne.s32.totalorder %s101, %s104
    %p113 = scmp.eq.s32.totalorder %s18, 1
    %p114 = por %p112, %p113
    %p115 = scmp.ne.s32.totalorder %s104, %s105
    %p116 = scmp.eq.s32.totalorder %s18, 0
    %p117 = por %p115, %p116
    %p118 = scmp.ne.s32.totalorder %s104, %s105
    %p119 = scmp.eq.s32.totalorder %s19, 1
    %p120 = por %p118, %p119
    %p122 = scmp.ne.s32.totalorder %s105, %s121
    %p123 = scmp.eq.s32.totalorder %s19, 0
    %p124 = por %p122, %p123
    %s126 = sadd.s32 %s125, 1
    %p129 = scmp.eq.s32.totalorder %s13, 1
    %p130 = scmp.ne.s32.totalorder %s125, %s127
    %p131 = scmp.eq.s32.totalorder %s13, 0
    %p132 = por %p130, %p131
    %p133 = scmp.ne.s32.totalorder %s125, %s127
    %p134 = scmp.eq.s32.totalorder %s18, 1
    %p135 = por %p133, %p134
    %p136 = scmp.ne.s32.totalorder %s127, %s128
    %p137 = scmp.eq.s32.totalorder %s18, 0
    %p138 = por %p136, %p137
    %p139 = scmp.ne.s32.totalorder %s127, %s128
    %p140 = scmp.eq.s32.totalorder %s19, 1
    %p141 = por %p139, %p140
    %p143 = scmp.ne.s32.totalorder %s128, %s142
    %p144 = scmp.eq.s32.totalorder %s19, 0
    %p145 = por %p143, %p144
    %s147 = sadd.s32 %s146, 1
    %p150 = scmp.eq.s32.totalorder %s13, 1
    %p151 = scmp.ne.s32.totalorder %s146, %s148
    %p152 = scmp.eq.s32.totalorder %s13, 0
    %p153 = por %p151, %p152
    %p154 = scmp.ne.s32.totalorder %s146, %s148
    %p155 = scmp.eq.s32.totalorder %s18, 1
    %p156 = por %p154, %p155
    %p157 = scmp.ne.s32.totalorder %s148, %s149
    %p158 = scmp.eq.s32.totalorder %s18, 0
    %p159 = por %p157, %p158
    %p160 = scmp.ne.s32.totalorder %s148, %s149
    %p161 = scmp.eq.s32.totalorder %s19, 1
    %p162 = por %p160, %p161
    %p164 = scmp.ne.s32.totalorder %s149, %s163
    %p165 = scmp.eq.s32.totalorder %s19, 0
    %p166 = por %p164, %p165
    %s168 = sadd.s32 %s167, 1
    %p171 = scmp.eq.s32.totalorder %s13, 1
    %p172 = scmp.ne.s32.totalorder %s167, %s169
    %p173 = scmp.eq.s32.totalorder %s13, 0
    %p174 = por %p172, %p173
    %p175 = scmp.ne.s32.totalorder %s167, %s169
    %p176 = scmp.eq.s32.totalorder %s18, 1
    %p177 = por %p175, %p176
    %p178 = scmp.ne.s32.totalorder %s169, %s170
    %p179 = scmp.eq.s32.totalorder %s18, 0
    %p180 = por %p178, %p179
    %p181 = scmp.ne.s32.totalorder %s169, %s170
    %p182 = scmp.eq.s32.totalorder %s19, 1
    %p183 = por %p181, %p182
    %p185 = scmp.ne.s32.totalorder %s170, %s184
    %p186 = scmp.eq.s32.totalorder %s19, 0
    %p187 = por %p185, %p186
    %s188 = ssub.s32 %s13, %s20
    %p189 = scmp.eq.s32.totalorder %s188, 0
    %s191 = sadd.s32 %s190, 1
    %s192 = scalar_select %p189, %s190, %s191
    %p195 = pneg %p189
    %p196 = scmp.eq.s32.totalorder %s13, 1
    %p197 = por %p195, %p196
    %p198 = scmp.ne.s32.totalorder %s190, %s193
    %p199 = scmp.eq.s32.totalorder %s13, 0
    %p200 = por %p198, %p199
    %p201 = scmp.ne.s32.totalorder %s190, %s193
    %p202 = scmp.eq.s32.totalorder %s18, 1
    %p203 = por %p201, %p202
    %p204 = scmp.ne.s32.totalorder %s193, %s194
    %p205 = scmp.eq.s32.totalorder %s18, 0
    %p206 = por %p204, %p205
    %p207 = scmp.ne.s32.totalorder %s193, %s194
    %p208 = scmp.eq.s32.totalorder %s19, 1
    %p209 = por %p207, %p208
    %p211 = scmp.ne.s32.totalorder %s194, %s210
    %p212 = scmp.eq.s32.totalorder %s19, 0
    %p213 = por %p211, %p212
    %p214 = scmp.le.s32.totalorder 1, %s13
    %p215 = scmp.lt.s32.totalorder %s13, 3
    %p216 = pnand %p214, %p215
    %p217 = pneg %p216
    // Predicated region
    $region9: #{haar_conv_forward.3} parent=5 // pred_check
      _
    $region10: #{haar_conv_forward.3} parent=5 // pred_check_branch
      %219 = sbr.rel (%p216) target = $region12
    $region11: #{haar_conv_forward.3} parent=5 // pred_region
      %s220 = ssub.s32 %s13, 1
      // Predicated region
      $region13: #{haar_conv_forward.3} parent=11 // pred_check
        %p221 = pneg %p138
      $region14: #{haar_conv_forward.3} parent=11 // pred_check_branch
        %223 = sbr.rel (%p221) target = $region16
      $region15: #{haar_conv_forward.3} parent=11 // pred_region
        _
      $region16: #{haar_conv_forward.3} parent=11 // pred_fallthru
        _
      // Predicated region
      $region17: #{haar_conv_forward.3} parent=11 // pred_check
        %p224 = pneg %p159
      $region18: #{haar_conv_forward.3} parent=11 // pred_check_branch
        %226 = sbr.rel (%p224) target = $region20
      $region19: #{haar_conv_forward.3} parent=11 // pred_region
        _
      $region20: #{haar_conv_forward.3} parent=11 // pred_fallthru
        _
      // Predicated region
      $region21: #{haar_conv_forward.3} parent=11 // pred_check
        %p227 = pneg %p180
      $region22: #{haar_conv_forward.3} parent=11 // pred_check_branch
        %229 = sbr.rel (%p227) target = $region24
      $region23: #{haar_conv_forward.3} parent=11 // pred_region
        _
      $region24: #{haar_conv_forward.3} parent=11 // pred_fallthru
        _
    $region12: #{haar_conv_forward.3} parent=5 // pred_fallthru
      _
    %p230 = scmp.lt.s32.totalorder %s13, 2
    // Predicated region
    $region25: #{haar_conv_forward.3} parent=5 // pred_check
      %p231 = pneg %p230
    $region26: #{haar_conv_forward.3} parent=5 // pred_check_branch
      %233 = sbr.rel (%p231) target = $region28
    $region27: #{haar_conv_forward.3} parent=5 // pred_region
      // Predicated region
      $region29: #{haar_conv_forward.3} parent=27 // pred_check
        %p234 = pneg %p33
      $region30: #{haar_conv_forward.3} parent=27 // pred_check_branch
        %236 = sbr.rel (%p234) target = $region32
      $region31: #{haar_conv_forward.3} parent=27 // pred_region
        %p237 = scmp.lt.s32.totalorder %s13, 1
        %s238 = scalar_select %p237, %s13, 1
        %s239 = smul.addr %s238, 72
        %s240 = smul.addr %s239, 8
        %s241 = scalar_lea.vmem %s0, %s240
      $region32: #{haar_conv_forward.3} parent=27 // pred_fallthru
        _
      // Predicated region
      $region33: #{haar_conv_forward.3} parent=27 // pred_check
        %p242 = pneg %p59
      $region34: #{haar_conv_forward.3} parent=27 // pred_check_branch
        %244 = sbr.rel (%p242) target = $region36
      $region35: #{haar_conv_forward.3} parent=27 // pred_region
        %p245 = scmp.lt.s32.totalorder %s13, 1
        %s246 = scalar_select %p245, %s13, 1
        %s247 = smul.addr %s246, 72
        %s248 = smul.addr %s247, 8
        %s249 = scalar_lea.vmem %s1, %s248
      $region36: #{haar_conv_forward.3} parent=27 // pred_fallthru
        _
      // Predicated region
      $region37: #{haar_conv_forward.3} parent=27 // pred_check
        %p250 = pneg %p85
      $region38: #{haar_conv_forward.3} parent=27 // pred_check_branch
        %252 = sbr.rel (%p250) target = $region40
      $region39: #{haar_conv_forward.3} parent=27 // pred_region
        %p253 = scmp.lt.s32.totalorder %s13, 1
        %s254 = scalar_select %p253, %s13, 1
        %s255 = smul.addr %s254, 8
        %s256 = scalar_lea.vmem %s2, %s255
      $region40: #{haar_conv_forward.3} parent=27 // pred_fallthru
        _
      // Predicated region
      $region41: #{haar_conv_forward.3} parent=27 // pred_check
        %p257 = pneg %p111
      $region42: #{haar_conv_forward.3} parent=27 // pred_check_branch
        %259 = sbr.rel (%p257) target = $region44
      $region43: #{haar_conv_forward.3} parent=27 // pred_region
        %p260 = scmp.lt.s32.totalorder %s13, 1
        %s261 = scalar_select %p260, %s13, 1
        %s262 = smul.addr %s261, 8
        %s263 = scalar_lea.vmem %s3, %s262
      $region44: #{haar_conv_forward.3} parent=27 // pred_fallthru
        _
    $region28: #{haar_conv_forward.3} parent=5 // pred_fallthru
      _
    %p264 = scmp.le.s32.totalorder 1, %s13
    %p265 = scmp.lt.s32.totalorder %s13, 3
    %p266 = pnand %p264, %p265
    %p267 = pneg %p266
    // Predicated region
    $region45: #{haar_conv_forward.3} parent=5 // pred_check
      _
    $region46: #{haar_conv_forward.3} parent=5 // pred_check_branch
      %269 = sbr.rel (%p266) target = $region48
    $region47: #{haar_conv_forward.3} parent=5 // pred_region
      %s270 = ssub.s32 %s13, 1
      %p271 = scmp.lt.s32.totalorder %s18, 1
      %s272 = scalar_select %p271, %s18, 1
      %s273 = smul.addr %s272, 72
      %s274 = smul.addr %s273, 8
      %s275 = scalar_lea.vmem %s0, %s274
      %p276 = pneg %p39
      %p277 = pneg %p36
      %p278 = scmp.lt.s32.totalorder %s18, 1
      %s279 = scalar_select %p278, %s18, 1
      %s280 = smul.addr %s279, 72
      %s281 = smul.addr %s280, 8
      %s282 = scalar_lea.vmem %s1, %s281
      %p283 = pneg %p65
      %p284 = pneg %p62
      %p285 = scmp.lt.s32.totalorder %s18, 1
      %s286 = scalar_select %p285, %s18, 1
      %s287 = smul.addr %s286, 8
      %s288 = scalar_lea.vmem %s2, %s287
      %p289 = pneg %p91
      %p290 = pneg %p88
      %p291 = scmp.lt.s32.totalorder %s18, 1
      %s292 = scalar_select %p291, %s18, 1
      %s293 = smul.addr %s292, 8
      %s294 = scalar_lea.vmem %s3, %s293
      %p295 = pneg %p117
      %p296 = pneg %p114
      %p297 = pneg %p138
      %p298 = pneg %p135
      %p299 = pneg %p159
      %p300 = pneg %p156
      %p301 = pneg %p180
      %p302 = pneg %p177
      %p303 = pneg %p206
      %p304 = pneg %p203
      %p305 = scmp.lt.s32.totalorder %s18, 1
      %s306 = scalar_select %p305, %s18, 1
      %s307 = smul.addr %s306, 8
      %s308 = smul.addr %s307, 8
      %s309 = scalar_lea.vmem %s7, %s308
      %p310 = scmp.lt.s32.totalorder %s18, 1
      %s311 = scalar_select %p310, %s18, 1
      %s312 = smul.addr %s311, 72
      %s313 = smul.addr %s312, 8
      %s314 = scalar_lea.vmem %s0, %s313
      %p315 = scmp.lt.s32.totalorder %s18, 1
      %s316 = scalar_select %p315, %s18, 1
      %s317 = smul.addr %s316, 72
      %s318 = smul.addr %s317, 8
      %s319 = scalar_lea.vmem %s1, %s318
      %p320 = scmp.lt.s32.totalorder %s18, 1
      %s321 = scalar_select %p320, %s18, 1
      %s322 = smul.addr %s321, 8
      %s323 = scalar_lea.vmem %s2, %s322
      %p324 = scmp.lt.s32.totalorder %s18, 1
      %s325 = scalar_select %p324, %s18, 1
      %s326 = smul.addr %s325, 8
      %s327 = scalar_lea.vmem %s3, %s326
      %p328 = scmp.lt.s32.totalorder %s18, 1
      %s329 = scalar_select %p328, %s18, 1
      %s330 = smul.addr %s329, 8
      %s331 = smul.addr %s330, 8
      %s332 = scalar_lea.vmem %s7, %s331
      %v333 = vld [vmem:[%s4] sm:$0xff]
      %v334 = vld [vmem:[%s4 + $0x8] sm:$0xff]
      %v335 = vld [vmem:[%s4 + $0x10] sm:$0xff]
      %v336 = vld [vmem:[%s4 + $0x18] sm:$0xff]
      %v337 = vld [vmem:[%s4 + $0x20] sm:$0xff]
      %v338 = vld [vmem:[%s4 + $0x28] sm:$0xff]
      %v339 = vld [vmem:[%s4 + $0x30] sm:$0xff]
      %v340 = vld [vmem:[%s4 + $0x38] sm:$0xff]
      %v341 = vld [vmem:[%s4 + $0x40] sm:$0xff]
      %v342 = vld [vmem:[%s323] sm:$0xff]
      %344 = vset.pattern.permute.xlu0 0
      %345 = vperm.xlu0 %344, %v342
      %v346 = vpop.permute.xlu0 %345
      %v348 = vmul.f32 %v333, %v346
      %v349 = vmul.f32 %v334, %v346
      %v350 = vmul.f32 %v335, %v346
      %v351 = vmul.f32 %v336, %v346
      %v352 = vmul.f32 %v337, %v346
      %v353 = vmul.f32 %v338, %v346
      %v354 = vmul.f32 %v339, %v346
      %v355 = vmul.f32 %v340, %v346
      %v356 = vmul.f32 %v341, %v346
      %v357 = vld [vmem:[%s5] sm:$0xff]
      %v358 = vld [vmem:[%s5 + $0x8] sm:$0xff]
      %v359 = vld [vmem:[%s5 + $0x10] sm:$0xff]
      %v360 = vld [vmem:[%s5 + $0x18] sm:$0xff]
      %v361 = vld [vmem:[%s5 + $0x20] sm:$0xff]
      %v362 = vld [vmem:[%s5 + $0x28] sm:$0xff]
      %v363 = vld [vmem:[%s5 + $0x30] sm:$0xff]
      %v364 = vld [vmem:[%s5 + $0x38] sm:$0xff]
      %v365 = vld [vmem:[%s5 + $0x40] sm:$0xff]
      %v366 = vld [vmem:[%s327] sm:$0xff]
      %368 = vset.pattern.permute.xlu0 0
      %369 = vperm.xlu0 %368, %v366
      %v370 = vpop.permute.xlu0 %369
      %v372 = vmul.f32 %v357, %v370
      %v373 = vmul.f32 %v358, %v370
      %v374 = vmul.f32 %v359, %v370
      %v375 = vmul.f32 %v360, %v370
      %v376 = vmul.f32 %v361, %v370
      %v377 = vmul.f32 %v362, %v370
      %v378 = vmul.f32 %v363, %v370
      %v379 = vmul.f32 %v364, %v370
      %v380 = vmul.f32 %v365, %v370
      %v381 = vld [vmem:[%s314] sm:$0xff]
      %v382 = vld [vmem:[%s314 + $0x10] sm:$0xff]
      %v383 = vld [vmem:[%s314 + $0x20] sm:$0xff]
      %v384 = vld [vmem:[%s314 + $0x30] sm:$0xff]
      %v385 = vld [vmem:[%s314 + $0x40] sm:$0xff]
      %v386 = vld [vmem:[%s314 + $0x50] sm:$0xff]
      %v387 = vld [vmem:[%s314 + $0x60] sm:$0xff]
      %v388 = vld [vmem:[%s314 + $0x70] sm:$0xff]
      %v389 = vld [vmem:[%s319] sm:$0xff]
      %v390 = vld [vmem:[%s319 + $0x10] sm:$0xff]
      %v391 = vld [vmem:[%s319 + $0x20] sm:$0xff]
      %v392 = vld [vmem:[%s319 + $0x30] sm:$0xff]
      %v393 = vld [vmem:[%s319 + $0x40] sm:$0xff]
      %v394 = vld [vmem:[%s319 + $0x50] sm:$0xff]
      %v395 = vld [vmem:[%s319 + $0x60] sm:$0xff]
      %v396 = vld [vmem:[%s319 + $0x70] sm:$0xff]
      %vm397 = vcmask 64512
      %v399 = vsel %vm397, %v389, 0
      %v402 = vsel %vm397, %v390, 0
      %v405 = vsel %vm397, %v391, 0
      %v408 = vsel %vm397, %v392, 0
      %v411 = vsel %vm397, %v393, 0
      %v414 = vsel %vm397, %v394, 0
      %v417 = vsel %vm397, %v395, 0
      %v420 = vsel %vm397, %v396, 0
      %422 = vmatpush.msra.mxu0 0.0
      %423 = vmatpush.msra.mxu0 0.0
      %424 = vmatpush.msra.mxu0 0.0
      %425 = vmatpush.msra.mxu0 0.0
      %426 = vmatpush.msra.mxu0 0.0
      %427 = vmatpush.msra.mxu0 0.0
      %428 = vmatpush.msra.mxu0 0.0
      %429 = vmatpush.msra.mxu0 0.0
      %430 = vmatpush.msra.mxu0 0.0
      %431 = vmatpush.msra.mxu0 0.0
      %432 = vmatpush.msra.mxu0 0.0
      %433 = vmatpush.msra.mxu0 0.0
      %434 = vmatpush.msra.mxu0 0.0
      %435 = vmatpush.msra.mxu0 0.0
      %436 = vmatpush.msra.mxu0 0.0
      %437 = vmatpush.msra.mxu0 %v372
      %438 = vmatmul.f32.gmra.mxu0 %v399
      %v439 = vpop.f32.mrf.mxu0
      %v440 = vadd.f32 0.0, %v439
      %441 = vmatmul.f32.gmra.mxu0 %v402
      %v442 = vpop.f32.mrf.mxu0
      %v443 = vadd.f32 0.0, %v442
      %444 = vmatmul.f32.gmra.mxu0 %v405
      %v445 = vpop.f32.mrf.mxu0
      %v446 = vadd.f32 0.0, %v445
      %447 = vmatmul.f32.gmra.mxu0 %v408
      %v448 = vpop.f32.mrf.mxu0
      %v449 = vadd.f32 0.0, %v448
      %450 = vmatmul.f32.gmra.mxu0 %v411
      %v451 = vpop.f32.mrf.mxu0
      %v452 = vadd.f32 0.0, %v451
      %453 = vmatmul.f32.gmra.mxu0 %v414
      %v454 = vpop.f32.mrf.mxu0
      %v455 = vadd.f32 0.0, %v454
      %456 = vmatmul.f32.gmra.mxu0 %v417
      %v457 = vpop.f32.mrf.mxu0
      %v458 = vadd.f32 0.0, %v457
      %459 = vmatmul.f32.gmra.mxu0 %v420
      %v460 = vpop.f32.mrf.mxu0
      %v461 = vadd.f32 0.0, %v460
      %462 = vdwg.mxu0
      %v464 = vsel %vm397, %v381, 0
      %v467 = vsel %vm397, %v382, 0
      %v470 = vsel %vm397, %v383, 0
      %v473 = vsel %vm397, %v384, 0
      %v476 = vsel %vm397, %v385, 0
      %v479 = vsel %vm397, %v386, 0
      %v482 = vsel %vm397, %v387, 0
      %v485 = vsel %vm397, %v388, 0
      %487 = vmatpush.msra.mxu0 0.0
      %488 = vmatpush.msra.mxu0 0.0
      %489 = vmatpush.msra.mxu0 0.0
      %490 = vmatpush.msra.mxu0 0.0
      %491 = vmatpush.msra.mxu0 0.0
      %492 = vmatpush.msra.mxu0 0.0
      %493 = vmatpush.msra.mxu0 0.0
      %494 = vmatpush.msra.mxu0 0.0
      %495 = vmatpush.msra.mxu0 0.0
      %496 = vmatpush.msra.mxu0 0.0
      %497 = vmatpush.msra.mxu0 0.0
      %498 = vmatpush.msra.mxu0 0.0
      %499 = vmatpush.msra.mxu0 0.0
      %500 = vmatpush.msra.mxu0 0.0
      %501 = vmatpush.msra.mxu0 0.0
      %502 = vmatpush.msra.mxu0 %v348
      %503 = vmatmul.f32.gmra.mxu0 %v464
      %v504 = vpop.f32.mrf.mxu0
      %v505 = vadd.f32 %v440, %v504
      %506 = vmatmul.f32.gmra.mxu0 %v467
      %v507 = vpop.f32.mrf.mxu0
      %v508 = vadd.f32 %v443, %v507
      %509 = vmatmul.f32.gmra.mxu0 %v470
      %v510 = vpop.f32.mrf.mxu0
      %v511 = vadd.f32 %v446, %v510
      %512 = vmatmul.f32.gmra.mxu0 %v473
      %v513 = vpop.f32.mrf.mxu0
      %v514 = vadd.f32 %v449, %v513
      %515 = vmatmul.f32.gmra.mxu0 %v476
      %v516 = vpop.f32.mrf.mxu0
      %v517 = vadd.f32 %v452, %v516
      %518 = vmatmul.f32.gmra.mxu0 %v479
      %v519 = vpop.f32.mrf.mxu0
      %v520 = vadd.f32 %v455, %v519
      %521 = vmatmul.f32.gmra.mxu0 %v482
      %v522 = vpop.f32.mrf.mxu0
      %v523 = vadd.f32 %v458, %v522
      %524 = vmatmul.f32.gmra.mxu0 %v485
      %v525 = vpop.f32.mrf.mxu0
      %v526 = vadd.f32 %v461, %v525
      %527 = vdwg.mxu0
      %s528 = scalar_lea.vmem %s314, 144
      %v529 = vld [vmem:[%s528] sm:$0xff]
      %v530 = vld [vmem:[%s528 + $0x10] sm:$0xff]
      %v531 = vld [vmem:[%s528 + $0x20] sm:$0xff]
      %v532 = vld [vmem:[%s528 + $0x30] sm:$0xff]
      %v533 = vld [vmem:[%s528 + $0x40] sm:$0xff]
      %v534 = vld [vmem:[%s528 + $0x50] sm:$0xff]
      %v535 = vld [vmem:[%s528 + $0x60] sm:$0xff]
      %v536 = vld [vmem:[%s528 + $0x70] sm:$0xff]
      %s537 = scalar_lea.vmem %s319, 144
      %v538 = vld [vmem:[%s537] sm:$0xff]
      %v539 = vld [vmem:[%s537 + $0x10] sm:$0xff]
      %v540 = vld [vmem:[%s537 + $0x20] sm:$0xff]
      %v541 = vld [vmem:[%s537 + $0x30] sm:$0xff]
      %v542 = vld [vmem:[%s537 + $0x40] sm:$0xff]
      %v543 = vld [vmem:[%s537 + $0x50] sm:$0xff]
      %v544 = vld [vmem:[%s537 + $0x60] sm:$0xff]
      %v545 = vld [vmem:[%s537 + $0x70] sm:$0xff]
      %v547 = vsel %vm397, %v529, 0
      %v550 = vsel %vm397, %v530, 0
      %v553 = vsel %vm397, %v531, 0
      %v556 = vsel %vm397, %v532, 0
      %v559 = vsel %vm397, %v533, 0
      %v562 = vsel %vm397, %v534, 0
      %v565 = vsel %vm397, %v535, 0
      %v568 = vsel %vm397, %v536, 0
      %570 = vmatpush.msra.mxu0 0.0
      %571 = vmatpush.msra.mxu0 0.0
      %572 = vmatpush.msra.mxu0 0.0
      %573 = vmatpush.msra.mxu0 0.0
      %574 = vmatpush.msra.mxu0 0.0
      %575 = vmatpush.msra.mxu0 0.0
      %576 = vmatpush.msra.mxu0 0.0
      %577 = vmatpush.msra.mxu0 0.0
      %578 = vmatpush.msra.mxu0 0.0
      %579 = vmatpush.msra.mxu0 0.0
      %580 = vmatpush.msra.mxu0 0.0
      %581 = vmatpush.msra.mxu0 0.0
      %582 = vmatpush.msra.mxu0 0.0
      %583 = vmatpush.msra.mxu0 0.0
      %584 = vmatpush.msra.mxu0 0.0
      %585 = vmatpush.msra.mxu0 %v349
      %586 = vmatmul.f32.gmra.mxu0 %v547
      %v587 = vpop.f32.mrf.mxu0
      %v588 = vadd.f32 0.0, %v587
      %589 = vmatmul.f32.gmra.mxu0 %v550
      %v590 = vpop.f32.mrf.mxu0
      %v591 = vadd.f32 0.0, %v590
      %592 = vmatmul.f32.gmra.mxu0 %v553
      %v593 = vpop.f32.mrf.mxu0
      %v594 = vadd.f32 0.0, %v593
      %595 = vmatmul.f32.gmra.mxu0 %v556
      %v596 = vpop.f32.mrf.mxu0
      %v597 = vadd.f32 0.0, %v596
      %598 = vmatmul.f32.gmra.mxu0 %v559
      %v599 = vpop.f32.mrf.mxu0
      %v600 = vadd.f32 0.0, %v599
      %601 = vmatmul.f32.gmra.mxu0 %v562
      %v602 = vpop.f32.mrf.mxu0
      %v603 = vadd.f32 0.0, %v602
      %604 = vmatmul.f32.gmra.mxu0 %v565
      %v605 = vpop.f32.mrf.mxu0
      %v606 = vadd.f32 0.0, %v605
      %607 = vmatmul.f32.gmra.mxu0 %v568
      %v608 = vpop.f32.mrf.mxu0
      %v609 = vadd.f32 0.0, %v608
      %610 = vdwg.mxu0
      %v611 = vadd.f32 %v505, %v588
      %v612 = vadd.f32 %v508, %v591
      %v613 = vadd.f32 %v511, %v594
      %v614 = vadd.f32 %v514, %v597
      %v615 = vadd.f32 %v517, %v600
      %v616 = vadd.f32 %v520, %v603
      %v617 = vadd.f32 %v523, %v606
      %v618 = vadd.f32 %v526, %v609
      %v620 = vsel %vm397, %v538, 0
      %v623 = vsel %vm397, %v539, 0
      %v626 = vsel %vm397, %v540, 0
      %v629 = vsel %vm397, %v541, 0
      %v632 = vsel %vm397, %v542, 0
      %v635 = vsel %vm397, %v543, 0
      %v638 = vsel %vm397, %v544, 0
      %v641 = vsel %vm397, %v545, 0
      %643 = vmatpush.msra.mxu0 0.0
      %644 = vmatpush.msra.mxu0 0.0
      %645 = vmatpush.msra.mxu0 0.0
      %646 = vmatpush.msra.mxu0 0.0
      %647 = vmatpush.msra.mxu0 0.0
      %648 = vmatpush.msra.mxu0 0.0
      %649 = vmatpush.msra.mxu0 0.0
      %650 = vmatpush.msra.mxu0 0.0
      %651 = vmatpush.msra.mxu0 0.0
      %652 = vmatpush.msra.mxu0 0.0
      %653 = vmatpush.msra.mxu0 0.0
      %654 = vmatpush.msra.mxu0 0.0
      %655 = vmatpush.msra.mxu0 0.0
      %656 = vmatpush.msra.mxu0 0.0
      %657 = vmatpush.msra.mxu0 0.0
      %658 = vmatpush.msra.mxu0 %v373
      %659 = vmatmul.f32.gmra.mxu0 %v620
      %v660 = vpop.f32.mrf.mxu0
      %v661 = vadd.f32 0.0, %v660
      %662 = vmatmul.f32.gmra.mxu0 %v623
      %v663 = vpop.f32.mrf.mxu0
      %v664 = vadd.f32 0.0, %v663
      %665 = vmatmul.f32.gmra.mxu0 %v626
      %v666 = vpop.f32.mrf.mxu0
      %v667 = vadd.f32 0.0, %v666
      %668 = vmatmul.f32.gmra.mxu0 %v629
      %v669 = vpop.f32.mrf.mxu0
      %v670 = vadd.f32 0.0, %v669
      %671 = vmatmul.f32.gmra.mxu0 %v632
      %v672 = vpop.f32.mrf.mxu0
      %v673 = vadd.f32 0.0, %v672
      %674 = vmatmul.f32.gmra.mxu0 %v635
      %v675 = vpop.f32.mrf.mxu0
      %v676 = vadd.f32 0.0, %v675
      %677 = vmatmul.f32.gmra.mxu0 %v638
      %v678 = vpop.f32.mrf.mxu0
      %v679 = vadd.f32 0.0, %v678
      %680 = vmatmul.f32.gmra.mxu0 %v641
      %v681 = vpop.f32.mrf.mxu0
      %v682 = vadd.f32 0.0, %v681
      %683 = vdwg.mxu0
      %v684 = vadd.f32 %v611, %v661
      %v685 = vadd.f32 %v612, %v664
      %v686 = vadd.f32 %v613, %v667
      %v687 = vadd.f32 %v614, %v670
      %v688 = vadd.f32 %v615, %v673
      %v689 = vadd.f32 %v616, %v676
      %v690 = vadd.f32 %v617, %v679
      %v691 = vadd.f32 %v618, %v682
      %v692 = vld [vmem:[%s314 + $0x1] sm:$0xff]
      %v693 = vld [vmem:[%s314 + $0x11] sm:$0xff]
      %v694 = vld [vmem:[%s314 + $0x21] sm:$0xff]
      %v695 = vld [vmem:[%s314 + $0x31] sm:$0xff]
      %v696 = vld [vmem:[%s314 + $0x41] sm:$0xff]
      %v697 = vld [vmem:[%s314 + $0x51] sm:$0xff]
      %v698 = vld [vmem:[%s314 + $0x61] sm:$0xff]
      %v699 = vld [vmem:[%s314 + $0x71] sm:$0xff]
      %v700 = vld [vmem:[%s319 + $0x1] sm:$0xff]
      %v701 = vld [vmem:[%s319 + $0x11] sm:$0xff]
      %v702 = vld [vmem:[%s319 + $0x21] sm:$0xff]
      %v703 = vld [vmem:[%s319 + $0x31] sm:$0xff]
      %v704 = vld [vmem:[%s319 + $0x41] sm:$0xff]
      %v705 = vld [vmem:[%s319 + $0x51] sm:$0xff]
      %v706 = vld [vmem:[%s319 + $0x61] sm:$0xff]
      %v707 = vld [vmem:[%s319 + $0x71] sm:$0xff]
      %v709 = vsel %vm397, %v692, 0
      %v712 = vsel %vm397, %v693, 0
      %v715 = vsel %vm397, %v694, 0
      %v718 = vsel %vm397, %v695, 0
      %v721 = vsel %vm397, %v696, 0
      %v724 = vsel %vm397, %v697, 0
      %v727 = vsel %vm397, %v698, 0
      %v730 = vsel %vm397, %v699, 0
      %732 = vmatpush.msra.mxu0 0.0
      %733 = vmatpush.msra.mxu0 0.0
      %734 = vmatpush.msra.mxu0 0.0
      %735 = vmatpush.msra.mxu0 0.0
      %736 = vmatpush.msra.mxu0 0.0
      %737 = vmatpush.msra.mxu0 0.0
      %738 = vmatpush.msra.mxu0 0.0
      %739 = vmatpush.msra.mxu0 0.0
      %740 = vmatpush.msra.mxu0 0.0
      %741 = vmatpush.msra.mxu0 0.0
      %742 = vmatpush.msra.mxu0 0.0
      %743 = vmatpush.msra.mxu0 0.0
      %744 = vmatpush.msra.mxu0 0.0
      %745 = vmatpush.msra.mxu0 0.0
      %746 = vmatpush.msra.mxu0 0.0
      %747 = vmatpush.msra.mxu0 %v350
      %748 = vmatmul.f32.gmra.mxu0 %v709
      %v749 = vpop.f32.mrf.mxu0
      %v750 = vadd.f32 0.0, %v749
      %751 = vmatmul.f32.gmra.mxu0 %v712
      %v752 = vpop.f32.mrf.mxu0
      %v753 = vadd.f32 0.0, %v752
      %754 = vmatmul.f32.gmra.mxu0 %v715
      %v755 = vpop.f32.mrf.mxu0
      %v756 = vadd.f32 0.0, %v755
      %757 = vmatmul.f32.gmra.mxu0 %v718
      %v758 = vpop.f32.mrf.mxu0
      %v759 = vadd.f32 0.0, %v758
      %760 = vmatmul.f32.gmra.mxu0 %v721
      %v761 = vpop.f32.mrf.mxu0
      %v762 = vadd.f32 0.0, %v761
      %763 = vmatmul.f32.gmra.mxu0 %v724
      %v764 = vpop.f32.mrf.mxu0
      %v765 = vadd.f32 0.0, %v764
      %766 = vmatmul.f32.gmra.mxu0 %v727
      %v767 = vpop.f32.mrf.mxu0
      %v768 = vadd.f32 0.0, %v767
      %769 = vmatmul.f32.gmra.mxu0 %v730
      %v770 = vpop.f32.mrf.mxu0
      %v771 = vadd.f32 0.0, %v770
      %772 = vdwg.mxu0
      %v773 = vadd.f32 %v684, %v750
      %v774 = vadd.f32 %v685, %v753
      %v775 = vadd.f32 %v686, %v756
      %v776 = vadd.f32 %v687, %v759
      %v777 = vadd.f32 %v688, %v762
      %v778 = vadd.f32 %v689, %v765
      %v779 = vadd.f32 %v690, %v768
      %v780 = vadd.f32 %v691, %v771
      %v782 = vsel %vm397, %v700, 0
      %v785 = vsel %vm397, %v701, 0
      %v788 = vsel %vm397, %v702, 0
      %v791 = vsel %vm397, %v703, 0
      %v794 = vsel %vm397, %v704, 0
      %v797 = vsel %vm397, %v705, 0
      %v800 = vsel %vm397, %v706, 0
      %v803 = vsel %vm397, %v707, 0
      %805 = vmatpush.msra.mxu0 0.0
      %806 = vmatpush.msra.mxu0 0.0
      %807 = vmatpush.msra.mxu0 0.0
      %808 = vmatpush.msra.mxu0 0.0
      %809 = vmatpush.msra.mxu0 0.0
      %810 = vmatpush.msra.mxu0 0.0
      %811 = vmatpush.msra.mxu0 0.0
      %812 = vmatpush.msra.mxu0 0.0
      %813 = vmatpush.msra.mxu0 0.0
      %814 = vmatpush.msra.mxu0 0.0
      %815 = vmatpush.msra.mxu0 0.0
      %816 = vmatpush.msra.mxu0 0.0
      %817 = vmatpush.msra.mxu0 0.0
      %818 = vmatpush.msra.mxu0 0.0
      %819 = vmatpush.msra.mxu0 0.0
      %820 = vmatpush.msra.mxu0 %v374
      %821 = vmatmul.f32.gmra.mxu0 %v782
      %v822 = vpop.f32.mrf.mxu0
      %v823 = vadd.f32 0.0, %v822
      %824 = vmatmul.f32.gmra.mxu0 %v785
      %v825 = vpop.f32.mrf.mxu0
      %v826 = vadd.f32 0.0, %v825
      %827 = vmatmul.f32.gmra.mxu0 %v788
      %v828 = vpop.f32.mrf.mxu0
      %v829 = vadd.f32 0.0, %v828
      %830 = vmatmul.f32.gmra.mxu0 %v791
      %v831 = vpop.f32.mrf.mxu0
      %v832 = vadd.f32 0.0, %v831
      %833 = vmatmul.f32.gmra.mxu0 %v794
      %v834 = vpop.f32.mrf.mxu0
      %v835 = vadd.f32 0.0, %v834
      %836 = vmatmul.f32.gmra.mxu0 %v797
      %v837 = vpop.f32.mrf.mxu0
      %v838 = vadd.f32 0.0, %v837
      %839 = vmatmul.f32.gmra.mxu0 %v800
      %v840 = vpop.f32.mrf.mxu0
      %v841 = vadd.f32 0.0, %v840
      %842 = vmatmul.f32.gmra.mxu0 %v803
      %v843 = vpop.f32.mrf.mxu0
      %v844 = vadd.f32 0.0, %v843
      %845 = vdwg.mxu0
      %v846 = vadd.f32 %v773, %v823
      %v847 = vadd.f32 %v774, %v826
      %v848 = vadd.f32 %v775, %v829
      %v849 = vadd.f32 %v776, %v832
      %v850 = vadd.f32 %v777, %v835
      %v851 = vadd.f32 %v778, %v838
      %v852 = vadd.f32 %v779, %v841
      %v853 = vadd.f32 %v780, %v844
      %s854 = scalar_lea.vmem %s314, 288
      %v855 = vld [vmem:[%s854] sm:$0xff]
      %v856 = vld [vmem:[%s854 + $0x10] sm:$0xff]
      %v857 = vld [vmem:[%s854 + $0x20] sm:$0xff]
      %v858 = vld [vmem:[%s854 + $0x30] sm:$0xff]
      %v859 = vld [vmem:[%s854 + $0x40] sm:$0xff]
      %v860 = vld [vmem:[%s854 + $0x50] sm:$0xff]
      %v861 = vld [vmem:[%s854 + $0x60] sm:$0xff]
      %v862 = vld [vmem:[%s854 + $0x70] sm:$0xff]
      %s863 = scalar_lea.vmem %s319, 288
      %v864 = vld [vmem:[%s863] sm:$0xff]
      %v865 = vld [vmem:[%s863 + $0x10] sm:$0xff]
      %v866 = vld [vmem:[%s863 + $0x20] sm:$0xff]
      %v867 = vld [vmem:[%s863 + $0x30] sm:$0xff]
      %v868 = vld [vmem:[%s863 + $0x40] sm:$0xff]
      %v869 = vld [vmem:[%s863 + $0x50] sm:$0xff]
      %v870 = vld [vmem:[%s863 + $0x60] sm:$0xff]
      %v871 = vld [vmem:[%s863 + $0x70] sm:$0xff]
      %v873 = vsel %vm397, %v855, 0
      %v876 = vsel %vm397, %v856, 0
      %v879 = vsel %vm397, %v857, 0
      %v882 = vsel %vm397, %v858, 0
      %v885 = vsel %vm397, %v859, 0
      %v888 = vsel %vm397, %v860, 0
      %v891 = vsel %vm397, %v861, 0
      %v894 = vsel %vm397, %v862, 0
      %896 = vmatpush.msra.mxu0 0.0
      %897 = vmatpush.msra.mxu0 0.0
      %898 = vmatpush.msra.mxu0 0.0
      %899 = vmatpush.msra.mxu0 0.0
      %900 = vmatpush.msra.mxu0 0.0
      %901 = vmatpush.msra.mxu0 0.0
      %902 = vmatpush.msra.mxu0 0.0
      %903 = vmatpush.msra.mxu0 0.0
      %904 = vmatpush.msra.mxu0 0.0
      %905 = vmatpush.msra.mxu0 0.0
      %906 = vmatpush.msra.mxu0 0.0
      %907 = vmatpush.msra.mxu0 0.0
      %908 = vmatpush.msra.mxu0 0.0
      %909 = vmatpush.msra.mxu0 0.0
      %910 = vmatpush.msra.mxu0 0.0
      %911 = vmatpush.msra.mxu0 %v351
      %912 = vmatmul.f32.gmra.mxu0 %v873
      %v913 = vpop.f32.mrf.mxu0
      %v914 = vadd.f32 0.0, %v913
      %915 = vmatmul.f32.gmra.mxu0 %v876
      %v916 = vpop.f32.mrf.mxu0
      %v917 = vadd.f32 0.0, %v916
      %918 = vmatmul.f32.gmra.mxu0 %v879
      %v919 = vpop.f32.mrf.mxu0
      %v920 = vadd.f32 0.0, %v919
      %921 = vmatmul.f32.gmra.mxu0 %v882
      %v922 = vpop.f32.mrf.mxu0
      %v923 = vadd.f32 0.0, %v922
      %924 = vmatmul.f32.gmra.mxu0 %v885
      %v925 = vpop.f32.mrf.mxu0
      %v926 = vadd.f32 0.0, %v925
      %927 = vmatmul.f32.gmra.mxu0 %v888
      %v928 = vpop.f32.mrf.mxu0
      %v929 = vadd.f32 0.0, %v928
      %930 = vmatmul.f32.gmra.mxu0 %v891
      %v931 = vpop.f32.mrf.mxu0
      %v932 = vadd.f32 0.0, %v931
      %933 = vmatmul.f32.gmra.mxu0 %v894
      %v934 = vpop.f32.mrf.mxu0
      %v935 = vadd.f32 0.0, %v934
      %936 = vdwg.mxu0
      %v937 = vadd.f32 %v846, %v914
      %v938 = vadd.f32 %v847, %v917
      %v939 = vadd.f32 %v848, %v920
      %v940 = vadd.f32 %v849, %v923
      %v941 = vadd.f32 %v850, %v926
      %v942 = vadd.f32 %v851, %v929
      %v943 = vadd.f32 %v852, %v932
      %v944 = vadd.f32 %v853, %v935
      %v946 = vsel %vm397, %v864, 0
      %v949 = vsel %vm397, %v865, 0
      %v952 = vsel %vm397, %v866, 0
      %v955 = vsel %vm397, %v867, 0
      %v958 = vsel %vm397, %v868, 0
      %v961 = vsel %vm397, %v869, 0
      %v964 = vsel %vm397, %v870, 0
      %v967 = vsel %vm397, %v871, 0
      %969 = vmatpush.msra.mxu0 0.0
      %970 = vmatpush.msra.mxu0 0.0
      %971 = vmatpush.msra.mxu0 0.0
      %972 = vmatpush.msra.mxu0 0.0
      %973 = vmatpush.msra.mxu0 0.0
      %974 = vmatpush.msra.mxu0 0.0
      %975 = vmatpush.msra.mxu0 0.0
      %976 = vmatpush.msra.mxu0 0.0
      %977 = vmatpush.msra.mxu0 0.0
      %978 = vmatpush.msra.mxu0 0.0
      %979 = vmatpush.msra.mxu0 0.0
      %980 = vmatpush.msra.mxu0 0.0
      %981 = vmatpush.msra.mxu0 0.0
      %982 = vmatpush.msra.mxu0 0.0
      %983 = vmatpush.msra.mxu0 0.0
      %984 = vmatpush.msra.mxu0 %v375
      %985 = vmatmul.f32.gmra.mxu0 %v946
      %v986 = vpop.f32.mrf.mxu0
      %v987 = vadd.f32 0.0, %v986
      %988 = vmatmul.f32.gmra.mxu0 %v949
      %v989 = vpop.f32.mrf.mxu0
      %v990 = vadd.f32 0.0, %v989
      %991 = vmatmul.f32.gmra.mxu0 %v952
      %v992 = vpop.f32.mrf.mxu0
      %v993 = vadd.f32 0.0, %v992
      %994 = vmatmul.f32.gmra.mxu0 %v955
      %v995 = vpop.f32.mrf.mxu0
      %v996 = vadd.f32 0.0, %v995
      %997 = vmatmul.f32.gmra.mxu0 %v958
      %v998 = vpop.f32.mrf.mxu0
      %v999 = vadd.f32 0.0, %v998
      %1000 = vmatmul.f32.gmra.mxu0 %v961
      %v1001 = vpop.f32.mrf.mxu0
      %v1002 = vadd.f32 0.0, %v1001
      %1003 = vmatmul.f32.gmra.mxu0 %v964
      %v1004 = vpop.f32.mrf.mxu0
      %v1005 = vadd.f32 0.0, %v1004
      %1006 = vmatmul.f32.gmra.mxu0 %v967
      %v1007 = vpop.f32.mrf.mxu0
      %v1008 = vadd.f32 0.0, %v1007
      %1009 = vdwg.mxu0
      %v1010 = vadd.f32 %v937, %v987
      %v1011 = vadd.f32 %v938, %v990
      %v1012 = vadd.f32 %v939, %v993
      %v1013 = vadd.f32 %v940, %v996
      %v1014 = vadd.f32 %v941, %v999
      %v1015 = vadd.f32 %v942, %v1002
      %v1016 = vadd.f32 %v943, %v1005
      %v1017 = vadd.f32 %v944, %v1008
      %s1018 = scalar_lea.vmem %s314, 432
      %v1019 = vld [vmem:[%s1018] sm:$0xff]
      %v1020 = vld [vmem:[%s1018 + $0x10] sm:$0xff]
      %v1021 = vld [vmem:[%s1018 + $0x20] sm:$0xff]
      %v1022 = vld [vmem:[%s1018 + $0x30] sm:$0xff]
      %v1023 = vld [vmem:[%s1018 + $0x40] sm:$0xff]
      %v1024 = vld [vmem:[%s1018 + $0x50] sm:$0xff]
      %v1025 = vld [vmem:[%s1018 + $0x60] sm:$0xff]
      %v1026 = vld [vmem:[%s1018 + $0x70] sm:$0xff]
      %s1027 = scalar_lea.vmem %s319, 432
      %v1028 = vld [vmem:[%s1027] sm:$0xff]
      %v1029 = vld [vmem:[%s1027 + $0x10] sm:$0xff]
      %v1030 = vld [vmem:[%s1027 + $0x20] sm:$0xff]
      %v1031 = vld [vmem:[%s1027 + $0x30] sm:$0xff]
      %v1032 = vld [vmem:[%s1027 + $0x40] sm:$0xff]
      %v1033 = vld [vmem:[%s1027 + $0x50] sm:$0xff]
      %v1034 = vld [vmem:[%s1027 + $0x60] sm:$0xff]
      %v1035 = vld [vmem:[%s1027 + $0x70] sm:$0xff]
      %v1037 = vsel %vm397, %v1019, 0
      %v1040 = vsel %vm397, %v1020, 0
      %v1043 = vsel %vm397, %v1021, 0
      %v1046 = vsel %vm397, %v1022, 0
      %v1049 = vsel %vm397, %v1023, 0
      %v1052 = vsel %vm397, %v1024, 0
      %v1055 = vsel %vm397, %v1025, 0
      %v1058 = vsel %vm397, %v1026, 0
      %1060 = vmatpush.msra.mxu0 0.0
      %1061 = vmatpush.msra.mxu0 0.0
      %1062 = vmatpush.msra.mxu0 0.0
      %1063 = vmatpush.msra.mxu0 0.0
      %1064 = vmatpush.msra.mxu0 0.0
      %1065 = vmatpush.msra.mxu0 0.0
      %1066 = vmatpush.msra.mxu0 0.0
      %1067 = vmatpush.msra.mxu0 0.0
      %1068 = vmatpush.msra.mxu0 0.0
      %1069 = vmatpush.msra.mxu0 0.0
      %1070 = vmatpush.msra.mxu0 0.0
      %1071 = vmatpush.msra.mxu0 0.0
      %1072 = vmatpush.msra.mxu0 0.0
      %1073 = vmatpush.msra.mxu0 0.0
      %1074 = vmatpush.msra.mxu0 0.0
      %1075 = vmatpush.msra.mxu0 %v352
      %1076 = vmatmul.f32.gmra.mxu0 %v1037
      %v1077 = vpop.f32.mrf.mxu0
      %v1078 = vadd.f32 0.0, %v1077
      %1079 = vmatmul.f32.gmra.mxu0 %v1040
      %v1080 = vpop.f32.mrf.mxu0
      %v1081 = vadd.f32 0.0, %v1080
      %1082 = vmatmul.f32.gmra.mxu0 %v1043
      %v1083 = vpop.f32.mrf.mxu0
      %v1084 = vadd.f32 0.0, %v1083
      %1085 = vmatmul.f32.gmra.mxu0 %v1046
      %v1086 = vpop.f32.mrf.mxu0
      %v1087 = vadd.f32 0.0, %v1086
      %1088 = vmatmul.f32.gmra.mxu0 %v1049
      %v1089 = vpop.f32.mrf.mxu0
      %v1090 = vadd.f32 0.0, %v1089
      %1091 = vmatmul.f32.gmra.mxu0 %v1052
      %v1092 = vpop.f32.mrf.mxu0
      %v1093 = vadd.f32 0.0, %v1092
      %1094 = vmatmul.f32.gmra.mxu0 %v1055
      %v1095 = vpop.f32.mrf.mxu0
      %v1096 = vadd.f32 0.0, %v1095
      %1097 = vmatmul.f32.gmra.mxu0 %v1058
      %v1098 = vpop.f32.mrf.mxu0
      %v1099 = vadd.f32 0.0, %v1098
      %1100 = vdwg.mxu0
      %v1101 = vadd.f32 %v1010, %v1078
      %v1102 = vadd.f32 %v1011, %v1081
      %v1103 = vadd.f32 %v1012, %v1084
      %v1104 = vadd.f32 %v1013, %v1087
      %v1105 = vadd.f32 %v1014, %v1090
      %v1106 = vadd.f32 %v1015, %v1093
      %v1107 = vadd.f32 %v1016, %v1096
      %v1108 = vadd.f32 %v1017, %v1099
      %v1110 = vsel %vm397, %v1028, 0
      %v1113 = vsel %vm397, %v1029, 0
      %v1116 = vsel %vm397, %v1030, 0
      %v1119 = vsel %vm397, %v1031, 0
      %v1122 = vsel %vm397, %v1032, 0
      %v1125 = vsel %vm397, %v1033, 0
      %v1128 = vsel %vm397, %v1034, 0
      %v1131 = vsel %vm397, %v1035, 0
      %1133 = vmatpush.msra.mxu0 0.0
      %1134 = vmatpush.msra.mxu0 0.0
      %1135 = vmatpush.msra.mxu0 0.0
      %1136 = vmatpush.msra.mxu0 0.0
      %1137 = vmatpush.msra.mxu0 0.0
      %1138 = vmatpush.msra.mxu0 0.0
      %1139 = vmatpush.msra.mxu0 0.0
      %1140 = vmatpush.msra.mxu0 0.0
      %1141 = vmatpush.msra.mxu0 0.0
      %1142 = vmatpush.msra.mxu0 0.0
      %1143 = vmatpush.msra.mxu0 0.0
      %1144 = vmatpush.msra.mxu0 0.0
      %1145 = vmatpush.msra.mxu0 0.0
      %1146 = vmatpush.msra.mxu0 0.0
      %1147 = vmatpush.msra.mxu0 0.0
      %1148 = vmatpush.msra.mxu0 %v376
      %1149 = vmatmul.f32.gmra.mxu0 %v1110
      %v1150 = vpop.f32.mrf.mxu0
      %v1151 = vadd.f32 0.0, %v1150
      %1152 = vmatmul.f32.gmra.mxu0 %v1113
      %v1153 = vpop.f32.mrf.mxu0
      %v1154 = vadd.f32 0.0, %v1153
      %1155 = vmatmul.f32.gmra.mxu0 %v1116
      %v1156 = vpop.f32.mrf.mxu0
      %v1157 = vadd.f32 0.0, %v1156
      %1158 = vmatmul.f32.gmra.mxu0 %v1119
      %v1159 = vpop.f32.mrf.mxu0
      %v1160 = vadd.f32 0.0, %v1159
      %1161 = vmatmul.f32.gmra.mxu0 %v1122
      %v1162 = vpop.f32.mrf.mxu0
      %v1163 = vadd.f32 0.0, %v1162
      %1164 = vmatmul.f32.gmra.mxu0 %v1125
      %v1165 = vpop.f32.mrf.mxu0
      %v1166 = vadd.f32 0.0, %v1165
      %1167 = vmatmul.f32.gmra.mxu0 %v1128
      %v1168 = vpop.f32.mrf.mxu0
      %v1169 = vadd.f32 0.0, %v1168
      %1170 = vmatmul.f32.gmra.mxu0 %v1131
      %v1171 = vpop.f32.mrf.mxu0
      %v1172 = vadd.f32 0.0, %v1171
      %1173 = vdwg.mxu0
      %v1174 = vadd.f32 %v1101, %v1151
      %v1175 = vadd.f32 %v1102, %v1154
      %v1176 = vadd.f32 %v1103, %v1157
      %v1177 = vadd.f32 %v1104, %v1160
      %v1178 = vadd.f32 %v1105, %v1163
      %v1179 = vadd.f32 %v1106, %v1166
      %v1180 = vadd.f32 %v1107, %v1169
      %v1181 = vadd.f32 %v1108, %v1172
      %v1182 = vld [vmem:[%s854 + $0x1] sm:$0xff]
      %v1183 = vld [vmem:[%s854 + $0x11] sm:$0xff]
      %v1184 = vld [vmem:[%s854 + $0x21] sm:$0xff]
      %v1185 = vld [vmem:[%s854 + $0x31] sm:$0xff]
      %v1186 = vld [vmem:[%s854 + $0x41] sm:$0xff]
      %v1187 = vld [vmem:[%s854 + $0x51] sm:$0xff]
      %v1188 = vld [vmem:[%s854 + $0x61] sm:$0xff]
      %v1189 = vld [vmem:[%s854 + $0x71] sm:$0xff]
      %v1190 = vld [vmem:[%s863 + $0x1] sm:$0xff]
      %v1191 = vld [vmem:[%s863 + $0x11] sm:$0xff]
      %v1192 = vld [vmem:[%s863 + $0x21] sm:$0xff]
      %v1193 = vld [vmem:[%s863 + $0x31] sm:$0xff]
      %v1194 = vld [vmem:[%s863 + $0x41] sm:$0xff]
      %v1195 = vld [vmem:[%s863 + $0x51] sm:$0xff]
      %v1196 = vld [vmem:[%s863 + $0x61] sm:$0xff]
      %v1197 = vld [vmem:[%s863 + $0x71] sm:$0xff]
      %v1199 = vsel %vm397, %v1182, 0
      %v1202 = vsel %vm397, %v1183, 0
      %v1205 = vsel %vm397, %v1184, 0
      %v1208 = vsel %vm397, %v1185, 0
      %v1211 = vsel %vm397, %v1186, 0
      %v1214 = vsel %vm397, %v1187, 0
      %v1217 = vsel %vm397, %v1188, 0
      %v1220 = vsel %vm397, %v1189, 0
      %1222 = vmatpush.msra.mxu0 0.0
      %1223 = vmatpush.msra.mxu0 0.0
      %1224 = vmatpush.msra.mxu0 0.0
      %1225 = vmatpush.msra.mxu0 0.0
      %1226 = vmatpush.msra.mxu0 0.0
      %1227 = vmatpush.msra.mxu0 0.0
      %1228 = vmatpush.msra.mxu0 0.0
      %1229 = vmatpush.msra.mxu0 0.0
      %1230 = vmatpush.msra.mxu0 0.0
      %1231 = vmatpush.msra.mxu0 0.0
      %1232 = vmatpush.msra.mxu0 0.0
      %1233 = vmatpush.msra.mxu0 0.0
      %1234 = vmatpush.msra.mxu0 0.0
      %1235 = vmatpush.msra.mxu0 0.0
      %1236 = vmatpush.msra.mxu0 0.0
      %1237 = vmatpush.msra.mxu0 %v353
      %1238 = vmatmul.f32.gmra.mxu0 %v1199
      %v1239 = vpop.f32.mrf.mxu0
      %v1240 = vadd.f32 0.0, %v1239
      %1241 = vmatmul.f32.gmra.mxu0 %v1202
      %v1242 = vpop.f32.mrf.mxu0
      %v1243 = vadd.f32 0.0, %v1242
      %1244 = vmatmul.f32.gmra.mxu0 %v1205
      %v1245 = vpop.f32.mrf.mxu0
      %v1246 = vadd.f32 0.0, %v1245
      %1247 = vmatmul.f32.gmra.mxu0 %v1208
      %v1248 = vpop.f32.mrf.mxu0
      %v1249 = vadd.f32 0.0, %v1248
      %1250 = vmatmul.f32.gmra.mxu0 %v1211
      %v1251 = vpop.f32.mrf.mxu0
      %v1252 = vadd.f32 0.0, %v1251
      %1253 = vmatmul.f32.gmra.mxu0 %v1214
      %v1254 = vpop.f32.mrf.mxu0
      %v1255 = vadd.f32 0.0, %v1254
      %1256 = vmatmul.f32.gmra.mxu0 %v1217
      %v1257 = vpop.f32.mrf.mxu0
      %v1258 = vadd.f32 0.0, %v1257
      %1259 = vmatmul.f32.gmra.mxu0 %v1220
      %v1260 = vpop.f32.mrf.mxu0
      %v1261 = vadd.f32 0.0, %v1260
      %1262 = vdwg.mxu0
      %v1263 = vadd.f32 %v1174, %v1240
      %v1264 = vadd.f32 %v1175, %v1243
      %v1265 = vadd.f32 %v1176, %v1246
      %v1266 = vadd.f32 %v1177, %v1249
      %v1267 = vadd.f32 %v1178, %v1252
      %v1268 = vadd.f32 %v1179, %v1255
      %v1269 = vadd.f32 %v1180, %v1258
      %v1270 = vadd.f32 %v1181, %v1261
      %v1272 = vsel %vm397, %v1190, 0
      %v1275 = vsel %vm397, %v1191, 0
      %v1278 = vsel %vm397, %v1192, 0
      %v1281 = vsel %vm397, %v1193, 0
      %v1284 = vsel %vm397, %v1194, 0
      %v1287 = vsel %vm397, %v1195, 0
      %v1290 = vsel %vm397, %v1196, 0
      %v1293 = vsel %vm397, %v1197, 0
      %1295 = vmatpush.msra.mxu0 0.0
      %1296 = vmatpush.msra.mxu0 0.0
      %1297 = vmatpush.msra.mxu0 0.0
      %1298 = vmatpush.msra.mxu0 0.0
      %1299 = vmatpush.msra.mxu0 0.0
      %1300 = vmatpush.msra.mxu0 0.0
      %1301 = vmatpush.msra.mxu0 0.0
      %1302 = vmatpush.msra.mxu0 0.0
      %1303 = vmatpush.msra.mxu0 0.0
      %1304 = vmatpush.msra.mxu0 0.0
      %1305 = vmatpush.msra.mxu0 0.0
      %1306 = vmatpush.msra.mxu0 0.0
      %1307 = vmatpush.msra.mxu0 0.0
      %1308 = vmatpush.msra.mxu0 0.0
      %1309 = vmatpush.msra.mxu0 0.0
      %1310 = vmatpush.msra.mxu0 %v377
      %1311 = vmatmul.f32.gmra.mxu0 %v1272
      %v1312 = vpop.f32.mrf.mxu0
      %v1313 = vadd.f32 0.0, %v1312
      %1314 = vmatmul.f32.gmra.mxu0 %v1275
      %v1315 = vpop.f32.mrf.mxu0
      %v1316 = vadd.f32 0.0, %v1315
      %1317 = vmatmul.f32.gmra.mxu0 %v1278
      %v1318 = vpop.f32.mrf.mxu0
      %v1319 = vadd.f32 0.0, %v1318
      %1320 = vmatmul.f32.gmra.mxu0 %v1281
      %v1321 = vpop.f32.mrf.mxu0
      %v1322 = vadd.f32 0.0, %v1321
      %1323 = vmatmul.f32.gmra.mxu0 %v1284
      %v1324 = vpop.f32.mrf.mxu0
      %v1325 = vadd.f32 0.0, %v1324
      %1326 = vmatmul.f32.gmra.mxu0 %v1287
      %v1327 = vpop.f32.mrf.mxu0
      %v1328 = vadd.f32 0.0, %v1327
      %1329 = vmatmul.f32.gmra.mxu0 %v1290
      %v1330 = vpop.f32.mrf.mxu0
      %v1331 = vadd.f32 0.0, %v1330
      %1332 = vmatmul.f32.gmra.mxu0 %v1293
      %v1333 = vpop.f32.mrf.mxu0
      %v1334 = vadd.f32 0.0, %v1333
      %1335 = vdwg.mxu0
      %v1336 = vadd.f32 %v1263, %v1313
      %v1337 = vadd.f32 %v1264, %v1316
      %v1338 = vadd.f32 %v1265, %v1319
      %v1339 = vadd.f32 %v1266, %v1322
      %v1340 = vadd.f32 %v1267, %v1325
      %v1341 = vadd.f32 %v1268, %v1328
      %v1342 = vadd.f32 %v1269, %v1331
      %v1343 = vadd.f32 %v1270, %v1334
      %s1344 = scalar_lea.vmem %s314, 16
      %v1345 = vld [vmem:[%s1344] sm:$0xff]
      %v1346 = vld [vmem:[%s1344 + $0x10] sm:$0xff]
      %v1347 = vld [vmem:[%s1344 + $0x20] sm:$0xff]
      %v1348 = vld [vmem:[%s1344 + $0x30] sm:$0xff]
      %v1349 = vld [vmem:[%s1344 + $0x40] sm:$0xff]
      %v1350 = vld [vmem:[%s1344 + $0x50] sm:$0xff]
      %v1351 = vld [vmem:[%s1344 + $0x60] sm:$0xff]
      %v1352 = vld [vmem:[%s1344 + $0x70] sm:$0xff]
      %s1353 = scalar_lea.vmem %s319, 16
      %v1354 = vld [vmem:[%s1353] sm:$0xff]
      %v1355 = vld [vmem:[%s1353 + $0x10] sm:$0xff]
      %v1356 = vld [vmem:[%s1353 + $0x20] sm:$0xff]
      %v1357 = vld [vmem:[%s1353 + $0x30] sm:$0xff]
      %v1358 = vld [vmem:[%s1353 + $0x40] sm:$0xff]
      %v1359 = vld [vmem:[%s1353 + $0x50] sm:$0xff]
      %v1360 = vld [vmem:[%s1353 + $0x60] sm:$0xff]
      %v1361 = vld [vmem:[%s1353 + $0x70] sm:$0xff]
      %v1363 = vsel %vm397, %v1345, 0
      %v1366 = vsel %vm397, %v1346, 0
      %v1369 = vsel %vm397, %v1347, 0
      %v1372 = vsel %vm397, %v1348, 0
      %v1375 = vsel %vm397, %v1349, 0
      %v1378 = vsel %vm397, %v1350, 0
      %v1381 = vsel %vm397, %v1351, 0
      %v1384 = vsel %vm397, %v1352, 0
      %1386 = vmatpush.msra.mxu0 0.0
      %1387 = vmatpush.msra.mxu0 0.0
      %1388 = vmatpush.msra.mxu0 0.0
      %1389 = vmatpush.msra.mxu0 0.0
      %1390 = vmatpush.msra.mxu0 0.0
      %1391 = vmatpush.msra.mxu0 0.0
      %1392 = vmatpush.msra.mxu0 0.0
      %1393 = vmatpush.msra.mxu0 0.0
      %1394 = vmatpush.msra.mxu0 0.0
      %1395 = vmatpush.msra.mxu0 0.0
      %1396 = vmatpush.msra.mxu0 0.0
      %1397 = vmatpush.msra.mxu0 0.0
      %1398 = vmatpush.msra.mxu0 0.0
      %1399 = vmatpush.msra.mxu0 0.0
      %1400 = vmatpush.msra.mxu0 0.0
      %1401 = vmatpush.msra.mxu0 %v354
      %1402 = vmatmul.f32.gmra.mxu0 %v1363
      %v1403 = vpop.f32.mrf.mxu0
      %v1404 = vadd.f32 0.0, %v1403
      %1405 = vmatmul.f32.gmra.mxu0 %v1366
      %v1406 = vpop.f32.mrf.mxu0
      %v1407 = vadd.f32 0.0, %v1406
      %1408 = vmatmul.f32.gmra.mxu0 %v1369
      %v1409 = vpop.f32.mrf.mxu0
      %v1410 = vadd.f32 0.0, %v1409
      %1411 = vmatmul.f32.gmra.mxu0 %v1372
      %v1412 = vpop.f32.mrf.mxu0
      %v1413 = vadd.f32 0.0, %v1412
      %1414 = vmatmul.f32.gmra.mxu0 %v1375
      %v1415 = vpop.f32.mrf.mxu0
      %v1416 = vadd.f32 0.0, %v1415
      %1417 = vmatmul.f32.gmra.mxu0 %v1378
      %v1418 = vpop.f32.mrf.mxu0
      %v1419 = vadd.f32 0.0, %v1418
      %1420 = vmatmul.f32.gmra.mxu0 %v1381
      %v1421 = vpop.f32.mrf.mxu0
      %v1422 = vadd.f32 0.0, %v1421
      %1423 = vmatmul.f32.gmra.mxu0 %v1384
      %v1424 = vpop.f32.mrf.mxu0
      %v1425 = vadd.f32 0.0, %v1424
      %1426 = vdwg.mxu0
      %v1427 = vadd.f32 %v1336, %v1404
      %v1428 = vadd.f32 %v1337, %v1407
      %v1429 = vadd.f32 %v1338, %v1410
      %v1430 = vadd.f32 %v1339, %v1413
      %v1431 = vadd.f32 %v1340, %v1416
      %v1432 = vadd.f32 %v1341, %v1419
      %v1433 = vadd.f32 %v1342, %v1422
      %v1434 = vadd.f32 %v1343, %v1425
      %v1436 = vsel %vm397, %v1354, 0
      %v1439 = vsel %vm397, %v1355, 0
      %v1442 = vsel %vm397, %v1356, 0
      %v1445 = vsel %vm397, %v1357, 0
      %v1448 = vsel %vm397, %v1358, 0
      %v1451 = vsel %vm397, %v1359, 0
      %v1454 = vsel %vm397, %v1360, 0
      %v1457 = vsel %vm397, %v1361, 0
      %1459 = vmatpush.msra.mxu0 0.0
      %1460 = vmatpush.msra.mxu0 0.0
      %1461 = vmatpush.msra.mxu0 0.0
      %1462 = vmatpush.msra.mxu0 0.0
      %1463 = vmatpush.msra.mxu0 0.0
      %1464 = vmatpush.msra.mxu0 0.0
      %1465 = vmatpush.msra.mxu0 0.0
      %1466 = vmatpush.msra.mxu0 0.0
      %1467 = vmatpush.msra.mxu0 0.0
      %1468 = vmatpush.msra.mxu0 0.0
      %1469 = vmatpush.msra.mxu0 0.0
      %1470 = vmatpush.msra.mxu0 0.0
      %1471 = vmatpush.msra.mxu0 0.0
      %1472 = vmatpush.msra.mxu0 0.0
      %1473 = vmatpush.msra.mxu0 0.0
      %1474 = vmatpush.msra.mxu0 %v378
      %1475 = vmatmul.f32.gmra.mxu0 %v1436
      %v1476 = vpop.f32.mrf.mxu0
      %v1477 = vadd.f32 0.0, %v1476
      %1478 = vmatmul.f32.gmra.mxu0 %v1439
      %v1479 = vpop.f32.mrf.mxu0
      %v1480 = vadd.f32 0.0, %v1479
      %1481 = vmatmul.f32.gmra.mxu0 %v1442
      %v1482 = vpop.f32.mrf.mxu0
      %v1483 = vadd.f32 0.0, %v1482
      %1484 = vmatmul.f32.gmra.mxu0 %v1445
      %v1485 = vpop.f32.mrf.mxu0
      %v1486 = vadd.f32 0.0, %v1485
      %1487 = vmatmul.f32.gmra.mxu0 %v1448
      %v1488 = vpop.f32.mrf.mxu0
      %v1489 = vadd.f32 0.0, %v1488
      %1490 = vmatmul.f32.gmra.mxu0 %v1451
      %v1491 = vpop.f32.mrf.mxu0
      %v1492 = vadd.f32 0.0, %v1491
      %1493 = vmatmul.f32.gmra.mxu0 %v1454
      %v1494 = vpop.f32.mrf.mxu0
      %v1495 = vadd.f32 0.0, %v1494
      %1496 = vmatmul.f32.gmra.mxu0 %v1457
      %v1497 = vpop.f32.mrf.mxu0
      %v1498 = vadd.f32 0.0, %v1497
      %1499 = vdwg.mxu0
      %v1500 = vadd.f32 %v1427, %v1477
      %v1501 = vadd.f32 %v1428, %v1480
      %v1502 = vadd.f32 %v1429, %v1483
      %v1503 = vadd.f32 %v1430, %v1486
      %v1504 = vadd.f32 %v1431, %v1489
      %v1505 = vadd.f32 %v1432, %v1492
      %v1506 = vadd.f32 %v1433, %v1495
      %v1507 = vadd.f32 %v1434, %v1498
      %s1508 = scalar_lea.vmem %s314, 160
      %v1509 = vld [vmem:[%s1508] sm:$0xff]
      %v1510 = vld [vmem:[%s1508 + $0x10] sm:$0xff]
      %v1511 = vld [vmem:[%s1508 + $0x20] sm:$0xff]
      %v1512 = vld [vmem:[%s1508 + $0x30] sm:$0xff]
      %v1513 = vld [vmem:[%s1508 + $0x40] sm:$0xff]
      %v1514 = vld [vmem:[%s1508 + $0x50] sm:$0xff]
      %v1515 = vld [vmem:[%s1508 + $0x60] sm:$0xff]
      %v1516 = vld [vmem:[%s1508 + $0x70] sm:$0xff]
      %s1517 = scalar_lea.vmem %s319, 160
      %v1518 = vld [vmem:[%s1517] sm:$0xff]
      %v1519 = vld [vmem:[%s1517 + $0x10] sm:$0xff]
      %v1520 = vld [vmem:[%s1517 + $0x20] sm:$0xff]
      %v1521 = vld [vmem:[%s1517 + $0x30] sm:$0xff]
      %v1522 = vld [vmem:[%s1517 + $0x40] sm:$0xff]
      %v1523 = vld [vmem:[%s1517 + $0x50] sm:$0xff]
      %v1524 = vld [vmem:[%s1517 + $0x60] sm:$0xff]
      %v1525 = vld [vmem:[%s1517 + $0x70] sm:$0xff]
      %v1527 = vsel %vm397, %v1509, 0
      %v1530 = vsel %vm397, %v1510, 0
      %v1533 = vsel %vm397, %v1511, 0
      %v1536 = vsel %vm397, %v1512, 0
      %v1539 = vsel %vm397, %v1513, 0
      %v1542 = vsel %vm397, %v1514, 0
      %v1545 = vsel %vm397, %v1515, 0
      %v1548 = vsel %vm397, %v1516, 0
      %1550 = vmatpush.msra.mxu0 0.0
      %1551 = vmatpush.msra.mxu0 0.0
      %1552 = vmatpush.msra.mxu0 0.0
      %1553 = vmatpush.msra.mxu0 0.0
      %1554 = vmatpush.msra.mxu0 0.0
      %1555 = vmatpush.msra.mxu0 0.0
      %1556 = vmatpush.msra.mxu0 0.0
      %1557 = vmatpush.msra.mxu0 0.0
      %1558 = vmatpush.msra.mxu0 0.0
      %1559 = vmatpush.msra.mxu0 0.0
      %1560 = vmatpush.msra.mxu0 0.0
      %1561 = vmatpush.msra.mxu0 0.0
      %1562 = vmatpush.msra.mxu0 0.0
      %1563 = vmatpush.msra.mxu0 0.0
      %1564 = vmatpush.msra.mxu0 0.0
      %1565 = vmatpush.msra.mxu0 %v355
      %1566 = vmatmul.f32.gmra.mxu0 %v1527
      %v1567 = vpop.f32.mrf.mxu0
      %v1568 = vadd.f32 0.0, %v1567
      %1569 = vmatmul.f32.gmra.mxu0 %v1530
      %v1570 = vpop.f32.mrf.mxu0
      %v1571 = vadd.f32 0.0, %v1570
      %1572 = vmatmul.f32.gmra.mxu0 %v1533
      %v1573 = vpop.f32.mrf.mxu0
      %v1574 = vadd.f32 0.0, %v1573
      %1575 = vmatmul.f32.gmra.mxu0 %v1536
      %v1576 = vpop.f32.mrf.mxu0
      %v1577 = vadd.f32 0.0, %v1576
      %1578 = vmatmul.f32.gmra.mxu0 %v1539
      %v1579 = vpop.f32.mrf.mxu0
      %v1580 = vadd.f32 0.0, %v1579
      %1581 = vmatmul.f32.gmra.mxu0 %v1542
      %v1582 = vpop.f32.mrf.mxu0
      %v1583 = vadd.f32 0.0, %v1582
      %1584 = vmatmul.f32.gmra.mxu0 %v1545
      %v1585 = vpop.f32.mrf.mxu0
      %v1586 = vadd.f32 0.0, %v1585
      %1587 = vmatmul.f32.gmra.mxu0 %v1548
      %v1588 = vpop.f32.mrf.mxu0
      %v1589 = vadd.f32 0.0, %v1588
      %1590 = vdwg.mxu0
      %v1591 = vadd.f32 %v1500, %v1568
      %v1592 = vadd.f32 %v1501, %v1571
      %v1593 = vadd.f32 %v1502, %v1574
      %v1594 = vadd.f32 %v1503, %v1577
      %v1595 = vadd.f32 %v1504, %v1580
      %v1596 = vadd.f32 %v1505, %v1583
      %v1597 = vadd.f32 %v1506, %v1586
      %v1598 = vadd.f32 %v1507, %v1589
      %v1600 = vsel %vm397, %v1518, 0
      %v1603 = vsel %vm397, %v1519, 0
      %v1606 = vsel %vm397, %v1520, 0
      %v1609 = vsel %vm397, %v1521, 0
      %v1612 = vsel %vm397, %v1522, 0
      %v1615 = vsel %vm397, %v1523, 0
      %v1618 = vsel %vm397, %v1524, 0
      %v1621 = vsel %vm397, %v1525, 0
      %1623 = vmatpush.msra.mxu0 0.0
      %1624 = vmatpush.msra.mxu0 0.0
      %1625 = vmatpush.msra.mxu0 0.0
      %1626 = vmatpush.msra.mxu0 0.0
      %1627 = vmatpush.msra.mxu0 0.0
      %1628 = vmatpush.msra.mxu0 0.0
      %1629 = vmatpush.msra.mxu0 0.0
      %1630 = vmatpush.msra.mxu0 0.0
      %1631 = vmatpush.msra.mxu0 0.0
      %1632 = vmatpush.msra.mxu0 0.0
      %1633 = vmatpush.msra.mxu0 0.0
      %1634 = vmatpush.msra.mxu0 0.0
      %1635 = vmatpush.msra.mxu0 0.0
      %1636 = vmatpush.msra.mxu0 0.0
      %1637 = vmatpush.msra.mxu0 0.0
      %1638 = vmatpush.msra.mxu0 %v379
      %1639 = vmatmul.f32.gmra.mxu0 %v1600
      %v1640 = vpop.f32.mrf.mxu0
      %v1641 = vadd.f32 0.0, %v1640
      %1642 = vmatmul.f32.gmra.mxu0 %v1603
      %v1643 = vpop.f32.mrf.mxu0
      %v1644 = vadd.f32 0.0, %v1643
      %1645 = vmatmul.f32.gmra.mxu0 %v1606
      %v1646 = vpop.f32.mrf.mxu0
      %v1647 = vadd.f32 0.0, %v1646
      %1648 = vmatmul.f32.gmra.mxu0 %v1609
      %v1649 = vpop.f32.mrf.mxu0
      %v1650 = vadd.f32 0.0, %v1649
      %1651 = vmatmul.f32.gmra.mxu0 %v1612
      %v1652 = vpop.f32.mrf.mxu0
      %v1653 = vadd.f32 0.0, %v1652
      %1654 = vmatmul.f32.gmra.mxu0 %v1615
      %v1655 = vpop.f32.mrf.mxu0
      %v1656 = vadd.f32 0.0, %v1655
      %1657 = vmatmul.f32.gmra.mxu0 %v1618
      %v1658 = vpop.f32.mrf.mxu0
      %v1659 = vadd.f32 0.0, %v1658
      %1660 = vmatmul.f32.gmra.mxu0 %v1621
      %v1661 = vpop.f32.mrf.mxu0
      %v1662 = vadd.f32 0.0, %v1661
      %1663 = vdwg.mxu0
      %v1664 = vadd.f32 %v1591, %v1641
      %v1665 = vadd.f32 %v1592, %v1644
      %v1666 = vadd.f32 %v1593, %v1647
      %v1667 = vadd.f32 %v1594, %v1650
      %v1668 = vadd.f32 %v1595, %v1653
      %v1669 = vadd.f32 %v1596, %v1656
      %v1670 = vadd.f32 %v1597, %v1659
      %v1671 = vadd.f32 %v1598, %v1662
      %v1672 = vld [vmem:[%s1344 + $0x1] sm:$0xff]
      %v1673 = vld [vmem:[%s1344 + $0x11] sm:$0xff]
      %v1674 = vld [vmem:[%s1344 + $0x21] sm:$0xff]
      %v1675 = vld [vmem:[%s1344 + $0x31] sm:$0xff]
      %v1676 = vld [vmem:[%s1344 + $0x41] sm:$0xff]
      %v1677 = vld [vmem:[%s1344 + $0x51] sm:$0xff]
      %v1678 = vld [vmem:[%s1344 + $0x61] sm:$0xff]
      %v1679 = vld [vmem:[%s1344 + $0x71] sm:$0xff]
      %v1680 = vld [vmem:[%s1353 + $0x1] sm:$0xff]
      %v1681 = vld [vmem:[%s1353 + $0x11] sm:$0xff]
      %v1682 = vld [vmem:[%s1353 + $0x21] sm:$0xff]
      %v1683 = vld [vmem:[%s1353 + $0x31] sm:$0xff]
      %v1684 = vld [vmem:[%s1353 + $0x41] sm:$0xff]
      %v1685 = vld [vmem:[%s1353 + $0x51] sm:$0xff]
      %v1686 = vld [vmem:[%s1353 + $0x61] sm:$0xff]
      %v1687 = vld [vmem:[%s1353 + $0x71] sm:$0xff]
      %v1689 = vsel %vm397, %v1672, 0
      %v1692 = vsel %vm397, %v1673, 0
      %v1695 = vsel %vm397, %v1674, 0
      %v1698 = vsel %vm397, %v1675, 0
      %v1701 = vsel %vm397, %v1676, 0
      %v1704 = vsel %vm397, %v1677, 0
      %v1707 = vsel %vm397, %v1678, 0
      %v1710 = vsel %vm397, %v1679, 0
      %1712 = vmatpush.msra.mxu0 0.0
      %1713 = vmatpush.msra.mxu0 0.0
      %1714 = vmatpush.msra.mxu0 0.0
      %1715 = vmatpush.msra.mxu0 0.0
      %1716 = vmatpush.msra.mxu0 0.0
      %1717 = vmatpush.msra.mxu0 0.0
      %1718 = vmatpush.msra.mxu0 0.0
      %1719 = vmatpush.msra.mxu0 0.0
      %1720 = vmatpush.msra.mxu0 0.0
      %1721 = vmatpush.msra.mxu0 0.0
      %1722 = vmatpush.msra.mxu0 0.0
      %1723 = vmatpush.msra.mxu0 0.0
      %1724 = vmatpush.msra.mxu0 0.0
      %1725 = vmatpush.msra.mxu0 0.0
      %1726 = vmatpush.msra.mxu0 0.0
      %1727 = vmatpush.msra.mxu0 %v356
      %1728 = vmatmul.f32.gmra.mxu0 %v1689
      %v1729 = vpop.f32.mrf.mxu0
      %v1730 = vadd.f32 0.0, %v1729
      %1731 = vmatmul.f32.gmra.mxu0 %v1692
      %v1732 = vpop.f32.mrf.mxu0
      %v1733 = vadd.f32 0.0, %v1732
      %1734 = vmatmul.f32.gmra.mxu0 %v1695
      %v1735 = vpop.f32.mrf.mxu0
      %v1736 = vadd.f32 0.0, %v1735
      %1737 = vmatmul.f32.gmra.mxu0 %v1698
      %v1738 = vpop.f32.mrf.mxu0
      %v1739 = vadd.f32 0.0, %v1738
      %1740 = vmatmul.f32.gmra.mxu0 %v1701
      %v1741 = vpop.f32.mrf.mxu0
      %v1742 = vadd.f32 0.0, %v1741
      %1743 = vmatmul.f32.gmra.mxu0 %v1704
      %v1744 = vpop.f32.mrf.mxu0
      %v1745 = vadd.f32 0.0, %v1744
      %1746 = vmatmul.f32.gmra.mxu0 %v1707
      %v1747 = vpop.f32.mrf.mxu0
      %v1748 = vadd.f32 0.0, %v1747
      %1749 = vmatmul.f32.gmra.mxu0 %v1710
      %v1750 = vpop.f32.mrf.mxu0
      %v1751 = vadd.f32 0.0, %v1750
      %1752 = vdwg.mxu0
      %v1753 = vadd.f32 %v1664, %v1730
      %v1754 = vadd.f32 %v1665, %v1733
      %v1755 = vadd.f32 %v1666, %v1736
      %v1756 = vadd.f32 %v1667, %v1739
      %v1757 = vadd.f32 %v1668, %v1742
      %v1758 = vadd.f32 %v1669, %v1745
      %v1759 = vadd.f32 %v1670, %v1748
      %v1760 = vadd.f32 %v1671, %v1751
      %v1762 = vsel %vm397, %v1680, 0
      %v1765 = vsel %vm397, %v1681, 0
      %v1768 = vsel %vm397, %v1682, 0
      %v1771 = vsel %vm397, %v1683, 0
      %v1774 = vsel %vm397, %v1684, 0
      %v1777 = vsel %vm397, %v1685, 0
      %v1780 = vsel %vm397, %v1686, 0
      %v1783 = vsel %vm397, %v1687, 0
      %1785 = vmatpush.msra.mxu0 0.0
      %1786 = vmatpush.msra.mxu0 0.0
      %1787 = vmatpush.msra.mxu0 0.0
      %1788 = vmatpush.msra.mxu0 0.0
      %1789 = vmatpush.msra.mxu0 0.0
      %1790 = vmatpush.msra.mxu0 0.0
      %1791 = vmatpush.msra.mxu0 0.0
      %1792 = vmatpush.msra.mxu0 0.0
      %1793 = vmatpush.msra.mxu0 0.0
      %1794 = vmatpush.msra.mxu0 0.0
      %1795 = vmatpush.msra.mxu0 0.0
      %1796 = vmatpush.msra.mxu0 0.0
      %1797 = vmatpush.msra.mxu0 0.0
      %1798 = vmatpush.msra.mxu0 0.0
      %1799 = vmatpush.msra.mxu0 0.0
      %1800 = vmatpush.msra.mxu0 %v380
      %1801 = vmatmul.f32.gmra.mxu0 %v1762
      %v1802 = vpop.f32.mrf.mxu0
      %v1803 = vadd.f32 0.0, %v1802
      %1804 = vmatmul.f32.gmra.mxu0 %v1765
      %v1805 = vpop.f32.mrf.mxu0
      %v1806 = vadd.f32 0.0, %v1805
      %1807 = vmatmul.f32.gmra.mxu0 %v1768
      %v1808 = vpop.f32.mrf.mxu0
      %v1809 = vadd.f32 0.0, %v1808
      %1810 = vmatmul.f32.gmra.mxu0 %v1771
      %v1811 = vpop.f32.mrf.mxu0
      %v1812 = vadd.f32 0.0, %v1811
      %1813 = vmatmul.f32.gmra.mxu0 %v1774
      %v1814 = vpop.f32.mrf.mxu0
      %v1815 = vadd.f32 0.0, %v1814
      %1816 = vmatmul.f32.gmra.mxu0 %v1777
      %v1817 = vpop.f32.mrf.mxu0
      %v1818 = vadd.f32 0.0, %v1817
      %1819 = vmatmul.f32.gmra.mxu0 %v1780
      %v1820 = vpop.f32.mrf.mxu0
      %v1821 = vadd.f32 0.0, %v1820
      %1822 = vmatmul.f32.gmra.mxu0 %v1783
      %v1823 = vpop.f32.mrf.mxu0
      %v1824 = vadd.f32 0.0, %v1823
      %1825 = vdwg.mxu0
      %v1826 = vadd.f32 %v1753, %v1803
      %v1827 = vadd.f32 %v1754, %v1806
      %v1828 = vadd.f32 %v1755, %v1809
      %v1829 = vadd.f32 %v1756, %v1812
      %v1830 = vadd.f32 %v1757, %v1815
      %v1831 = vadd.f32 %v1758, %v1818
      %v1832 = vadd.f32 %v1759, %v1821
      %v1833 = vadd.f32 %v1760, %v1824
      %v1834 = vld [vmem:[%s6] sm:$0x1]
      %v1836 = vperm.slane %v1834, 0
      %v1838 = vadd.f32 %v1826, %v1836
      %v1839 = vadd.f32 %v1827, %v1836
      %v1840 = vadd.f32 %v1828, %v1836
      %v1841 = vadd.f32 %v1829, %v1836
      %v1842 = vadd.f32 %v1830, %v1836
      %v1843 = vadd.f32 %v1831, %v1836
      %v1844 = vadd.f32 %v1832, %v1836
      %v1845 = vadd.f32 %v1833, %v1836
      %v1846 = vmax.f32 %v1838, 0.0
      %v1847 = vmax.f32 %v1839, 0.0
      %v1848 = vmax.f32 %v1840, 0.0
      %v1849 = vmax.f32 %v1841, 0.0
      %v1850 = vmax.f32 %v1842, 0.0
      %v1851 = vmax.f32 %v1843, 0.0
      %v1852 = vmax.f32 %v1844, 0.0
      %v1853 = vmax.f32 %v1845, 0.0
      %1854 = vst.msk [vmem:[%s332] sm:$0xff] %vm397, %v1846
      %1855 = vst.msk [vmem:[%s332 + $0x8] sm:$0xff] %vm397, %v1847
      %1856 = vst.msk [vmem:[%s332 + $0x10] sm:$0xff] %vm397, %v1848
      %1857 = vst.msk [vmem:[%s332 + $0x18] sm:$0xff] %vm397, %v1849
      %1858 = vst.msk [vmem:[%s332 + $0x20] sm:$0xff] %vm397, %v1850
      %1859 = vst.msk [vmem:[%s332 + $0x28] sm:$0xff] %vm397, %v1851
      %1860 = vst.msk [vmem:[%s332 + $0x30] sm:$0xff] %vm397, %v1852
      %1861 = vst.msk [vmem:[%s332 + $0x38] sm:$0xff] %vm397, %v1853
      %p1862 = scmp.lt.s32.totalorder %s18, 1
      %s1863 = scalar_select %p1862, %s18, 1
      %s1864 = smul.addr %s1863, 8
      %s1865 = smul.addr %s1864, 8
      %s1866 = scalar_lea.vmem %s7, %s1865
      // Predicated region
      $region49: #{haar_conv_forward.3} parent=47 // pred_check
        %p1867 = pneg %p203
      $region50: #{haar_conv_forward.3} parent=47 // pred_check_branch
        %1869 = sbr.rel (%p1867) target = $region52
      $region51: #{haar_conv_forward.3} parent=47 // pred_region
        _
      $region52: #{haar_conv_forward.3} parent=47 // pred_fallthru
        _
    $region48: #{haar_conv_forward.3} parent=5 // pred_fallthru
      _
    %p1870 = scmp.le.s32.totalorder 2, %s13
    // Predicated region
    $region53: #{haar_conv_forward.3} parent=5 // pred_check
      %p1871 = pneg %p1870
    $region54: #{haar_conv_forward.3} parent=5 // pred_check_branch
      %1873 = sbr.rel (%p1871) target = $region56
    $region55: #{haar_conv_forward.3} parent=5 // pred_region
      %s1874 = ssub.s32 %s13, 2
      // Predicated region
      $region57: #{haar_conv_forward.3} parent=55 // pred_check
        %p1875 = pneg %p209
      $region58: #{haar_conv_forward.3} parent=55 // pred_check_branch
        %1877 = sbr.rel (%p1875) target = $region60
      $region59: #{haar_conv_forward.3} parent=55 // pred_region
        %p1878 = scmp.lt.s32.totalorder %s19, 1
        %s1879 = scalar_select %p1878, %s19, 1
        %s1880 = smul.addr %s1879, 8
        %s1881 = smul.addr %s1880, 8
        %s1882 = scalar_lea.vmem %s7, %s1881
      $region60: #{haar_conv_forward.3} parent=55 // pred_fallthru
        _
    $region56: #{haar_conv_forward.3} parent=5 // pred_fallthru
      _
  $region6: #{haar_conv_forward.3} parent=0 // loop_footer
    %s17 = sadd.s32 1, %s13
  $region7: #{haar_conv_forward.3} parent=0 // loop_footer_branch
    %12 = sbr.rel target = $region3
  $region8: #{haar_conv_forward.3} parent=0 // loop_exit
    _

</llo_original>
